<compile_context>
chip_gen: v6e
topology: v6e:2x2x1
jax: 0.10.0
libtpu: 0.0.40
codegen_flags: <defaults>
</compile_context>

<pallas_src>
import numpy as np
import jax
import jax.numpy as jnp
from jax.experimental import pallas as pl
from jax.experimental.pallas import tpu as pltpu


_TINY_RESIZE_ELEMS = 16 * 1024        # below this, dispatch overhead > compute


def _vmem_limit(step_bytes, slack=4 << 20, floor=8 << 20, cap=96 << 20):
    """Scoped-VMEM budget: ~double-buffered per-step footprint + slack."""
    return int(min(max(2 * step_bytes + slack, floor), cap))


# ----------------------------------------------------------------------------
# Bilinear resize (align_corners=True), separable:  out_c = Rh @ X_c @ Rw^T
# ----------------------------------------------------------------------------
def _bilinear_matrix(n_out, n_in):
    r = np.zeros((n_out, n_in), dtype=np.float32)
    for o in range(n_out):
        src = 0.0 if n_out == 1 else o * (n_in - 1) / (n_out - 1)
        i0 = min(int(np.floor(src)), n_in - 1)
        i1 = min(i0 + 1, n_in - 1)
        w1 = src - i0
        r[o, i0] += 1.0 - w1
        r[o, i1] += w1
    return r


def _resize_kernel(rh_ref, rwt_ref, x_ref, o_ref):
    # rh:(Hout,Hin)  rwt:(Win,Wout)  x:(1,1,Hin,Win)  o:(1,1,Hout,Wout)
    t = jnp.dot(rh_ref[...], x_ref[0, 0], preferred_element_type=jnp.float32)
    o_ref[0, 0] = jnp.dot(t, rwt_ref[...],
                          preferred_element_type=jnp.float32).astype(o_ref.dtype)


def bilinear_resize_nchw(x, out_h, out_w):
    n, c, in_h, in_w = x.shape
    rh = jnp.asarray(_bilinear_matrix(out_h, in_h))          # (out_h, in_h)
    rwt = jnp.asarray(_bilinear_matrix(out_w, in_w).T)       # (in_w, out_w)

    if n * c * out_h * out_w < _TINY_RESIZE_ELEMS:
        # Tiny resize (feat_2 -> feat_1 size at test shapes): leave to XLA.
        t = jnp.einsum('oh,nchw->ncow', rh, x)
        return jnp.einsum('ncow,wq->ncoq', t, rwt)

    step_bytes = 4 * (out_h * in_h + in_w * out_w
                      + 2 * in_h * in_w + 2 * out_h * out_w)
    return pl.pallas_call(
        _resize_kernel,
        out_shape=jax.ShapeDtypeStruct((n, c, out_h, out_w), jnp.float32),
        grid=(n, c),
        in_specs=[
            pl.BlockSpec((out_h, in_h), lambda b, ch: (0, 0)),       # resident
            pl.BlockSpec((in_w, out_w), lambda b, ch: (0, 0)),       # resident
            pl.BlockSpec((1, 1, in_h, in_w), lambda b, ch: (b, ch, 0, 0)),
        ],
        out_specs=pl.BlockSpec((1, 1, out_h, out_w), lambda b, ch: (b, ch, 0, 0)),
        compiler_params=pltpu.CompilerParams(
            dimension_semantics=("parallel", "parallel"),
            vmem_limit_bytes=_vmem_limit(step_bytes)),
    )(rh, rwt, x)


# ----------------------------------------------------------------------------
# Classifier_Module (early-return semantics): out = conv_dil6(x) + conv_dil12(x)
# Fused concat + single im2col matmul, NCHW (lane-dense) output.
# ----------------------------------------------------------------------------
def _make_decoder_kernel(h, w, pad, dilations, c2, c1):
    taps = [(pad - d + ky * d, pad - d + kx * d)
            for d in dilations for ky in range(3) for kx in range(3)]

    def kernel(xp2_ref, xp1_ref, w_ref, b_ref, o_ref, patches_ref):
        # xp2:(1,hp,wp,c2) bf16   xp1:(1,hp,wp,c1) bf16
        # w:(K,cout) bf16         b:(1,cout) f32     o:(1,cout,h*w) f32
        # patches scratch:(h*w,K) bf16 -- im2col built once per step, covering
        # BOTH inputs (the channel concat of the reference is fused here).
        col = 0
        for xp_ref, c in ((xp2_ref, c2), (xp1_ref, c1)):
            for (y0, x0) in taps:
                patches_ref[:, col:col + c] = (
                    xp_ref[0, y0:y0 + h, x0:x0 + w, :].reshape(h * w, c))
                col += c
        # One large-K matmul (K = 18 * (c2 + c1)); bf16 operands, f32 accumulation.
        acc = jnp.dot(patches_ref[...], w_ref[...],
                      preferred_element_type=jnp.float32)        # (h*w, cout)
        acc = acc + b_ref[...]                                   # bias (b6 + b12)
        # Store lane-dense and already NCHW: lanes carry h*w, not cout.
        o_ref[0] = acc.T.astype(o_ref.dtype)                     # (cout, h*w)

    return kernel


def classifier_decoder(feat2_up, feat1, w_k, bias, dilations=(6, 12)):
    # feat2_up, feat1: NCHW with identical spatial size (cat along C is fused).
    n, c2, h, w = feat2_up.shape
    c1 = feat1.shape[1]
    k_tot, cout = w_k.shape
    pad = max(dilations)
    hp, wp = h + 2 * pad, w + 2 * pad

    def prep(f_nchw):
        # transpose + zero-pad + bf16 cast fuse into a single XLA pass over the data.
        f = jnp.transpose(f_nchw, (0, 2, 3, 1))
        f = jnp.pad(f, ((0, 0), (pad, pad), (pad, pad), (0, 0)))
        return f.astype(jnp.bfloat16)

    xp2, xp1 = prep(feat2_up), prep(feat1)
    kernel = _make_decoder_kernel(h, w, pad, dilations, c2, c1)

    step_bytes = (2 * hp * wp * (c2 + c1) * 2     # double-buffered bf16 inputs
                  + k_tot * cout * 2              # resident bf16 weights
                  + h * w * k_tot * 2             # im2col scratch
                  + 2 * cout * h * w * 4          # f32 acc + output block
                  + cout * 4)
    # NOTE: for large feature maps, add an output-row grid axis (pl.ds-based im2col
    # over row tiles) so the scratch stays bounded and the grid has >2 steps.
    out = pl.pallas_call(
        kernel,
        out_shape=jax.ShapeDtypeStruct((n, cout, h * w), jnp.float32),
        grid=(n,),
        in_specs=[
            pl.BlockSpec((1, hp, wp, c2), lambda b: (b, 0, 0, 0)),
            pl.BlockSpec((1, hp, wp, c1), lambda b: (b, 0, 0, 0)),
            pl.BlockSpec((k_tot, cout), lambda b: (0, 0)),
            pl.BlockSpec((1, cout), lambda b: (0, 0)),
        ],
        out_specs=pl.BlockSpec((1, cout, h * w), lambda b: (b, 0, 0)),
        scratch_shapes=[pltpu.VMEM((h * w, k_tot), jnp.bfloat16)],
        compiler_params=pltpu.CompilerParams(
            dimension_semantics=("parallel",),
            vmem_limit_bytes=_vmem_limit(step_bytes)),
    )(xp2, xp1, w_k, bias)
    return out.reshape(n, cout, h, w)


def _pack_decoder_weight(w_branches, c2, c1):
    # Row order must match the in-kernel im2col fill:
    #   source (feat_2_copy, then feat_1) -> dilation branch -> ky -> kx -> channel
    blocks = []
    for lo, sz in ((0, c2), (c2, c1)):
        for wb in w_branches:                                      # (cout, c2+c1, 3, 3)
            blk = jnp.transpose(wb[:, lo:lo + sz], (2, 3, 1, 0))   # (ky, kx, ch, cout)
            blocks.append(blk.reshape(9 * sz, wb.shape[0]))
    return jnp.concatenate(blocks, axis=0)                         # (18*(c2+c1), cout)


# ----------------------------------------------------------------------------
# Stand-in encoder (plain JAX glue).
# TODO(synk): the real Encoder (ResNet-50 backbone loaded from INIT_PATH) was not
# provided; a deterministic avg-pool + 1x1-projection stand-in reproduces the
# (feat_1 stride-4, feat_2 stride-8) structure used by forward().
# ----------------------------------------------------------------------------
def _standin_encoder(x_nchw, p1_w, p2_w):
    n, c, h, w = x_nchw.shape

    def pool(s):
        return x_nchw.reshape(n, c, h // s, s, w // s, s).mean(axis=(3, 5))

    feat_1 = jnp.einsum('nchw,cd->ndhw', pool(4), p1_w)
    feat_2 = jnp.einsum('nchw,cd->ndhw', pool(8), p2_w)
    return feat_1, feat_2


# ----------------------------------------------------------------------------
# Full forward (matches encoder_fuse12.forward)
# ----------------------------------------------------------------------------
def encoder_fuse12_forward(x_nchw, params):
    h, w = x_nchw.shape[2], x_nchw.shape[3]
    feat_1, feat_2 = _standin_encoder(x_nchw, params['p1_w'], params['p2_w'])
    feat_2_copy = bilinear_resize_nchw(feat_2, feat_1.shape[2], feat_1.shape[3])
    feat = classifier_decoder(feat_2_copy, feat_1, params['dec_w_k'], params['dec_b'])
    # Decoder already emits NCHW, so the final resize output is the module
    # output directly -- no trailing transpose.
    return bilinear_resize_nchw(feat, h, w)


def init_params(key, c_in=3, c1=32, c2=64, dec_out=32):
    k = jax.random.split(key, 6)
    cin_dec = c2 + c1                    # cat([feat_2_copy, feat_1], dim=1)
    # Classifier_Module early-return: only conv[0] (dil 6) and conv[1] (dil 12)
    # contribute; weights ~ N(0, 0.01), both biases present (summed once).
    w_d6 = 0.01 * jax.random.normal(k[0], (dec_out, cin_dec, 3, 3), jnp.float32)
    w_d12 = 0.01 * jax.random.normal(k[1], (dec_out, cin_dec, 3, 3), jnp.float32)
    b_d6 = 0.01 * jax.random.normal(k[2], (dec_out,), jnp.float32)
    b_d12 = 0.01 * jax.random.normal(k[3], (dec_out,), jnp.float32)
    return {
        'p1_w': 0.1 * jax.random.normal(k[4], (c_in, c1), jnp.float32),
        'p2_w': 0.1 * jax.random.normal(k[5], (c_in, c2), jnp.float32),
        # Packed (18*Cin, Cout) im2col weight; bf16 MXU operands (f32 accumulation).
        'dec_w_k': _pack_decoder_weight((w_d6, w_d12), c2, c1).astype(jnp.bfloat16),
        'dec_b': (b_d6 + b_d12).reshape(1, dec_out),
    }


if __name__ == "__main__":
    key = jax.random.PRNGKey(0)
    kx, kp = jax.random.split(key)
    x = jax.random.normal(kx, (2, 3, 32, 32), jnp.float32)       # NCHW input
    params = init_params(kp)

    out = jax.jit(encoder_fuse12_forward)(x, params)
    out = jax.block_until_ready(out)
    assert out.shape == (2, 32, 32, 32), out.shape
    assert bool(jnp.all(jnp.isfinite(out)))
    print("KERNEL_OK")
</pallas_src>

<mosaic_0001>
module attributes {stable_mosaic.version = 11 : i64} {
  func.func @kernel(%arg0: i32, %arg1: memref<1x32x32x64xbf16, #tpu.memory_space<vmem>>, %arg2: memref<1x32x32x32xbf16, #tpu.memory_space<vmem>>, %arg3: memref<1728x32xbf16, #tpu.memory_space<vmem>>, %arg4: memref<1x32xf32, #tpu.memory_space<vmem>>, %arg5: memref<1x32x64xf32, #tpu.memory_space<vmem>>, %arg6: memref<64x1728xbf16, #tpu.memory_space<vmem>>) attributes {dimension_semantics = [#tpu.dimension_semantics<parallel>], iteration_bounds = array<i64: 2>, scalar_prefetch = 0 : i64, scratch_operands = 1 : i64, tpu.core_type = #tpu.core_type<tc>, window_params = [{transform_indices = @transform_0, window_bounds = array<i64: 1, 32, 32, 64>}, {transform_indices = @transform_1, window_bounds = array<i64: 1, 32, 32, 32>}, {pipeline_mode = #tpu.pipeline_mode<synchronous>, transform_indices = @transform_2, window_bounds = array<i64: 1728, 32>}, {pipeline_mode = #tpu.pipeline_mode<synchronous>, transform_indices = @transform_3, window_bounds = array<i64: 1, 32>}, {transform_indices = @transform_4, window_bounds = array<i64: 1, 32, 64>}]} {
    %c0 = arith.constant 0 : index
    %c6 = arith.constant 6 : index
    %c6_0 = arith.constant 6 : index
    %c0_1 = arith.constant 0 : index
    %0 = vector.load %arg1[%c0, %c6, %c6_0, %c0_1] : memref<1x32x32x64xbf16, #tpu.memory_space<vmem>>, vector<1x8x8x64xbf16>
    %1 = vector.shape_cast %0 : vector<1x8x8x64xbf16> to vector<8x8x64xbf16>
    %2 = vector.shape_cast %1 : vector<8x8x64xbf16> to vector<64x64xbf16>
    %c0_2 = arith.constant 0 : index
    %c0_3 = arith.constant 0 : index
    %3 = vector.load %arg6[%c0_2, %c0_3] : memref<64x1728xbf16, #tpu.memory_space<vmem>>, vector<64x64xbf16>
    tpu.vector_store %arg6[%c0_2, %c0_3], %2 {strides = array<i32>} : memref<64x1728xbf16, #tpu.memory_space<vmem>>, vector<64x64xbf16>,
    %c0_4 = arith.constant 0 : index
    %c6_5 = arith.constant 6 : index
    %c12 = arith.constant 12 : index
    %c0_6 = arith.constant 0 : index
    %4 = vector.load %arg1[%c0_4, %c6_5, %c12, %c0_6] : memref<1x32x32x64xbf16, #tpu.memory_space<vmem>>, vector<1x8x8x64xbf16>
    %5 = vector.shape_cast %4 : vector<1x8x8x64xbf16> to vector<8x8x64xbf16>
    %6 = vector.shape_cast %5 : vector<8x8x64xbf16> to vector<64x64xbf16>
    %c0_7 = arith.constant 0 : index
    %c64 = arith.constant 64 : index
    %7 = vector.load %arg6[%c0_7, %c64] : memref<64x1728xbf16, #tpu.memory_space<vmem>>, vector<64x64xbf16>
    tpu.vector_store %arg6[%c0_7, %c64], %6 {strides = array<i32>} : memref<64x1728xbf16, #tpu.memory_space<vmem>>, vector<64x64xbf16>,
    %c0_8 = arith.constant 0 : index
    %c6_9 = arith.constant 6 : index
    %c18 = arith.constant 18 : index
    %c0_10 = arith.constant 0 : index
    %8 = vector.load %arg1[%c0_8, %c6_9, %c18, %c0_10] : memref<1x32x32x64xbf16, #tpu.memory_space<vmem>>, vector<1x8x8x64xbf16>
    %9 = vector.shape_cast %8 : vector<1x8x8x64xbf16> to vector<8x8x64xbf16>
    %10 = vector.shape_cast %9 : vector<8x8x64xbf16> to vector<64x64xbf16>
    %c0_11 = arith.constant 0 : index
    %c128 = arith.constant 128 : index
    %11 = vector.load %arg6[%c0_11, %c128] : memref<64x1728xbf16, #tpu.memory_space<vmem>>, vector<64x64xbf16>
    tpu.vector_store %arg6[%c0_11, %c128], %10 {strides = array<i32>} : memref<64x1728xbf16, #tpu.memory_space<vmem>>, vector<64x64xbf16>,
    %c0_12 = arith.constant 0 : index
    %c12_13 = arith.constant 12 : index
    %c6_14 = arith.constant 6 : index
    %c0_15 = arith.constant 0 : index
    %12 = vector.load %arg1[%c0_12, %c12_13, %c6_14, %c0_15] : memref<1x32x32x64xbf16, #tpu.memory_space<vmem>>, vector<1x8x8x64xbf16>
    %13 = vector.shape_cast %12 : vector<1x8x8x64xbf16> to vector<8x8x64xbf16>
    %14 = vector.shape_cast %13 : vector<8x8x64xbf16> to vector<64x64xbf16>
    %c0_16 = arith.constant 0 : index
    %c192 = arith.constant 192 : index
    %15 = vector.load %arg6[%c0_16, %c192] : memref<64x1728xbf16, #tpu.memory_space<vmem>>, vector<64x64xbf16>
    tpu.vector_store %arg6[%c0_16, %c192], %14 {strides = array<i32>} : memref<64x1728xbf16, #tpu.memory_space<vmem>>, vector<64x64xbf16>,
    %c0_17 = arith.constant 0 : index
    %c12_18 = arith.constant 12 : index
    %c12_19 = arith.constant 12 : index
    %c0_20 = arith.constant 0 : index
    %16 = vector.load %arg1[%c0_17, %c12_18, %c12_19, %c0_20] : memref<1x32x32x64xbf16, #tpu.memory_space<vmem>>, vector<1x8x8x64xbf16>
    %17 = vector.shape_cast %16 : vector<1x8x8x64xbf16> to vector<8x8x64xbf16>
    %18 = vector.shape_cast %17 : vector<8x8x64xbf16> to vector<64x64xbf16>
    %c0_21 = arith.constant 0 : index
    %c256 = arith.constant 256 : index
    %19 = vector.load %arg6[%c0_21, %c256] : memref<64x1728xbf16, #tpu.memory_space<vmem>>, vector<64x64xbf16>
    tpu.vector_store %arg6[%c0_21, %c256], %18 {strides = array<i32>} : memref<64x1728xbf16, #tpu.memory_space<vmem>>, vector<64x64xbf16>,
    %c0_22 = arith.constant 0 : index
    %c12_23 = arith.constant 12 : index
    %c18_24 = arith.constant 18 : index
    %c0_25 = arith.constant 0 : index
    %20 = vector.load %arg1[%c0_22, %c12_23, %c18_24, %c0_25] : memref<1x32x32x64xbf16, #tpu.memory_space<vmem>>, vector<1x8x8x64xbf16>
    %21 = vector.shape_cast %20 : vector<1x8x8x64xbf16> to vector<8x8x64xbf16>
    %22 = vector.shape_cast %21 : vector<8x8x64xbf16> to vector<64x64xbf16>
    %c0_26 = arith.constant 0 : index
    %c320 = arith.constant 320 : index
    %23 = vector.load %arg6[%c0_26, %c320] : memref<64x1728xbf16, #tpu.memory_space<vmem>>, vector<64x64xbf16>
    tpu.vector_store %arg6[%c0_26, %c320], %22 {strides = array<i32>} : memref<64x1728xbf16, #tpu.memory_space<vmem>>, vector<64x64xbf16>,
    %c0_27 = arith.constant 0 : index
    %c18_28 = arith.constant 18 : index
    %c6_29 = arith.constant 6 : index
    %c0_30 = arith.constant 0 : index
    %24 = vector.load %arg1[%c0_27, %c18_28, %c6_29, %c0_30] : memref<1x32x32x64xbf16, #tpu.memory_space<vmem>>, vector<1x8x8x64xbf16>
    %25 = vector.shape_cast %24 : vector<1x8x8x64xbf16> to vector<8x8x64xbf16>
    %26 = vector.shape_cast %25 : vector<8x8x64xbf16> to vector<64x64xbf16>
    %c0_31 = arith.constant 0 : index
    %c384 = arith.constant 384 : index
    %27 = vector.load %arg6[%c0_31, %c384] : memref<64x1728xbf16, #tpu.memory_space<vmem>>, vector<64x64xbf16>
    tpu.vector_store %arg6[%c0_31, %c384], %26 {strides = array<i32>} : memref<64x1728xbf16, #tpu.memory_space<vmem>>, vector<64x64xbf16>,
    %c0_32 = arith.constant 0 : index
    %c18_33 = arith.constant 18 : index
    %c12_34 = arith.constant 12 : index
    %c0_35 = arith.constant 0 : index
    %28 = vector.load %arg1[%c0_32, %c18_33, %c12_34, %c0_35] : memref<1x32x32x64xbf16, #tpu.memory_space<vmem>>, vector<1x8x8x64xbf16>
    %29 = vector.shape_cast %28 : vector<1x8x8x64xbf16> to vector<8x8x64xbf16>
    %30 = vector.shape_cast %29 : vector<8x8x64xbf16> to vector<64x64xbf16>
    %c0_36 = arith.constant 0 : index
    %c448 = arith.constant 448 : index
    %31 = vector.load %arg6[%c0_36, %c448] : memref<64x1728xbf16, #tpu.memory_space<vmem>>, vector<64x64xbf16>
    tpu.vector_store %arg6[%c0_36, %c448], %30 {strides = array<i32>} : memref<64x1728xbf16, #tpu.memory_space<vmem>>, vector<64x64xbf16>,
    %c0_37 = arith.constant 0 : index
    %c18_38 = arith.constant 18 : index
    %c18_39 = arith.constant 18 : index
    %c0_40 = arith.constant 0 : index
    %32 = vector.load %arg1[%c0_37, %c18_38, %c18_39, %c0_40] : memref<1x32x32x64xbf16, #tpu.memory_space<vmem>>, vector<1x8x8x64xbf16>
    %33 = vector.shape_cast %32 : vector<1x8x8x64xbf16> to vector<8x8x64xbf16>
    %34 = vector.shape_cast %33 : vector<8x8x64xbf16> to vector<64x64xbf16>
    %c0_41 = arith.constant 0 : index
    %c512 = arith.constant 512 : index
    %35 = vector.load %arg6[%c0_41, %c512] : memref<64x1728xbf16, #tpu.memory_space<vmem>>, vector<64x64xbf16>
    tpu.vector_store %arg6[%c0_41, %c512], %34 {strides = array<i32>} : memref<64x1728xbf16, #tpu.memory_space<vmem>>, vector<64x64xbf16>,
    %c0_42 = arith.constant 0 : index
    %c0_43 = arith.constant 0 : index
    %c0_44 = arith.constant 0 : index
    %c0_45 = arith.constant 0 : index
    %36 = vector.load %arg1[%c0_42, %c0_43, %c0_44, %c0_45] : memref<1x32x32x64xbf16, #tpu.memory_space<vmem>>, vector<1x8x8x64xbf16>
    %37 = vector.shape_cast %36 : vector<1x8x8x64xbf16> to vector<8x8x64xbf16>
    %38 = vector.shape_cast %37 : vector<8x8x64xbf16> to vector<64x64xbf16>
    %c0_46 = arith.constant 0 : index
    %c576 = arith.constant 576 : index
    %39 = vector.load %arg6[%c0_46, %c576] : memref<64x1728xbf16, #tpu.memory_space<vmem>>, vector<64x64xbf16>
    tpu.vector_store %arg6[%c0_46, %c576], %38 {strides = array<i32>} : memref<64x1728xbf16, #tpu.memory_space<vmem>>, vector<64x64xbf16>,
    %c0_47 = arith.constant 0 : index
    %c0_48 = arith.constant 0 : index
    %c12_49 = arith.constant 12 : index
    %c0_50 = arith.constant 0 : index
    %40 = vector.load %arg1[%c0_47, %c0_48, %c12_49, %c0_50] : memref<1x32x32x64xbf16, #tpu.memory_space<vmem>>, vector<1x8x8x64xbf16>
    %41 = vector.shape_cast %40 : vector<1x8x8x64xbf16> to vector<8x8x64xbf16>
    %42 = vector.shape_cast %41 : vector<8x8x64xbf16> to vector<64x64xbf16>
    %c0_51 = arith.constant 0 : index
    %c640 = arith.constant 640 : index
    %43 = vector.load %arg6[%c0_51, %c640] : memref<64x1728xbf16, #tpu.memory_space<vmem>>, vector<64x64xbf16>
    tpu.vector_store %arg6[%c0_51, %c640], %42 {strides = array<i32>} : memref<64x1728xbf16, #tpu.memory_space<vmem>>, vector<64x64xbf16>,
    %c0_52 = arith.constant 0 : index
    %c0_53 = arith.constant 0 : index
    %c24 = arith.constant 24 : index
    %c0_54 = arith.constant 0 : index
    %44 = vector.load %arg1[%c0_52, %c0_53, %c24, %c0_54] : memref<1x32x32x64xbf16, #tpu.memory_space<vmem>>, vector<1x8x8x64xbf16>
    %45 = vector.shape_cast %44 : vector<1x8x8x64xbf16> to vector<8x8x64xbf16>
    %46 = vector.shape_cast %45 : vector<8x8x64xbf16> to vector<64x64xbf16>
    %c0_55 = arith.constant 0 : index
    %c704 = arith.constant 704 : index
    %47 = vector.load %arg6[%c0_55, %c704] : memref<64x1728xbf16, #tpu.memory_space<vmem>>, vector<64x64xbf16>
    tpu.vector_store %arg6[%c0_55, %c704], %46 {strides = array<i32>} : memref<64x1728xbf16, #tpu.memory_space<vmem>>, vector<64x64xbf16>,
    %c0_56 = arith.constant 0 : index
    %c12_57 = arith.constant 12 : index
    %c0_58 = arith.constant 0 : index
    %c0_59 = arith.constant 0 : index
    %48 = vector.load %arg1[%c0_56, %c12_57, %c0_58, %c0_59] : memref<1x32x32x64xbf16, #tpu.memory_space<vmem>>, vector<1x8x8x64xbf16>
    %49 = vector.shape_cast %48 : vector<1x8x8x64xbf16> to vector<8x8x64xbf16>
    %50 = vector.shape_cast %49 : vector<8x8x64xbf16> to vector<64x64xbf16>
    %c0_60 = arith.constant 0 : index
    %c768 = arith.constant 768 : index
    %51 = vector.load %arg6[%c0_60, %c768] : memref<64x1728xbf16, #tpu.memory_space<vmem>>, vector<64x64xbf16>
    tpu.vector_store %arg6[%c0_60, %c768], %50 {strides = array<i32>} : memref<64x1728xbf16, #tpu.memory_space<vmem>>, vector<64x64xbf16>,
    %c0_61 = arith.constant 0 : index
    %c12_62 = arith.constant 12 : index
    %c12_63 = arith.constant 12 : index
    %c0_64 = arith.constant 0 : index
    %52 = vector.load %arg1[%c0_61, %c12_62, %c12_63, %c0_64] : memref<1x32x32x64xbf16, #tpu.memory_space<vmem>>, vector<1x8x8x64xbf16>
    %53 = vector.shape_cast %52 : vector<1x8x8x64xbf16> to vector<8x8x64xbf16>
    %54 = vector.shape_cast %53 : vector<8x8x64xbf16> to vector<64x64xbf16>
    %c0_65 = arith.constant 0 : index
    %c832 = arith.constant 832 : index
    %55 = vector.load %arg6[%c0_65, %c832] : memref<64x1728xbf16, #tpu.memory_space<vmem>>, vector<64x64xbf16>
    tpu.vector_store %arg6[%c0_65, %c832], %54 {strides = array<i32>} : memref<64x1728xbf16, #tpu.memory_space<vmem>>, vector<64x64xbf16>,
    %c0_66 = arith.constant 0 : index
    %c12_67 = arith.constant 12 : index
    %c24_68 = arith.constant 24 : index
    %c0_69 = arith.constant 0 : index
    %56 = vector.load %arg1[%c0_66, %c12_67, %c24_68, %c0_69] : memref<1x32x32x64xbf16, #tpu.memory_space<vmem>>, vector<1x8x8x64xbf16>
    %57 = vector.shape_cast %56 : vector<1x8x8x64xbf16> to vector<8x8x64xbf16>
    %58 = vector.shape_cast %57 : vector<8x8x64xbf16> to vector<64x64xbf16>
    %c0_70 = arith.constant 0 : index
    %c896 = arith.constant 896 : index
    %59 = vector.load %arg6[%c0_70, %c896] : memref<64x1728xbf16, #tpu.memory_space<vmem>>, vector<64x64xbf16>
    tpu.vector_store %arg6[%c0_70, %c896], %58 {strides = array<i32>} : memref<64x1728xbf16, #tpu.memory_space<vmem>>, vector<64x64xbf16>,
    %c0_71 = arith.constant 0 : index
    %c24_72 = arith.constant 24 : index
    %c0_73 = arith.constant 0 : index
    %c0_74 = arith.constant 0 : index
    %60 = vector.load %arg1[%c0_71, %c24_72, %c0_73, %c0_74] : memref<1x32x32x64xbf16, #tpu.memory_space<vmem>>, vector<1x8x8x64xbf16>
    %61 = vector.shape_cast %60 : vector<1x8x8x64xbf16> to vector<8x8x64xbf16>
    %62 = vector.shape_cast %61 : vector<8x8x64xbf16> to vector<64x64xbf16>
    %c0_75 = arith.constant 0 : index
    %c960 = arith.constant 960 : index
    %63 = vector.load %arg6[%c0_75, %c960] : memref<64x1728xbf16, #tpu.memory_space<vmem>>, vector<64x64xbf16>
    tpu.vector_store %arg6[%c0_75, %c960], %62 {strides = array<i32>} : memref<64x1728xbf16, #tpu.memory_space<vmem>>, vector<64x64xbf16>,
    %c0_76 = arith.constant 0 : index
    %c24_77 = arith.constant 24 : index
    %c12_78 = arith.constant 12 : index
    %c0_79 = arith.constant 0 : index
    %64 = vector.load %arg1[%c0_76, %c24_77, %c12_78, %c0_79] : memref<1x32x32x64xbf16, #tpu.memory_space<vmem>>, vector<1x8x8x64xbf16>
    %65 = vector.shape_cast %64 : vector<1x8x8x64xbf16> to vector<8x8x64xbf16>
    %66 = vector.shape_cast %65 : vector<8x8x64xbf16> to vector<64x64xbf16>
    %c0_80 = arith.constant 0 : index
    %c1024 = arith.constant 1024 : index
    %67 = vector.load %arg6[%c0_80, %c1024] : memref<64x1728xbf16, #tpu.memory_space<vmem>>, vector<64x64xbf16>
    tpu.vector_store %arg6[%c0_80, %c1024], %66 {strides = array<i32>} : memref<64x1728xbf16, #tpu.memory_space<vmem>>, vector<64x64xbf16>,
    %c0_81 = arith.constant 0 : index
    %c24_82 = arith.constant 24 : index
    %c24_83 = arith.constant 24 : index
    %c0_84 = arith.constant 0 : index
    %68 = vector.load %arg1[%c0_81, %c24_82, %c24_83, %c0_84] : memref<1x32x32x64xbf16, #tpu.memory_space<vmem>>, vector<1x8x8x64xbf16>
    %69 = vector.shape_cast %68 : vector<1x8x8x64xbf16> to vector<8x8x64xbf16>
    %70 = vector.shape_cast %69 : vector<8x8x64xbf16> to vector<64x64xbf16>
    %c0_85 = arith.constant 0 : index
    %c1088 = arith.constant 1088 : index
    %71 = vector.load %arg6[%c0_85, %c1088] : memref<64x1728xbf16, #tpu.memory_space<vmem>>, vector<64x64xbf16>
    tpu.vector_store %arg6[%c0_85, %c1088], %70 {strides = array<i32>} : memref<64x1728xbf16, #tpu.memory_space<vmem>>, vector<64x64xbf16>,
    %c0_86 = arith.constant 0 : index
    %c6_87 = arith.constant 6 : index
    %c6_88 = arith.constant 6 : index
    %c0_89 = arith.constant 0 : index
    %72 = vector.load %arg2[%c0_86, %c6_87, %c6_88, %c0_89] : memref<1x32x32x32xbf16, #tpu.memory_space<vmem>>, vector<1x8x8x32xbf16>
    %73 = vector.shape_cast %72 : vector<1x8x8x32xbf16> to vector<8x8x32xbf16>
    %74 = vector.shape_cast %73 : vector<8x8x32xbf16> to vector<64x32xbf16>
    %c0_90 = arith.constant 0 : index
    %c1152 = arith.constant 1152 : index
    %75 = vector.load %arg6[%c0_90, %c1152] : memref<64x1728xbf16, #tpu.memory_space<vmem>>, vector<64x32xbf16>
    tpu.vector_store %arg6[%c0_90, %c1152], %74 {strides = array<i32>} : memref<64x1728xbf16, #tpu.memory_space<vmem>>, vector<64x32xbf16>,
    %c0_91 = arith.constant 0 : index
    %c6_92 = arith.constant 6 : index
    %c12_93 = arith.constant 12 : index
    %c0_94 = arith.constant 0 : index
    %76 = vector.load %arg2[%c0_91, %c6_92, %c12_93, %c0_94] : memref<1x32x32x32xbf16, #tpu.memory_space<vmem>>, vector<1x8x8x32xbf16>
    %77 = vector.shape_cast %76 : vector<1x8x8x32xbf16> to vector<8x8x32xbf16>
    %78 = vector.shape_cast %77 : vector<8x8x32xbf16> to vector<64x32xbf16>
    %c0_95 = arith.constant 0 : index
    %c1184 = arith.constant 1184 : index
    %79 = vector.load %arg6[%c0_95, %c1184] : memref<64x1728xbf16, #tpu.memory_space<vmem>>, vector<64x32xbf16>
    tpu.vector_store %arg6[%c0_95, %c1184], %78 {strides = array<i32>} : memref<64x1728xbf16, #tpu.memory_space<vmem>>, vector<64x32xbf16>,
    %c0_96 = arith.constant 0 : index
    %c6_97 = arith.constant 6 : index
    %c18_98 = arith.constant 18 : index
    %c0_99 = arith.constant 0 : index
    %80 = vector.load %arg2[%c0_96, %c6_97, %c18_98, %c0_99] : memref<1x32x32x32xbf16, #tpu.memory_space<vmem>>, vector<1x8x8x32xbf16>
    %81 = vector.shape_cast %80 : vector<1x8x8x32xbf16> to vector<8x8x32xbf16>
    %82 = vector.shape_cast %81 : vector<8x8x32xbf16> to vector<64x32xbf16>
    %c0_100 = arith.constant 0 : index
    %c1216 = arith.constant 1216 : index
    %83 = vector.load %arg6[%c0_100, %c1216] : memref<64x1728xbf16, #tpu.memory_space<vmem>>, vector<64x32xbf16>
    tpu.vector_store %arg6[%c0_100, %c1216], %82 {strides = array<i32>} : memref<64x1728xbf16, #tpu.memory_space<vmem>>, vector<64x32xbf16>,
    %c0_101 = arith.constant 0 : index
    %c12_102 = arith.constant 12 : index
    %c6_103 = arith.constant 6 : index
    %c0_104 = arith.constant 0 : index
    %84 = vector.load %arg2[%c0_101, %c12_102, %c6_103, %c0_104] : memref<1x32x32x32xbf16, #tpu.memory_space<vmem>>, vector<1x8x8x32xbf16>
    %85 = vector.shape_cast %84 : vector<1x8x8x32xbf16> to vector<8x8x32xbf16>
    %86 = vector.shape_cast %85 : vector<8x8x32xbf16> to vector<64x32xbf16>
    %c0_105 = arith.constant 0 : index
    %c1248 = arith.constant 1248 : index
    %87 = vector.load %arg6[%c0_105, %c1248] : memref<64x1728xbf16, #tpu.memory_space<vmem>>, vector<64x32xbf16>
    tpu.vector_store %arg6[%c0_105, %c1248], %86 {strides = array<i32>} : memref<64x1728xbf16, #tpu.memory_space<vmem>>, vector<64x32xbf16>,
    %c0_106 = arith.constant 0 : index
    %c12_107 = arith.constant 12 : index
    %c12_108 = arith.constant 12 : index
    %c0_109 = arith.constant 0 : index
    %88 = vector.load %arg2[%c0_106, %c12_107, %c12_108, %c0_109] : memref<1x32x32x32xbf16, #tpu.memory_space<vmem>>, vector<1x8x8x32xbf16>
    %89 = vector.shape_cast %88 : vector<1x8x8x32xbf16> to vector<8x8x32xbf16>
    %90 = vector.shape_cast %89 : vector<8x8x32xbf16> to vector<64x32xbf16>
    %c0_110 = arith.constant 0 : index
    %c1280 = arith.constant 1280 : index
    %91 = vector.load %arg6[%c0_110, %c1280] : memref<64x1728xbf16, #tpu.memory_space<vmem>>, vector<64x32xbf16>
    tpu.vector_store %arg6[%c0_110, %c1280], %90 {strides = array<i32>} : memref<64x1728xbf16, #tpu.memory_space<vmem>>, vector<64x32xbf16>,
    %c0_111 = arith.constant 0 : index
    %c12_112 = arith.constant 12 : index
    %c18_113 = arith.constant 18 : index
    %c0_114 = arith.constant 0 : index
    %92 = vector.load %arg2[%c0_111, %c12_112, %c18_113, %c0_114] : memref<1x32x32x32xbf16, #tpu.memory_space<vmem>>, vector<1x8x8x32xbf16>
    %93 = vector.shape_cast %92 : vector<1x8x8x32xbf16> to vector<8x8x32xbf16>
    %94 = vector.shape_cast %93 : vector<8x8x32xbf16> to vector<64x32xbf16>
    %c0_115 = arith.constant 0 : index
    %c1312 = arith.constant 1312 : index
    %95 = vector.load %arg6[%c0_115, %c1312] : memref<64x1728xbf16, #tpu.memory_space<vmem>>, vector<64x32xbf16>
    tpu.vector_store %arg6[%c0_115, %c1312], %94 {strides = array<i32>} : memref<64x1728xbf16, #tpu.memory_space<vmem>>, vector<64x32xbf16>,
    %c0_116 = arith.constant 0 : index
    %c18_117 = arith.constant 18 : index
    %c6_118 = arith.constant 6 : index
    %c0_119 = arith.constant 0 : index
    %96 = vector.load %arg2[%c0_116, %c18_117, %c6_118, %c0_119] : memref<1x32x32x32xbf16, #tpu.memory_space<vmem>>, vector<1x8x8x32xbf16>
    %97 = vector.shape_cast %96 : vector<1x8x8x32xbf16> to vector<8x8x32xbf16>
    %98 = vector.shape_cast %97 : vector<8x8x32xbf16> to vector<64x32xbf16>
    %c0_120 = arith.constant 0 : index
    %c1344 = arith.constant 1344 : index
    %99 = vector.load %arg6[%c0_120, %c1344] : memref<64x1728xbf16, #tpu.memory_space<vmem>>, vector<64x32xbf16>
    tpu.vector_store %arg6[%c0_120, %c1344], %98 {strides = array<i32>} : memref<64x1728xbf16, #tpu.memory_space<vmem>>, vector<64x32xbf16>,
    %c0_121 = arith.constant 0 : index
    %c18_122 = arith.constant 18 : index
    %c12_123 = arith.constant 12 : index
    %c0_124 = arith.constant 0 : index
    %100 = vector.load %arg2[%c0_121, %c18_122, %c12_123, %c0_124] : memref<1x32x32x32xbf16, #tpu.memory_space<vmem>>, vector<1x8x8x32xbf16>
    %101 = vector.shape_cast %100 : vector<1x8x8x32xbf16> to vector<8x8x32xbf16>
    %102 = vector.shape_cast %101 : vector<8x8x32xbf16> to vector<64x32xbf16>
    %c0_125 = arith.constant 0 : index
    %c1376 = arith.constant 1376 : index
    %103 = vector.load %arg6[%c0_125, %c1376] : memref<64x1728xbf16, #tpu.memory_space<vmem>>, vector<64x32xbf16>
    tpu.vector_store %arg6[%c0_125, %c1376], %102 {strides = array<i32>} : memref<64x1728xbf16, #tpu.memory_space<vmem>>, vector<64x32xbf16>,
    %c0_126 = arith.constant 0 : index
    %c18_127 = arith.constant 18 : index
    %c18_128 = arith.constant 18 : index
    %c0_129 = arith.constant 0 : index
    %104 = vector.load %arg2[%c0_126, %c18_127, %c18_128, %c0_129] : memref<1x32x32x32xbf16, #tpu.memory_space<vmem>>, vector<1x8x8x32xbf16>
    %105 = vector.shape_cast %104 : vector<1x8x8x32xbf16> to vector<8x8x32xbf16>
    %106 = vector.shape_cast %105 : vector<8x8x32xbf16> to vector<64x32xbf16>
    %c0_130 = arith.constant 0 : index
    %c1408 = arith.constant 1408 : index
    %107 = vector.load %arg6[%c0_130, %c1408] : memref<64x1728xbf16, #tpu.memory_space<vmem>>, vector<64x32xbf16>
    tpu.vector_store %arg6[%c0_130, %c1408], %106 {strides = array<i32>} : memref<64x1728xbf16, #tpu.memory_space<vmem>>, vector<64x32xbf16>,
    %c0_131 = arith.constant 0 : index
    %c0_132 = arith.constant 0 : index
    %c0_133 = arith.constant 0 : index
    %c0_134 = arith.constant 0 : index
    %108 = vector.load %arg2[%c0_131, %c0_132, %c0_133, %c0_134] : memref<1x32x32x32xbf16, #tpu.memory_space<vmem>>, vector<1x8x8x32xbf16>
    %109 = vector.shape_cast %108 : vector<1x8x8x32xbf16> to vector<8x8x32xbf16>
    %110 = vector.shape_cast %109 : vector<8x8x32xbf16> to vector<64x32xbf16>
    %c0_135 = arith.constant 0 : index
    %c1440 = arith.constant 1440 : index
    %111 = vector.load %arg6[%c0_135, %c1440] : memref<64x1728xbf16, #tpu.memory_space<vmem>>, vector<64x32xbf16>
    tpu.vector_store %arg6[%c0_135, %c1440], %110 {strides = array<i32>} : memref<64x1728xbf16, #tpu.memory_space<vmem>>, vector<64x32xbf16>,
    %c0_136 = arith.constant 0 : index
    %c0_137 = arith.constant 0 : index
    %c12_138 = arith.constant 12 : index
    %c0_139 = arith.constant 0 : index
    %112 = vector.load %arg2[%c0_136, %c0_137, %c12_138, %c0_139] : memref<1x32x32x32xbf16, #tpu.memory_space<vmem>>, vector<1x8x8x32xbf16>
    %113 = vector.shape_cast %112 : vector<1x8x8x32xbf16> to vector<8x8x32xbf16>
    %114 = vector.shape_cast %113 : vector<8x8x32xbf16> to vector<64x32xbf16>
    %c0_140 = arith.constant 0 : index
    %c1472 = arith.constant 1472 : index
    %115 = vector.load %arg6[%c0_140, %c1472] : memref<64x1728xbf16, #tpu.memory_space<vmem>>, vector<64x32xbf16>
    tpu.vector_store %arg6[%c0_140, %c1472], %114 {strides = array<i32>} : memref<64x1728xbf16, #tpu.memory_space<vmem>>, vector<64x32xbf16>,
    %c0_141 = arith.constant 0 : index
    %c0_142 = arith.constant 0 : index
    %c24_143 = arith.constant 24 : index
    %c0_144 = arith.constant 0 : index
    %116 = vector.load %arg2[%c0_141, %c0_142, %c24_143, %c0_144] : memref<1x32x32x32xbf16, #tpu.memory_space<vmem>>, vector<1x8x8x32xbf16>
    %117 = vector.shape_cast %116 : vector<1x8x8x32xbf16> to vector<8x8x32xbf16>
    %118 = vector.shape_cast %117 : vector<8x8x32xbf16> to vector<64x32xbf16>
    %c0_145 = arith.constant 0 : index
    %c1504 = arith.constant 1504 : index
    %119 = vector.load %arg6[%c0_145, %c1504] : memref<64x1728xbf16, #tpu.memory_space<vmem>>, vector<64x32xbf16>
    tpu.vector_store %arg6[%c0_145, %c1504], %118 {strides = array<i32>} : memref<64x1728xbf16, #tpu.memory_space<vmem>>, vector<64x32xbf16>,
    %c0_146 = arith.constant 0 : index
    %c12_147 = arith.constant 12 : index
    %c0_148 = arith.constant 0 : index
    %c0_149 = arith.constant 0 : index
    %120 = vector.load %arg2[%c0_146, %c12_147, %c0_148, %c0_149] : memref<1x32x32x32xbf16, #tpu.memory_space<vmem>>, vector<1x8x8x32xbf16>
    %121 = vector.shape_cast %120 : vector<1x8x8x32xbf16> to vector<8x8x32xbf16>
    %122 = vector.shape_cast %121 : vector<8x8x32xbf16> to vector<64x32xbf16>
    %c0_150 = arith.constant 0 : index
    %c1536 = arith.constant 1536 : index
    %123 = vector.load %arg6[%c0_150, %c1536] : memref<64x1728xbf16, #tpu.memory_space<vmem>>, vector<64x32xbf16>
    tpu.vector_store %arg6[%c0_150, %c1536], %122 {strides = array<i32>} : memref<64x1728xbf16, #tpu.memory_space<vmem>>, vector<64x32xbf16>,
    %c0_151 = arith.constant 0 : index
    %c12_152 = arith.constant 12 : index
    %c12_153 = arith.constant 12 : index
    %c0_154 = arith.constant 0 : index
    %124 = vector.load %arg2[%c0_151, %c12_152, %c12_153, %c0_154] : memref<1x32x32x32xbf16, #tpu.memory_space<vmem>>, vector<1x8x8x32xbf16>
    %125 = vector.shape_cast %124 : vector<1x8x8x32xbf16> to vector<8x8x32xbf16>
    %126 = vector.shape_cast %125 : vector<8x8x32xbf16> to vector<64x32xbf16>
    %c0_155 = arith.constant 0 : index
    %c1568 = arith.constant 1568 : index
    %127 = vector.load %arg6[%c0_155, %c1568] : memref<64x1728xbf16, #tpu.memory_space<vmem>>, vector<64x32xbf16>
    tpu.vector_store %arg6[%c0_155, %c1568], %126 {strides = array<i32>} : memref<64x1728xbf16, #tpu.memory_space<vmem>>, vector<64x32xbf16>,
    %c0_156 = arith.constant 0 : index
    %c12_157 = arith.constant 12 : index
    %c24_158 = arith.constant 24 : index
    %c0_159 = arith.constant 0 : index
    %128 = vector.load %arg2[%c0_156, %c12_157, %c24_158, %c0_159] : memref<1x32x32x32xbf16, #tpu.memory_space<vmem>>, vector<1x8x8x32xbf16>
    %129 = vector.shape_cast %128 : vector<1x8x8x32xbf16> to vector<8x8x32xbf16>
    %130 = vector.shape_cast %129 : vector<8x8x32xbf16> to vector<64x32xbf16>
    %c0_160 = arith.constant 0 : index
    %c1600 = arith.constant 1600 : index
    %131 = vector.load %arg6[%c0_160, %c1600] : memref<64x1728xbf16, #tpu.memory_space<vmem>>, vector<64x32xbf16>
    tpu.vector_store %arg6[%c0_160, %c1600], %130 {strides = array<i32>} : memref<64x1728xbf16, #tpu.memory_space<vmem>>, vector<64x32xbf16>,
    %c0_161 = arith.constant 0 : index
    %c24_162 = arith.constant 24 : index
    %c0_163 = arith.constant 0 : index
    %c0_164 = arith.constant 0 : index
    %132 = vector.load %arg2[%c0_161, %c24_162, %c0_163, %c0_164] : memref<1x32x32x32xbf16, #tpu.memory_space<vmem>>, vector<1x8x8x32xbf16>
    %133 = vector.shape_cast %132 : vector<1x8x8x32xbf16> to vector<8x8x32xbf16>
    %134 = vector.shape_cast %133 : vector<8x8x32xbf16> to vector<64x32xbf16>
    %c0_165 = arith.constant 0 : index
    %c1632 = arith.constant 1632 : index
    %135 = vector.load %arg6[%c0_165, %c1632] : memref<64x1728xbf16, #tpu.memory_space<vmem>>, vector<64x32xbf16>
    tpu.vector_store %arg6[%c0_165, %c1632], %134 {strides = array<i32>} : memref<64x1728xbf16, #tpu.memory_space<vmem>>, vector<64x32xbf16>,
    %c0_166 = arith.constant 0 : index
    %c24_167 = arith.constant 24 : index
    %c12_168 = arith.constant 12 : index
    %c0_169 = arith.constant 0 : index
    %136 = vector.load %arg2[%c0_166, %c24_167, %c12_168, %c0_169] : memref<1x32x32x32xbf16, #tpu.memory_space<vmem>>, vector<1x8x8x32xbf16>
    %137 = vector.shape_cast %136 : vector<1x8x8x32xbf16> to vector<8x8x32xbf16>
    %138 = vector.shape_cast %137 : vector<8x8x32xbf16> to vector<64x32xbf16>
    %c0_170 = arith.constant 0 : index
    %c1664 = arith.constant 1664 : index
    %139 = vector.load %arg6[%c0_170, %c1664] : memref<64x1728xbf16, #tpu.memory_space<vmem>>, vector<64x32xbf16>
    tpu.vector_store %arg6[%c0_170, %c1664], %138 {strides = array<i32>} : memref<64x1728xbf16, #tpu.memory_space<vmem>>, vector<64x32xbf16>,
    %c0_171 = arith.constant 0 : index
    %c24_172 = arith.constant 24 : index
    %c24_173 = arith.constant 24 : index
    %c0_174 = arith.constant 0 : index
    %140 = vector.load %arg2[%c0_171, %c24_172, %c24_173, %c0_174] : memref<1x32x32x32xbf16, #tpu.memory_space<vmem>>, vector<1x8x8x32xbf16>
    %141 = vector.shape_cast %140 : vector<1x8x8x32xbf16> to vector<8x8x32xbf16>
    %142 = vector.shape_cast %141 : vector<8x8x32xbf16> to vector<64x32xbf16>
    %c0_175 = arith.constant 0 : index
    %c1696 = arith.constant 1696 : index
    %143 = vector.load %arg6[%c0_175, %c1696] : memref<64x1728xbf16, #tpu.memory_space<vmem>>, vector<64x32xbf16>
    tpu.vector_store %arg6[%c0_175, %c1696], %142 {strides = array<i32>} : memref<64x1728xbf16, #tpu.memory_space<vmem>>, vector<64x32xbf16>,
    %c0_176 = arith.constant 0 : index
    %c0_177 = arith.constant 0 : index
    %144 = vector.load %arg6[%c0_176, %c0_177] : memref<64x1728xbf16, #tpu.memory_space<vmem>>, vector<64x1728xbf16>
    %c0_178 = arith.constant 0 : index
    %c0_179 = arith.constant 0 : index
    %145 = vector.load %arg3[%c0_178, %c0_179] : memref<1728x32xbf16, #tpu.memory_space<vmem>>, vector<1728x32xbf16>
    %cst = arith.constant dense<0.000000e+00> : vector<64x32xf32>
    %146 = tpu.matmul %144, %145, %cst {dimension_numbers = #tpu.dot_dimension_numbers<[1], [0], [0], [1], [0, 0, 1, 1], [], []>} : vector<64x1728xbf16>, vector<1728x32xbf16>, vector<64x32xf32> -> vector<64x32xf32>
    %c0_180 = arith.constant 0 : index
    %c0_181 = arith.constant 0 : index
    %147 = vector.load %arg4[%c0_180, %c0_181] : memref<1x32xf32, #tpu.memory_space<vmem>>, vector<1x32xf32>
    %148 = vector.broadcast %147 : vector<1x32xf32> to vector<64x32xf32>
    %149 = arith.addf %146, %148 : vector<64x32xf32>
    %150 = tpu.transpose %149, [1, 0] : vector<64x32xf32> -> vector<32x64xf32>
    %c0_182 = arith.constant 0 : index
    %c0_183 = arith.constant 0 : index
    %c0_184 = arith.constant 0 : index
    %151 = vector.load %arg5[%c0_182, %c0_183, %c0_184] : memref<1x32x64xf32, #tpu.memory_space<vmem>>, vector<1x32x64xf32>
    %152 = vector.shape_cast %151 : vector<1x32x64xf32> to vector<32x64xf32>
    %153 = vector.shape_cast %150 : vector<32x64xf32> to vector<1x32x64xf32>
    tpu.vector_store %arg5[%c0_182, %c0_183, %c0_184], %153 {strides = array<i32>} : memref<1x32x64xf32, #tpu.memory_space<vmem>>, vector<1x32x64xf32>,
    return
  }
  func.func @transform_0(%arg0: i32) -> (i32, i32, i32, i32) {
    %c0_i32 = arith.constant 0 : i32
    %c0_i32_0 = arith.constant 0 : i32
    %c0_i32_1 = arith.constant 0 : i32
    %c0_i32_2 = arith.constant 0 : i32
    return %arg0, %c0_i32, %c0_i32_0, %c0_i32_1 : i32, i32, i32, i32
  }
  func.func @transform_1(%arg0: i32) -> (i32, i32, i32, i32) {
    %c0_i32 = arith.constant 0 : i32
    %c0_i32_0 = arith.constant 0 : i32
    %c0_i32_1 = arith.constant 0 : i32
    %c0_i32_2 = arith.constant 0 : i32
    return %arg0, %c0_i32, %c0_i32_0, %c0_i32_1 : i32, i32, i32, i32
  }
  func.func @transform_2(%arg0: i32) -> (i32, i32) {
    %c0_i32 = arith.constant 0 : i32
    %c0_i32_0 = arith.constant 0 : i32
    %c0_i32_1 = arith.constant 0 : i32
    return %c0_i32, %c0_i32_0 : i32, i32
  }
  func.func @transform_3(%arg0: i32) -> (i32, i32) {
    %c0_i32 = arith.constant 0 : i32
    %c0_i32_0 = arith.constant 0 : i32
    %c0_i32_1 = arith.constant 0 : i32
    return %c0_i32, %c0_i32_0 : i32, i32
  }
  func.func @transform_4(%arg0: i32) -> (i32, i32, i32) {
    %c0_i32 = arith.constant 0 : i32
    %c0_i32_0 = arith.constant 0 : i32
    %c0_i32_1 = arith.constant 0 : i32
    return %arg0, %c0_i32, %c0_i32_0 : i32, i32, i32
  }
}

module attributes {stable_mosaic.version = 11 : i64} {
  func.func @_resize_kernel(%arg0: i32, %arg1: i32, %arg2: memref<32x8xf32, #tpu.memory_space<vmem>>, %arg3: memref<8x32xf32, #tpu.memory_space<vmem>>, %arg4: memref<1x1x8x8xf32, #tpu.memory_space<vmem>>, %arg5: memref<1x1x32x32xf32, #tpu.memory_space<vmem>>) attributes {dimension_semantics = [#tpu.dimension_semantics<parallel>, #tpu.dimension_semantics<parallel>], iteration_bounds = array<i64: 2, 32>, scalar_prefetch = 0 : i64, scratch_operands = 0 : i64, tpu.core_type = #tpu.core_type<tc>, window_params = [{pipeline_mode = #tpu.pipeline_mode<synchronous>, transform_indices = @transform_0, window_bounds = array<i64: 32, 8>}, {pipeline_mode = #tpu.pipeline_mode<synchronous>, transform_indices = @transform_1, window_bounds = array<i64: 8, 32>}, {transform_indices = @transform_2, window_bounds = array<i64: 1, 1, 8, 8>}, {transform_indices = @transform_3, window_bounds = array<i64: 1, 1, 32, 32>}]} {
    %c0 = arith.constant 0 : index
    %c0_0 = arith.constant 0 : index
    %0 = vector.load %arg2[%c0, %c0_0] : memref<32x8xf32, #tpu.memory_space<vmem>>, vector<32x8xf32>
    %c0_1 = arith.constant 0 : index
    %c0_2 = arith.constant 0 : index
    %c0_3 = arith.constant 0 : index
    %c0_4 = arith.constant 0 : index
    %1 = vector.load %arg4[%c0_1, %c0_2, %c0_3, %c0_4] : memref<1x1x8x8xf32, #tpu.memory_space<vmem>>, vector<1x1x8x8xf32>
    %2 = vector.shape_cast %1 : vector<1x1x8x8xf32> to vector<8x8xf32>
    %cst = arith.constant dense<0.000000e+00> : vector<32x8xf32>
    %3 = tpu.matmul %0, %2, %cst {dimension_numbers = #tpu.dot_dimension_numbers<[1], [0], [0], [1], [0, 0, 1, 1], [], []>} : vector<32x8xf32>, vector<8x8xf32>, vector<32x8xf32> -> vector<32x8xf32>
    %c0_5 = arith.constant 0 : index
    %c0_6 = arith.constant 0 : index
    %4 = vector.load %arg3[%c0_5, %c0_6] : memref<8x32xf32, #tpu.memory_space<vmem>>, vector<8x32xf32>
    %cst_7 = arith.constant dense<0.000000e+00> : vector<32x32xf32>
    %5 = tpu.matmul %3, %4, %cst_7 {dimension_numbers = #tpu.dot_dimension_numbers<[1], [0], [0], [1], [0, 0, 1, 1], [], []>} : vector<32x8xf32>, vector<8x32xf32>, vector<32x32xf32> -> vector<32x32xf32>
    %c0_8 = arith.constant 0 : index
    %c0_9 = arith.constant 0 : index
    %c0_10 = arith.constant 0 : index
    %c0_11 = arith.constant 0 : index
    %6 = vector.load %arg5[%c0_8, %c0_9, %c0_10, %c0_11] : memref<1x1x32x32xf32, #tpu.memory_space<vmem>>, vector<1x1x32x32xf32>
    %7 = vector.shape_cast %6 : vector<1x1x32x32xf32> to vector<32x32xf32>
    %8 = vector.shape_cast %5 : vector<32x32xf32> to vector<1x1x32x32xf32>
    tpu.vector_store %arg5[%c0_8, %c0_9, %c0_10, %c0_11], %8 {strides = array<i32>} : memref<1x1x32x32xf32, #tpu.memory_space<vmem>>, vector<1x1x32x32xf32>,
    return
  }
  func.func @transform_0(%arg0: i32, %arg1: i32) -> (i32, i32) {
    %c0_i32 = arith.constant 0 : i32
    %c0_i32_0 = arith.constant 0 : i32
    %c0_i32_1 = arith.constant 0 : i32
    return %c0_i32, %c0_i32_0 : i32, i32
  }
  func.func @transform_1(%arg0: i32, %arg1: i32) -> (i32, i32) {
    %c0_i32 = arith.constant 0 : i32
    %c0_i32_0 = arith.constant 0 : i32
    %c0_i32_1 = arith.constant 0 : i32
    return %c0_i32, %c0_i32_0 : i32, i32
  }
  func.func @transform_2(%arg0: i32, %arg1: i32) -> (i32, i32, i32, i32) {
    %c0_i32 = arith.constant 0 : i32
    %c0_i32_0 = arith.constant 0 : i32
    %c0_i32_1 = arith.constant 0 : i32
    return %arg0, %arg1, %c0_i32, %c0_i32_0 : i32, i32, i32, i32
  }
  func.func @transform_3(%arg0: i32, %arg1: i32) -> (i32, i32, i32, i32) {
    %c0_i32 = arith.constant 0 : i32
    %c0_i32_0 = arith.constant 0 : i32
    %c0_i32_1 = arith.constant 0 : i32
    return %arg0, %arg1, %c0_i32, %c0_i32_0 : i32, i32, i32, i32
  }
}

</mosaic_0001>

<llo_original>
// kernel: encoder_fuse12_forward.3
$region0: #{encoder_fuse12_forward.3}
  #allocation0 [shape = 'u32[]', space=smem, size = 0x4, offset = 0x4, fixed_abs, tag = 'smem constant byte address 0x4 - core index']
  #allocation1 [shape = 'u32[144,128]{1,0:T(1,128)}', space=vmem, size = 0x12000, scoped, tag = 'internal scratch']
  %s0 = inlined_call_operand.vmem [shape: f32[32,8], index: 0, kind: input, shape index: {}]
  %s1 = inlined_call_operand.vmem [shape: f32[8,32], index: 1, kind: input, shape index: {}]
  %s2 = inlined_call_operand.vmem [shape: f32[2,32,8,8], index: 2, kind: input, shape index: {}]
  %s3 = inlined_call_operand.hbm [shape: f32[2,32,32,32], index: 3, kind: output, shape index: {}]
  %s4 = sld [smem:[#allocation0]]
  $region45: #{encoder_fuse12_forward.3} parent=0
    _
  %s6 = ssub.s32 1, %s4
  %s7 = scalar_select 0, %s6, %s4
  $region1: #{encoder_fuse12_forward.3} parent=0
    #allocation2 [shape = 'u8[32768]{0}', space=vmem, size = 0x8000, scoped, tag = 'output window, operand 0']
    #allocation3 [shape = 's32[2]{0}', space=sflag, size = 0x8, scoped, tag = 'scoped memory for encoder_fuse12_forward.3']
    %8 = vsyncpa [#allocation3], 0
    %s9 = scalar_lea.sflag [#allocation3], 1
    %10 = vsyncpa %s9, 0
    loop: start=0, step=1, limit=66
    $region2: #{encoder_fuse12_forward.3} parent=1 // loop_pre_header
      _
    $region3: #{encoder_fuse12_forward.3} parent=1 // loop_header
      %s12 = sphi 0, %s16
      %p13 = scmp.ge.s32.totalorder %s12, 66
      %s19 = sphi 0, %s31
      %s20 = sphi 0, %s27
      %s21 = sphi 0, %s19
      %s22 = sphi 0, %s20
      %s23 = sphi 0, %s21
      %s24 = sphi 0, %s22
      %s32 = sphi 0, %s32
      %s34 = sphi 0, %s32
      %s35 = sphi 0, %s34
      %s49 = sphi 0, %s35
      %s53 = sphi 0, %s53
      %s55 = sphi 0, %s53
      %s56 = sphi 0, %s55
      %s70 = sphi 0, %s56
      %s78 = sphi 0, %s80
      %s81 = sphi 0, %s78
      %s82 = sphi 0, %s81
      %s98 = sphi 0, %s82
      %s106 = sphi 0, %s108
      %s109 = sphi 0, %s106
      %s110 = sphi 0, %s109
      %s126 = sphi 0, %s110
    $region4: #{encoder_fuse12_forward.3} parent=1 // loop_header_branch
      %15 = sbr.rel (%p13) target = $region8
    $region5: #{encoder_fuse12_forward.3} parent=1 // loop_body
      %s17 = ssub.s32 %s12, 1
      %s18 = ssub.s32 %s12, 2
      %s25 = sadd.s32 1, %s20
      %p26 = scmp.ge.s32.totalorder %s25, 32
      %s27 = scalar_select %p26, 0, %s25
      %s28 = sadd.s32 1, %s19
      %s29 = scalar_select %p26, %s28, %s19
      %p30 = scmp.ge.s32.totalorder %s29, 2
      %s31 = scalar_select %p30, 0, %s29
      %s33 = sadd.s32 %s32, 1
      %p36 = scmp.eq.s32.totalorder %s12, 63
      %p37 = scmp.ne.s32.totalorder %s32, %s34
      %p38 = scmp.eq.s32.totalorder %s12, 0
      %p39 = por %p37, %p38
      %p40 = scmp.ne.s32.totalorder %s32, %s34
      %p41 = scmp.eq.s32.totalorder %s17, 63
      %p42 = por %p40, %p41
      %p43 = scmp.ne.s32.totalorder %s34, %s35
      %p44 = scmp.eq.s32.totalorder %s17, 0
      %p45 = por %p43, %p44
      %p46 = scmp.ne.s32.totalorder %s34, %s35
      %p47 = scmp.eq.s32.totalorder %s18, 63
      %p48 = por %p46, %p47
      %p50 = scmp.ne.s32.totalorder %s35, %s49
      %p51 = scmp.eq.s32.totalorder %s18, 0
      %p52 = por %p50, %p51
      %s54 = sadd.s32 %s53, 1
      %p57 = scmp.eq.s32.totalorder %s12, 63
      %p58 = scmp.ne.s32.totalorder %s53, %s55
      %p59 = scmp.eq.s32.totalorder %s12, 0
      %p60 = por %p58, %p59
      %p61 = scmp.ne.s32.totalorder %s53, %s55
      %p62 = scmp.eq.s32.totalorder %s17, 63
      %p63 = por %p61, %p62
      %p64 = scmp.ne.s32.totalorder %s55, %s56
      %p65 = scmp.eq.s32.totalorder %s17, 0
      %p66 = por %p64, %p65
      %p67 = scmp.ne.s32.totalorder %s55, %s56
      %p68 = scmp.eq.s32.totalorder %s18, 63
      %p69 = por %p67, %p68
      %p71 = scmp.ne.s32.totalorder %s56, %s70
      %p72 = scmp.eq.s32.totalorder %s18, 0
      %p73 = por %p71, %p72
      %s74 = ssub.s32 %s19, %s31
      %s75 = ssub.s32 %s20, %s27
      %s76 = sor.u32 %s74, %s75
      %p77 = scmp.eq.s32.totalorder %s76, 0
      %s79 = sadd.s32 %s78, 1
      %s80 = scalar_select %p77, %s78, %s79
      %p83 = pneg %p77
      %p84 = scmp.eq.s32.totalorder %s12, 63
      %p85 = por %p83, %p84
      %p86 = scmp.ne.s32.totalorder %s78, %s81
      %p87 = scmp.eq.s32.totalorder %s12, 0
      %p88 = por %p86, %p87
      %p89 = scmp.ne.s32.totalorder %s78, %s81
      %p90 = scmp.eq.s32.totalorder %s17, 63
      %p91 = por %p89, %p90
      %p92 = scmp.ne.s32.totalorder %s81, %s82
      %p93 = scmp.eq.s32.totalorder %s17, 0
      %p94 = por %p92, %p93
      %p95 = scmp.ne.s32.totalorder %s81, %s82
      %p96 = scmp.eq.s32.totalorder %s18, 63
      %p97 = por %p95, %p96
      %p99 = scmp.ne.s32.totalorder %s82, %s98
      %p100 = scmp.eq.s32.totalorder %s18, 0
      %p101 = por %p99, %p100
      %s102 = ssub.s32 %s19, %s31
      %s103 = ssub.s32 %s20, %s27
      %s104 = sor.u32 %s102, %s103
      %p105 = scmp.eq.s32.totalorder %s104, 0
      %s107 = sadd.s32 %s106, 1
      %s108 = scalar_select %p105, %s106, %s107
      %p111 = pneg %p105
      %p112 = scmp.eq.s32.totalorder %s12, 63
      %p113 = por %p111, %p112
      %p114 = scmp.ne.s32.totalorder %s106, %s109
      %p115 = scmp.eq.s32.totalorder %s12, 0
      %p116 = por %p114, %p115
      %p117 = scmp.ne.s32.totalorder %s106, %s109
      %p118 = scmp.eq.s32.totalorder %s17, 63
      %p119 = por %p117, %p118
      %p120 = scmp.ne.s32.totalorder %s109, %s110
      %p121 = scmp.eq.s32.totalorder %s17, 0
      %p122 = por %p120, %p121
      %p123 = scmp.ne.s32.totalorder %s109, %s110
      %p124 = scmp.eq.s32.totalorder %s18, 63
      %p125 = por %p123, %p124
      %p127 = scmp.ne.s32.totalorder %s110, %s126
      %p128 = scmp.eq.s32.totalorder %s18, 0
      %p129 = por %p127, %p128
      %p130 = scmp.le.s32.totalorder 1, %s12
      %p131 = scmp.lt.s32.totalorder %s12, 65
      %p132 = pnand %p130, %p131
      %p133 = pneg %p132
      // Predicated region
      $region9: #{encoder_fuse12_forward.3} parent=5 // pred_check
        _
      $region10: #{encoder_fuse12_forward.3} parent=5 // pred_check_branch
        %135 = sbr.rel (%p132) target = $region12
      $region11: #{encoder_fuse12_forward.3} parent=5 // pred_region
        %s136 = ssub.s32 %s12, 1
        // Predicated region
        $region13: #{encoder_fuse12_forward.3} parent=11 // pred_check
          %p137 = pneg %p45
        $region14: #{encoder_fuse12_forward.3} parent=11 // pred_check_branch
          %139 = sbr.rel (%p137) target = $region16
        $region15: #{encoder_fuse12_forward.3} parent=11 // pred_region
          _
        $region16: #{encoder_fuse12_forward.3} parent=11 // pred_fallthru
          _
        // Predicated region
        $region17: #{encoder_fuse12_forward.3} parent=11 // pred_check
          %p140 = pneg %p66
        $region18: #{encoder_fuse12_forward.3} parent=11 // pred_check_branch
          %142 = sbr.rel (%p140) target = $region20
        $region19: #{encoder_fuse12_forward.3} parent=11 // pred_region
          _
        $region20: #{encoder_fuse12_forward.3} parent=11 // pred_fallthru
          _
      $region12: #{encoder_fuse12_forward.3} parent=5 // pred_fallthru
        _
      %p143 = scmp.lt.s32.totalorder %s12, 64
      // Predicated region
      $region21: #{encoder_fuse12_forward.3} parent=5 // pred_check
        %p144 = pneg %p143
      $region22: #{encoder_fuse12_forward.3} parent=5 // pred_check_branch
        %146 = sbr.rel (%p144) target = $region24
      $region23: #{encoder_fuse12_forward.3} parent=5 // pred_region
        // Predicated region
        $region25: #{encoder_fuse12_forward.3} parent=23 // pred_check
          %p147 = pneg %p88
        $region26: #{encoder_fuse12_forward.3} parent=23 // pred_check_branch
          %149 = sbr.rel (%p147) target = $region28
        $region27: #{encoder_fuse12_forward.3} parent=23 // pred_region
          %p150 = scmp.lt.s32.totalorder %s19, 1
          %s151 = scalar_select %p150, %s19, 1
          %p152 = scmp.lt.s32.totalorder %s20, 31
          %s153 = scalar_select %p152, %s20, 31
          %s154 = smul.addr %s151, 32
          %s155 = sadd.s32 %s153, %s154
          %s156 = smul.addr %s155, 8
          %s157 = scalar_lea.vmem %s2, %s156
        $region28: #{encoder_fuse12_forward.3} parent=23 // pred_fallthru
          _
      $region24: #{encoder_fuse12_forward.3} parent=5 // pred_fallthru
        _
      %p158 = scmp.le.s32.totalorder 1, %s12
      %p159 = scmp.lt.s32.totalorder %s12, 65
      %p160 = pnand %p158, %p159
      %p161 = pneg %p160
      // Predicated region
      $region29: #{encoder_fuse12_forward.3} parent=5 // pred_check
        _
      $region30: #{encoder_fuse12_forward.3} parent=5 // pred_check_branch
        %163 = sbr.rel (%p160) target = $region32
      $region31: #{encoder_fuse12_forward.3} parent=5 // pred_region
        %s164 = ssub.s32 %s12, 1
        %p165 = pneg %p45
        %p166 = pneg %p42
        %p167 = pneg %p66
        %p168 = pneg %p63
        %p169 = scmp.lt.s32.totalorder %s21, 1
        %s170 = scalar_select %p169, %s21, 1
        %p171 = scmp.lt.s32.totalorder %s22, 31
        %s172 = scalar_select %p171, %s22, 31
        %s173 = smul.addr %s170, 32
        %s174 = sadd.s32 %s172, %s173
        %s175 = smul.addr %s174, 8
        %s176 = scalar_lea.vmem %s2, %s175
        %p177 = pneg %p94
        %p178 = pneg %p91
        %p179 = pneg %p122
        %p180 = pneg %p119
        %s181 = sand.u32 %s109, 1
        %s182 = scalar_lea.sflag [#allocation3], %s181
        %s183 = sand.u32 %s109, 1
        %s184 = smul.addr %s183, 32
        %s185 = scalar_lea.vmem [#allocation2], %s184
        %p186 = scmp.lt.s32.totalorder %s21, 1
        %s187 = scalar_select %p186, %s21, 1
        %p188 = scmp.lt.s32.totalorder %s22, 31
        %s189 = scalar_select %p188, %s22, 31
        %s190 = smul.addr %s187, 32
        %s191 = sadd.s32 %s189, %s190
        %s192 = smul.addr %s191, 8
        %s193 = scalar_lea.vmem %s2, %s192
        %v194 = vld [vmem:[%s0] sm:$0xff]
        %v195 = vld [vmem:[%s0 + $0x8] sm:$0xff]
        %v196 = vld [vmem:[%s0 + $0x10] sm:$0xff]
        %v197 = vld [vmem:[%s0 + $0x18] sm:$0xff]
        %v198 = vld [vmem:[%s193] sm:$0xff]
        %vm199 = vcmask 64512
        %v201 = vsel %vm199, %v194, 0
        %v204 = vsel %vm199, %v195, 0
        %v207 = vsel %vm199, %v196, 0
        %v210 = vsel %vm199, %v197, 0
        %212 = vmatprep.subr.mxu0 0.0
        %213 = vmatpush1.msra.mxu0 0.0
        %214 = vmatprep.subr.mxu0 0.0
        %215 = vmatpush1.msra.mxu0 0.0
        %216 = vmatprep.subr.mxu0 0.0
        %217 = vmatpush1.msra.mxu0 0.0
        %218 = vmatprep.subr.mxu0 0.0
        %219 = vmatpush1.msra.mxu0 0.0
        %220 = vmatprep.subr.mxu0 0.0
        %221 = vmatpush1.msra.mxu0 0.0
        %222 = vmatprep.subr.mxu0 0.0
        %223 = vmatpush1.msra.mxu0 0.0
        %224 = vmatprep.subr.mxu0 0.0
        %225 = vmatpush1.msra.mxu0 0.0
        %226 = vmatprep.subr.mxu0 0.0
        %227 = vmatpush1.msra.mxu0 0.0
        %228 = vmatprep.subr.mxu0 0.0
        %229 = vmatpush1.msra.mxu0 0.0
        %230 = vmatprep.subr.mxu0 0.0
        %231 = vmatpush1.msra.mxu0 0.0
        %232 = vmatprep.subr.mxu0 0.0
        %233 = vmatpush1.msra.mxu0 0.0
        %234 = vmatprep.subr.mxu0 0.0
        %235 = vmatpush1.msra.mxu0 0.0
        %236 = vmatprep.subr.mxu0 0.0
        %237 = vmatpush1.msra.mxu0 0.0
        %238 = vmatprep.subr.mxu0 0.0
        %239 = vmatpush1.msra.mxu0 0.0
        %240 = vmatprep.subr.mxu0 0.0
        %241 = vmatpush1.msra.mxu0 0.0
        %242 = vmatprep.subr.mxu0 0.0
        %243 = vmatpush1.msra.mxu0 %v198
        %244 = vmatprep.subr.mxu0 0.0
        %245 = vmatpush2.msra.mxu0 0.0
        %246 = vmatprep.subr.mxu0 0.0
        %247 = vmatpush2.msra.mxu0 0.0
        %248 = vmatprep.subr.mxu0 0.0
        %249 = vmatpush2.msra.mxu0 0.0
        %250 = vmatprep.subr.mxu0 0.0
        %251 = vmatpush2.msra.mxu0 0.0
        %252 = vmatprep.subr.mxu0 0.0
        %253 = vmatpush2.msra.mxu0 0.0
        %254 = vmatprep.subr.mxu0 0.0
        %255 = vmatpush2.msra.mxu0 0.0
        %256 = vmatprep.subr.mxu0 0.0
        %257 = vmatpush2.msra.mxu0 0.0
        %258 = vmatprep.subr.mxu0 0.0
        %259 = vmatpush2.msra.mxu0 0.0
        %260 = vmatprep.subr.mxu0 0.0
        %261 = vmatpush2.msra.mxu0 0.0
        %262 = vmatprep.subr.mxu0 0.0
        %263 = vmatpush2.msra.mxu0 0.0
        %264 = vmatprep.subr.mxu0 0.0
        %265 = vmatpush2.msra.mxu0 0.0
        %266 = vmatprep.subr.mxu0 0.0
        %267 = vmatpush2.msra.mxu0 0.0
        %268 = vmatprep.subr.mxu0 0.0
        %269 = vmatpush2.msra.mxu0 0.0
        %270 = vmatprep.subr.mxu0 0.0
        %271 = vmatpush2.msra.mxu0 0.0
        %272 = vmatprep.subr.mxu0 0.0
        %273 = vmatpush2.msra.mxu0 0.0
        %274 = vmatprep.subr.mxu0 0.0
        %275 = vmatpush2.msra.mxu0 0.0
        %276 = vmatprep.mubr.f32.mxu0 0.0
        %277 = vmatmul.mubr.f32.gmra.mxu0 %v201
        %v278 = vpop.f32.mrf.mxu0
        %v279 = vadd.f32 0.0, %v278
        %v280 = vpop.f32.mrf.mxu0
        %281 = vmatprep.mubr.f32.mxu0 0.0
        %282 = vmatmul.mubr.f32.gmra.mxu0 %v204
        %v283 = vpop.f32.mrf.mxu0
        %v284 = vadd.f32 0.0, %v283
        %v285 = vpop.f32.mrf.mxu0
        %286 = vmatprep.mubr.f32.mxu0 0.0
        %287 = vmatmul.mubr.f32.gmra.mxu0 %v207
        %v288 = vpop.f32.mrf.mxu0
        %v289 = vadd.f32 0.0, %v288
        %v290 = vpop.f32.mrf.mxu0
        %291 = vmatprep.mubr.f32.mxu0 0.0
        %292 = vmatmul.mubr.f32.gmra.mxu0 %v210
        %v293 = vpop.f32.mrf.mxu0
        %v294 = vadd.f32 0.0, %v293
        %v295 = vpop.f32.mrf.mxu0
        %296 = vdwg.mxu0
        %v297 = vld [vmem:[%s1] sm:$0xff]
        %v299 = vsel %vm199, %v279, 0
        %v302 = vsel %vm199, %v284, 0
        %v305 = vsel %vm199, %v289, 0
        %v308 = vsel %vm199, %v294, 0
        %310 = vmatprep.subr.mxu0 0.0
        %311 = vmatpush1.msra.mxu0 0.0
        %312 = vmatprep.subr.mxu0 0.0
        %313 = vmatpush1.msra.mxu0 0.0
        %314 = vmatprep.subr.mxu0 0.0
        %315 = vmatpush1.msra.mxu0 0.0
        %316 = vmatprep.subr.mxu0 0.0
        %317 = vmatpush1.msra.mxu0 0.0
        %318 = vmatprep.subr.mxu0 0.0
        %319 = vmatpush1.msra.mxu0 0.0
        %320 = vmatprep.subr.mxu0 0.0
        %321 = vmatpush1.msra.mxu0 0.0
        %322 = vmatprep.subr.mxu0 0.0
        %323 = vmatpush1.msra.mxu0 0.0
        %324 = vmatprep.subr.mxu0 0.0
        %325 = vmatpush1.msra.mxu0 0.0
        %326 = vmatprep.subr.mxu0 0.0
        %327 = vmatpush1.msra.mxu0 0.0
        %328 = vmatprep.subr.mxu0 0.0
        %329 = vmatpush1.msra.mxu0 0.0
        %330 = vmatprep.subr.mxu0 0.0
        %331 = vmatpush1.msra.mxu0 0.0
        %332 = vmatprep.subr.mxu0 0.0
        %333 = vmatpush1.msra.mxu0 0.0
        %334 = vmatprep.subr.mxu0 0.0
        %335 = vmatpush1.msra.mxu0 0.0
        %336 = vmatprep.subr.mxu0 0.0
        %337 = vmatpush1.msra.mxu0 0.0
        %338 = vmatprep.subr.mxu0 0.0
        %339 = vmatpush1.msra.mxu0 0.0
        %340 = vmatprep.subr.mxu0 0.0
        %341 = vmatpush1.msra.mxu0 %v297
        %342 = vmatprep.subr.mxu0 0.0
        %343 = vmatpush2.msra.mxu0 0.0
        %344 = vmatprep.subr.mxu0 0.0
        %345 = vmatpush2.msra.mxu0 0.0
        %346 = vmatprep.subr.mxu0 0.0
        %347 = vmatpush2.msra.mxu0 0.0
        %348 = vmatprep.subr.mxu0 0.0
        %349 = vmatpush2.msra.mxu0 0.0
        %350 = vmatprep.subr.mxu0 0.0
        %351 = vmatpush2.msra.mxu0 0.0
        %352 = vmatprep.subr.mxu0 0.0
        %353 = vmatpush2.msra.mxu0 0.0
        %354 = vmatprep.subr.mxu0 0.0
        %355 = vmatpush2.msra.mxu0 0.0
        %356 = vmatprep.subr.mxu0 0.0
        %357 = vmatpush2.msra.mxu0 0.0
        %358 = vmatprep.subr.mxu0 0.0
        %359 = vmatpush2.msra.mxu0 0.0
        %360 = vmatprep.subr.mxu0 0.0
        %361 = vmatpush2.msra.mxu0 0.0
        %362 = vmatprep.subr.mxu0 0.0
        %363 = vmatpush2.msra.mxu0 0.0
        %364 = vmatprep.subr.mxu0 0.0
        %365 = vmatpush2.msra.mxu0 0.0
        %366 = vmatprep.subr.mxu0 0.0
        %367 = vmatpush2.msra.mxu0 0.0
        %368 = vmatprep.subr.mxu0 0.0
        %369 = vmatpush2.msra.mxu0 0.0
        %370 = vmatprep.subr.mxu0 0.0
        %371 = vmatpush2.msra.mxu0 0.0
        %372 = vmatprep.subr.mxu0 0.0
        %373 = vmatpush2.msra.mxu0 0.0
        %374 = vmatprep.mubr.f32.mxu0 0.0
        %375 = vmatmul.mubr.f32.gmra.mxu0 %v299
        %v376 = vpop.f32.mrf.mxu0
        %v377 = vadd.f32 0.0, %v376
        %v378 = vpop.f32.mrf.mxu0
        %379 = vmatprep.mubr.f32.mxu0 0.0
        %380 = vmatmul.mubr.f32.gmra.mxu0 %v302
        %v381 = vpop.f32.mrf.mxu0
        %v382 = vadd.f32 0.0, %v381
        %v383 = vpop.f32.mrf.mxu0
        %384 = vmatprep.mubr.f32.mxu0 0.0
        %385 = vmatmul.mubr.f32.gmra.mxu0 %v305
        %v386 = vpop.f32.mrf.mxu0
        %v387 = vadd.f32 0.0, %v386
        %v388 = vpop.f32.mrf.mxu0
        %389 = vmatprep.mubr.f32.mxu0 0.0
        %390 = vmatmul.mubr.f32.gmra.mxu0 %v308
        %v391 = vpop.f32.mrf.mxu0
        %v392 = vadd.f32 0.0, %v391
        %v393 = vpop.f32.mrf.mxu0
        %394 = vdwg.mxu0
        %vm395 = vcmask 261120
        %396 = vst.msk [vmem:[%s185] sm:$0xff] %vm395, %v377
        %397 = vst.msk [vmem:[%s185 + $0x8] sm:$0xff] %vm395, %v382
        %398 = vst.msk [vmem:[%s185 + $0x10] sm:$0xff] %vm395, %v387
        %399 = vst.msk [vmem:[%s185 + $0x18] sm:$0xff] %vm395, %v392
        %s400 = sand.u32 %s109, 1
        %s401 = scalar_lea.sflag [#allocation3], %s400
        %s402 = sand.u32 %s109, 1
        %s403 = smul.addr %s402, 32
        %s404 = scalar_lea.vmem [#allocation2], %s403
        // Predicated region
        $region33: #{encoder_fuse12_forward.3} parent=31 // pred_check
          %p405 = pneg %p119
        $region34: #{encoder_fuse12_forward.3} parent=31 // pred_check_branch
          %407 = sbr.rel (%p405) target = $region36
        $region35: #{encoder_fuse12_forward.3} parent=31 // pred_region
          %s409 = ssub.s32 512, 512
          %410 = vsyncadd %s401, %s409
          %s411 = smul.addr %s22, 4
          %s412 = smul.addr %s21, 128
          %s413 = sadd.s32 %s411, %s412
          %s414 = smul.addr %s413, 128
          %s415 = scalar_lea.hbm %s3, %s414
          %s416 = sshll.u32 %s404, 4
          %s417 = int_to_ptr.vmem [resolvable:$true] %s416
          %422 = dma.vmem_to_hbm [thread:$0]  %s417, 512, %s415, %s401, 128, 128, 8
        $region36: #{encoder_fuse12_forward.3} parent=31 // pred_fallthru
          _
      $region32: #{encoder_fuse12_forward.3} parent=5 // pred_fallthru
        _
      %p423 = scmp.le.s32.totalorder 2, %s12
      // Predicated region
      $region37: #{encoder_fuse12_forward.3} parent=5 // pred_check
        %p424 = pneg %p423
      $region38: #{encoder_fuse12_forward.3} parent=5 // pred_check_branch
        %426 = sbr.rel (%p424) target = $region40
      $region39: #{encoder_fuse12_forward.3} parent=5 // pred_region
        %s427 = ssub.s32 %s12, 2
        // Predicated region
        $region41: #{encoder_fuse12_forward.3} parent=39 // pred_check
          %p428 = pneg %p125
        $region42: #{encoder_fuse12_forward.3} parent=39 // pred_check_branch
          %430 = sbr.rel (%p428) target = $region44
        $region43: #{encoder_fuse12_forward.3} parent=39 // pred_region
          %s431 = sand.u32 %s110, 1
          %s432 = scalar_lea.sflag [#allocation3], %s431
          %s433 = sand.u32 %s110, 1
          %s434 = smul.addr %s433, 32
          %s435 = scalar_lea.vmem [#allocation2], %s434
          %436 = dma.done %s432, 512
        $region44: #{encoder_fuse12_forward.3} parent=39 // pred_fallthru
          _
      $region40: #{encoder_fuse12_forward.3} parent=5 // pred_fallthru
        _
    $region6: #{encoder_fuse12_forward.3} parent=1 // loop_footer
      %s16 = sadd.s32 1, %s12
    $region7: #{encoder_fuse12_forward.3} parent=1 // loop_footer_branch
      %11 = sbr.rel target = $region3
    $region8: #{encoder_fuse12_forward.3} parent=1 // loop_exit
      _
    %437 = vsyncpa [#allocation3], 1
    %s438 = scalar_lea.sflag [#allocation3], 1
    %439 = vsyncpa %s438, 1

// kernel: encoder_fuse12_forward.2
$region0: #{encoder_fuse12_forward.2}
  #allocation0 [shape = 'u32[]', space=smem, size = 0x4, offset = 0x4, fixed_abs, tag = 'smem constant byte address 0x4 - core index']
  #allocation1 [shape = 'u32[144,128]{1,0:T(1,128)}', space=vmem, size = 0x12000, scoped, tag = 'internal scratch']
  #allocation2 [shape = 'bf16[64,1728]{1,0:T(8,128)(2,1)}', space=vmem, size = 0x38000, scoped, tag = 'scratch operand']
  %s0 = inlined_call_operand.vmem [shape: bf16[2,32,32,64], index: 0, kind: input, shape index: {}]
  %s1 = inlined_call_operand.vmem [shape: bf16[2,32,32,32], index: 1, kind: input, shape index: {}]
  %s2 = inlined_call_operand.vmem [shape: bf16[1728,32], index: 2, kind: input, shape index: {}]
  %s3 = inlined_call_operand.vmem [shape: f32[1,32], index: 3, kind: input, shape index: {}]
  %s4 = inlined_call_operand.vmem [shape: f32[2,32,64], index: 4, kind: output, shape index: {}]
  %s5 = sld [smem:[#allocation0]]
  $region49: #{encoder_fuse12_forward.2} parent=0
    _
  %s7 = ssub.s32 1, %s5
  %s8 = scalar_select 0, %s7, %s5
  loop: start=0, step=1, limit=4
  $region2: #{encoder_fuse12_forward.2} parent=0 // loop_pre_header
    _
  $region3: #{encoder_fuse12_forward.2} parent=0 // loop_header
    %s10 = sphi 0, %s14
    %p11 = scmp.ge.s32.totalorder %s10, 4
    %s20 = sphi 0, %s22
    %s23 = sphi 0, %s20
    %s24 = sphi 0, %s23
    %s40 = sphi 0, %s24
    %s46 = sphi 0, %s48
    %s49 = sphi 0, %s46
    %s50 = sphi 0, %s49
    %s66 = sphi 0, %s50
    %s70 = sphi 0, %s70
    %s72 = sphi 0, %s70
    %s73 = sphi 0, %s72
    %s87 = sphi 0, %s73
    %s91 = sphi 0, %s91
    %s93 = sphi 0, %s91
    %s94 = sphi 0, %s93
    %s108 = sphi 0, %s94
    %s114 = sphi 0, %s116
    %s117 = sphi 0, %s114
    %s118 = sphi 0, %s117
    %s134 = sphi 0, %s118
  $region4: #{encoder_fuse12_forward.2} parent=0 // loop_header_branch
    %13 = sbr.rel (%p11) target = $region8
  $region5: #{encoder_fuse12_forward.2} parent=0 // loop_body
    %s15 = ssub.s32 %s10, 1
    %s16 = ssub.s32 %s10, 2
    %s17 = sadd.s32 %s10, 1
    %s18 = ssub.s32 %s10, %s17
    %p19 = scmp.eq.s32.totalorder %s18, 0
    %s21 = sadd.s32 %s20, 1
    %s22 = scalar_select %p19, %s20, %s21
    %p25 = pneg %p19
    %p26 = scmp.eq.s32.totalorder %s10, 1
    %p27 = por %p25, %p26
    %p28 = scmp.ne.s32.totalorder %s20, %s23
    %p29 = scmp.eq.s32.totalorder %s10, 0
    %p30 = por %p28, %p29
    %p31 = scmp.ne.s32.totalorder %s20, %s23
    %p32 = scmp.eq.s32.totalorder %s15, 1
    %p33 = por %p31, %p32
    %p34 = scmp.ne.s32.totalorder %s23, %s24
    %p35 = scmp.eq.s32.totalorder %s15, 0
    %p36 = por %p34, %p35
    %p37 = scmp.ne.s32.totalorder %s23, %s24
    %p38 = scmp.eq.s32.totalorder %s16, 1
    %p39 = por %p37, %p38
    %p41 = scmp.ne.s32.totalorder %s24, %s40
    %p42 = scmp.eq.s32.totalorder %s16, 0
    %p43 = por %p41, %p42
    %s44 = ssub.s32 %s10, %s17
    %p45 = scmp.eq.s32.totalorder %s44, 0
    %s47 = sadd.s32 %s46, 1
    %s48 = scalar_select %p45, %s46, %s47
    %p51 = pneg %p45
    %p52 = scmp.eq.s32.totalorder %s10, 1
    %p53 = por %p51, %p52
    %p54 = scmp.ne.s32.totalorder %s46, %s49
    %p55 = scmp.eq.s32.totalorder %s10, 0
    %p56 = por %p54, %p55
    %p57 = scmp.ne.s32.totalorder %s46, %s49
    %p58 = scmp.eq.s32.totalorder %s15, 1
    %p59 = por %p57, %p58
    %p60 = scmp.ne.s32.totalorder %s49, %s50
    %p61 = scmp.eq.s32.totalorder %s15, 0
    %p62 = por %p60, %p61
    %p63 = scmp.ne.s32.totalorder %s49, %s50
    %p64 = scmp.eq.s32.totalorder %s16, 1
    %p65 = por %p63, %p64
    %p67 = scmp.ne.s32.totalorder %s50, %s66
    %p68 = scmp.eq.s32.totalorder %s16, 0
    %p69 = por %p67, %p68
    %s71 = sadd.s32 %s70, 1
    %p74 = scmp.eq.s32.totalorder %s10, 1
    %p75 = scmp.ne.s32.totalorder %s70, %s72
    %p76 = scmp.eq.s32.totalorder %s10, 0
    %p77 = por %p75, %p76
    %p78 = scmp.ne.s32.totalorder %s70, %s72
    %p79 = scmp.eq.s32.totalorder %s15, 1
    %p80 = por %p78, %p79
    %p81 = scmp.ne.s32.totalorder %s72, %s73
    %p82 = scmp.eq.s32.totalorder %s15, 0
    %p83 = por %p81, %p82
    %p84 = scmp.ne.s32.totalorder %s72, %s73
    %p85 = scmp.eq.s32.totalorder %s16, 1
    %p86 = por %p84, %p85
    %p88 = scmp.ne.s32.totalorder %s73, %s87
    %p89 = scmp.eq.s32.totalorder %s16, 0
    %p90 = por %p88, %p89
    %s92 = sadd.s32 %s91, 1
    %p95 = scmp.eq.s32.totalorder %s10, 1
    %p96 = scmp.ne.s32.totalorder %s91, %s93
    %p97 = scmp.eq.s32.totalorder %s10, 0
    %p98 = por %p96, %p97
    %p99 = scmp.ne.s32.totalorder %s91, %s93
    %p100 = scmp.eq.s32.totalorder %s15, 1
    %p101 = por %p99, %p100
    %p102 = scmp.ne.s32.totalorder %s93, %s94
    %p103 = scmp.eq.s32.totalorder %s15, 0
    %p104 = por %p102, %p103
    %p105 = scmp.ne.s32.totalorder %s93, %s94
    %p106 = scmp.eq.s32.totalorder %s16, 1
    %p107 = por %p105, %p106
    %p109 = scmp.ne.s32.totalorder %s94, %s108
    %p110 = scmp.eq.s32.totalorder %s16, 0
    %p111 = por %p109, %p110
    %s112 = ssub.s32 %s10, %s17
    %p113 = scmp.eq.s32.totalorder %s112, 0
    %s115 = sadd.s32 %s114, 1
    %s116 = scalar_select %p113, %s114, %s115
    %p119 = pneg %p113
    %p120 = scmp.eq.s32.totalorder %s10, 1
    %p121 = por %p119, %p120
    %p122 = scmp.ne.s32.totalorder %s114, %s117
    %p123 = scmp.eq.s32.totalorder %s10, 0
    %p124 = por %p122, %p123
    %p125 = scmp.ne.s32.totalorder %s114, %s117
    %p126 = scmp.eq.s32.totalorder %s15, 1
    %p127 = por %p125, %p126
    %p128 = scmp.ne.s32.totalorder %s117, %s118
    %p129 = scmp.eq.s32.totalorder %s15, 0
    %p130 = por %p128, %p129
    %p131 = scmp.ne.s32.totalorder %s117, %s118
    %p132 = scmp.eq.s32.totalorder %s16, 1
    %p133 = por %p131, %p132
    %p135 = scmp.ne.s32.totalorder %s118, %s134
    %p136 = scmp.eq.s32.totalorder %s16, 0
    %p137 = por %p135, %p136
    %p138 = scmp.le.s32.totalorder 1, %s10
    %p139 = scmp.lt.s32.totalorder %s10, 3
    %p140 = pnand %p138, %p139
    %p141 = pneg %p140
    // Predicated region
    $region9: #{encoder_fuse12_forward.2} parent=5 // pred_check
      _
    $region10: #{encoder_fuse12_forward.2} parent=5 // pred_check_branch
      %143 = sbr.rel (%p140) target = $region12
    $region11: #{encoder_fuse12_forward.2} parent=5 // pred_region
      %s144 = ssub.s32 %s10, 1
      // Predicated region
      $region13: #{encoder_fuse12_forward.2} parent=11 // pred_check
        %p145 = pneg %p83
      $region14: #{encoder_fuse12_forward.2} parent=11 // pred_check_branch
        %147 = sbr.rel (%p145) target = $region16
      $region15: #{encoder_fuse12_forward.2} parent=11 // pred_region
        _
      $region16: #{encoder_fuse12_forward.2} parent=11 // pred_fallthru
        _
      // Predicated region
      $region17: #{encoder_fuse12_forward.2} parent=11 // pred_check
        %p148 = pneg %p104
      $region18: #{encoder_fuse12_forward.2} parent=11 // pred_check_branch
        %150 = sbr.rel (%p148) target = $region20
      $region19: #{encoder_fuse12_forward.2} parent=11 // pred_region
        _
      $region20: #{encoder_fuse12_forward.2} parent=11 // pred_fallthru
        _
    $region12: #{encoder_fuse12_forward.2} parent=5 // pred_fallthru
      _
    %p151 = scmp.lt.s32.totalorder %s10, 2
    // Predicated region
    $region21: #{encoder_fuse12_forward.2} parent=5 // pred_check
      %p152 = pneg %p151
    $region22: #{encoder_fuse12_forward.2} parent=5 // pred_check_branch
      %154 = sbr.rel (%p152) target = $region24
    $region23: #{encoder_fuse12_forward.2} parent=5 // pred_region
      // Predicated region
      $region25: #{encoder_fuse12_forward.2} parent=23 // pred_check
        %p155 = pneg %p30
      $region26: #{encoder_fuse12_forward.2} parent=23 // pred_check_branch
        %157 = sbr.rel (%p155) target = $region28
      $region27: #{encoder_fuse12_forward.2} parent=23 // pred_region
        %p158 = scmp.lt.s32.totalorder %s10, 1
        %s159 = scalar_select %p158, %s10, 1
        %s160 = smul.addr %s159, 128
        %s161 = smul.addr %s160, 4
        %s162 = scalar_lea.vmem %s0, %s161
      $region28: #{encoder_fuse12_forward.2} parent=23 // pred_fallthru
        _
      // Predicated region
      $region29: #{encoder_fuse12_forward.2} parent=23 // pred_check
        %p163 = pneg %p56
      $region30: #{encoder_fuse12_forward.2} parent=23 // pred_check_branch
        %165 = sbr.rel (%p163) target = $region32
      $region31: #{encoder_fuse12_forward.2} parent=23 // pred_region
        %p166 = scmp.lt.s32.totalorder %s10, 1
        %s167 = scalar_select %p166, %s10, 1
        %s168 = smul.addr %s167, 128
        %s169 = smul.addr %s168, 4
        %s170 = scalar_lea.vmem %s1, %s169
      $region32: #{encoder_fuse12_forward.2} parent=23 // pred_fallthru
        _
    $region24: #{encoder_fuse12_forward.2} parent=5 // pred_fallthru
      _
    %p171 = scmp.le.s32.totalorder 1, %s10
    %p172 = scmp.lt.s32.totalorder %s10, 3
    %p173 = pnand %p171, %p172
    %p174 = pneg %p173
    // Predicated region
    $region33: #{encoder_fuse12_forward.2} parent=5 // pred_check
      _
    $region34: #{encoder_fuse12_forward.2} parent=5 // pred_check_branch
      %176 = sbr.rel (%p173) target = $region36
    $region35: #{encoder_fuse12_forward.2} parent=5 // pred_region
      %s177 = ssub.s32 %s10, 1
      %p178 = scmp.lt.s32.totalorder %s15, 1
      %s179 = scalar_select %p178, %s15, 1
      %s180 = smul.addr %s179, 128
      %s181 = smul.addr %s180, 4
      %s182 = scalar_lea.vmem %s0, %s181
      %p183 = pneg %p36
      %p184 = pneg %p33
      %p185 = scmp.lt.s32.totalorder %s15, 1
      %s186 = scalar_select %p185, %s15, 1
      %s187 = smul.addr %s186, 128
      %s188 = smul.addr %s187, 4
      %s189 = scalar_lea.vmem %s1, %s188
      %p190 = pneg %p62
      %p191 = pneg %p59
      %p192 = pneg %p83
      %p193 = pneg %p80
      %p194 = pneg %p104
      %p195 = pneg %p101
      %p196 = pneg %p130
      %p197 = pneg %p127
      %p198 = scmp.lt.s32.totalorder %s15, 1
      %s199 = scalar_select %p198, %s15, 1
      %s200 = smul.addr %s199, 4
      %s201 = smul.addr %s200, 8
      %s202 = scalar_lea.vmem %s4, %s201
      %p203 = scmp.lt.s32.totalorder %s15, 1
      %s204 = scalar_select %p203, %s15, 1
      %s205 = smul.addr %s204, 128
      %s206 = smul.addr %s205, 4
      %s207 = scalar_lea.vmem %s0, %s206
      %p208 = scmp.lt.s32.totalorder %s15, 1
      %s209 = scalar_select %p208, %s15, 1
      %s210 = smul.addr %s209, 128
      %s211 = smul.addr %s210, 4
      %s212 = scalar_lea.vmem %s1, %s211
      %p213 = scmp.lt.s32.totalorder %s15, 1
      %s214 = scalar_select %p213, %s15, 1
      %s215 = smul.addr %s214, 4
      %s216 = smul.addr %s215, 8
      %s217 = scalar_lea.vmem %s4, %s216
      %s219 = scalar_lea.vmem %s207, 96
      %v220 = vld [vmem:[%s219] sm:$0x8]
      %v221 = vld [vmem:[%s219 + $0x4] sm:$0x7]
      %v222 = vld [vmem:[%s219 + $0x10] sm:$0x8]
      %v223 = vld [vmem:[%s219 + $0x14] sm:$0x7]
      %v224 = vld [vmem:[%s219 + $0x20] sm:$0x8]
      %v225 = vld [vmem:[%s219 + $0x24] sm:$0x7]
      %v226 = vld [vmem:[%s219 + $0x30] sm:$0x8]
      %v227 = vld [vmem:[%s219 + $0x34] sm:$0x7]
      %v228 = vld [vmem:[%s219 + $0x40] sm:$0x8]
      %v229 = vld [vmem:[%s219 + $0x44] sm:$0x7]
      %v230 = vld [vmem:[%s219 + $0x50] sm:$0x8]
      %v231 = vld [vmem:[%s219 + $0x54] sm:$0x7]
      %v232 = vld [vmem:[%s219 + $0x60] sm:$0x8]
      %v233 = vld [vmem:[%s219 + $0x64] sm:$0x7]
      %v234 = vld [vmem:[%s219 + $0x70] sm:$0x8]
      %v235 = vld [vmem:[%s219 + $0x74] sm:$0x7]
      %vm252 = vcmask 1040384
      %vm253 = vcmask 1044484
      %vm254 = vmor %vm252, %vm253
      %v255 = vrot.slane %v220, 7
      %v256 = vrot.slane %v255, 4
      %v257 = vrot.slane %v221, 7
      %v258 = vsel %vm254, %v256, %v257
      %v259 = vrot.slane %v222, 7
      %v260 = vrot.slane %v259, 4
      %v261 = vrot.slane %v223, 7
      %v262 = vsel %vm254, %v260, %v261
      %v263 = vrot.slane %v224, 7
      %v264 = vrot.slane %v263, 4
      %v265 = vrot.slane %v225, 7
      %v266 = vsel %vm254, %v264, %v265
      %v267 = vrot.slane %v226, 7
      %v268 = vrot.slane %v267, 4
      %v269 = vrot.slane %v227, 7
      %v270 = vsel %vm254, %v268, %v269
      %v271 = vrot.slane %v228, 7
      %v272 = vrot.slane %v271, 4
      %v273 = vrot.slane %v229, 7
      %v274 = vsel %vm254, %v272, %v273
      %v275 = vrot.slane %v230, 7
      %v276 = vrot.slane %v275, 4
      %v277 = vrot.slane %v231, 7
      %v278 = vsel %vm254, %v276, %v277
      %v279 = vrot.slane %v232, 7
      %v280 = vrot.slane %v279, 4
      %v281 = vrot.slane %v233, 7
      %v282 = vsel %vm254, %v280, %v281
      %v283 = vrot.slane %v234, 7
      %v284 = vrot.slane %v283, 4
      %v285 = vrot.slane %v235, 7
      %v286 = vsel %vm254, %v284, %v285
      %vm295 = vcmask 519168
      %296 = vst.msk [vmem:[#allocation2] sm:$0xf] %vm295, %v258
      %297 = vst.msk [vmem:[#allocation2 + $0x38] sm:$0xf] %vm295, %v262
      %298 = vst.msk [vmem:[#allocation2 + $0x70] sm:$0xf] %vm295, %v266
      %299 = vst.msk [vmem:[#allocation2 + $0xa8] sm:$0xf] %vm295, %v270
      %300 = vst.msk [vmem:[#allocation2 + $0xe0] sm:$0xf] %vm295, %v274
      %301 = vst.msk [vmem:[#allocation2 + $0x118] sm:$0xf] %vm295, %v278
      %302 = vst.msk [vmem:[#allocation2 + $0x150] sm:$0xf] %vm295, %v282
      %303 = vst.msk [vmem:[#allocation2 + $0x188] sm:$0xf] %vm295, %v286
      %v304 = vld [vmem:[%s219 + $0x4] sm:$0xc]
      %v305 = vld [vmem:[%s219 + $0x8] sm:$0x3]
      %v306 = vld [vmem:[%s219 + $0x14] sm:$0xc]
      %v307 = vld [vmem:[%s219 + $0x18] sm:$0x3]
      %v308 = vld [vmem:[%s219 + $0x24] sm:$0xc]
      %v309 = vld [vmem:[%s219 + $0x28] sm:$0x3]
      %v310 = vld [vmem:[%s219 + $0x34] sm:$0xc]
      %v311 = vld [vmem:[%s219 + $0x38] sm:$0x3]
      %v312 = vld [vmem:[%s219 + $0x44] sm:$0xc]
      %v313 = vld [vmem:[%s219 + $0x48] sm:$0x3]
      %v314 = vld [vmem:[%s219 + $0x54] sm:$0xc]
      %v315 = vld [vmem:[%s219 + $0x58] sm:$0x3]
      %v316 = vld [vmem:[%s219 + $0x64] sm:$0xc]
      %v317 = vld [vmem:[%s219 + $0x68] sm:$0x3]
      %v318 = vld [vmem:[%s219 + $0x74] sm:$0xc]
      %v319 = vld [vmem:[%s219 + $0x78] sm:$0x3]
      %vm336 = vcmask 1041408
      %vm337 = vcmask 1045508
      %vm338 = vmor %vm336, %vm337
      %v339 = vrot.slane %v304, 6
      %v340 = vrot.slane %v339, 4
      %v341 = vrot.slane %v305, 6
      %v342 = vsel %vm338, %v340, %v341
      %v343 = vrot.slane %v306, 6
      %v344 = vrot.slane %v343, 4
      %v345 = vrot.slane %v307, 6
      %v346 = vsel %vm338, %v344, %v345
      %v347 = vrot.slane %v308, 6
      %v348 = vrot.slane %v347, 4
      %v349 = vrot.slane %v309, 6
      %v350 = vsel %vm338, %v348, %v349
      %v351 = vrot.slane %v310, 6
      %v352 = vrot.slane %v351, 4
      %v353 = vrot.slane %v311, 6
      %v354 = vsel %vm338, %v352, %v353
      %v355 = vrot.slane %v312, 6
      %v356 = vrot.slane %v355, 4
      %v357 = vrot.slane %v313, 6
      %v358 = vsel %vm338, %v356, %v357
      %v359 = vrot.slane %v314, 6
      %v360 = vrot.slane %v359, 4
      %v361 = vrot.slane %v315, 6
      %v362 = vsel %vm338, %v360, %v361
      %v363 = vrot.slane %v316, 6
      %v364 = vrot.slane %v363, 4
      %v365 = vrot.slane %v317, 6
      %v366 = vsel %vm338, %v364, %v365
      %v367 = vrot.slane %v318, 6
      %v368 = vrot.slane %v367, 4
      %v369 = vrot.slane %v319, 6
      %v370 = vsel %vm338, %v368, %v369
      %371 = vrot.lane.b32.xlu0 %v342, 64
      %v372 = vpop.permute.xlu0 %371
      %373 = vrot.lane.b32.xlu0 %v346, 64
      %v374 = vpop.permute.xlu0 %373
      %375 = vrot.lane.b32.xlu0 %v350, 64
      %v376 = vpop.permute.xlu0 %375
      %377 = vrot.lane.b32.xlu0 %v354, 64
      %v378 = vpop.permute.xlu0 %377
      %379 = vrot.lane.b32.xlu0 %v358, 64
      %v380 = vpop.permute.xlu0 %379
      %381 = vrot.lane.b32.xlu0 %v362, 64
      %v382 = vpop.permute.xlu0 %381
      %383 = vrot.lane.b32.xlu0 %v366, 64
      %v384 = vpop.permute.xlu0 %383
      %385 = vrot.lane.b32.xlu0 %v370, 64
      %v386 = vpop.permute.xlu0 %385
      %vm395 = vcmask 1043968
      %396 = vst.msk [vmem:[#allocation2] sm:$0xf] %vm395, %v372
      %397 = vst.msk [vmem:[#allocation2 + $0x38] sm:$0xf] %vm395, %v374
      %398 = vst.msk [vmem:[#allocation2 + $0x70] sm:$0xf] %vm395, %v376
      %399 = vst.msk [vmem:[#allocation2 + $0xa8] sm:$0xf] %vm395, %v378
      %400 = vst.msk [vmem:[#allocation2 + $0xe0] sm:$0xf] %vm395, %v380
      %401 = vst.msk [vmem:[#allocation2 + $0x118] sm:$0xf] %vm395, %v382
      %402 = vst.msk [vmem:[#allocation2 + $0x150] sm:$0xf] %vm395, %v384
      %403 = vst.msk [vmem:[#allocation2 + $0x188] sm:$0xf] %vm395, %v386
      %v404 = vld [vmem:[%s219 + $0x8] sm:$0xe]
      %v405 = vld [vmem:[%s219 + $0xc] sm:$0x1]
      %v406 = vld [vmem:[%s219 + $0x18] sm:$0xe]
      %v407 = vld [vmem:[%s219 + $0x1c] sm:$0x1]
      %v408 = vld [vmem:[%s219 + $0x28] sm:$0xe]
      %v409 = vld [vmem:[%s219 + $0x2c] sm:$0x1]
      %v410 = vld [vmem:[%s219 + $0x38] sm:$0xe]
      %v411 = vld [vmem:[%s219 + $0x3c] sm:$0x1]
      %v412 = vld [vmem:[%s219 + $0x48] sm:$0xe]
      %v413 = vld [vmem:[%s219 + $0x4c] sm:$0x1]
      %v414 = vld [vmem:[%s219 + $0x58] sm:$0xe]
      %v415 = vld [vmem:[%s219 + $0x5c] sm:$0x1]
      %v416 = vld [vmem:[%s219 + $0x68] sm:$0xe]
      %v417 = vld [vmem:[%s219 + $0x6c] sm:$0x1]
      %v418 = vld [vmem:[%s219 + $0x78] sm:$0xe]
      %v419 = vld [vmem:[%s219 + $0x7c] sm:$0x1]
      %vm436 = vcmask 1042432
      %vm437 = vcmask 1046532
      %vm438 = vmor %vm436, %vm437
      %v439 = vrot.slane %v404, 5
      %v440 = vrot.slane %v439, 4
      %v441 = vrot.slane %v405, 5
      %v442 = vsel %vm438, %v440, %v441
      %v443 = vrot.slane %v406, 5
      %v444 = vrot.slane %v443, 4
      %v445 = vrot.slane %v407, 5
      %v446 = vsel %vm438, %v444, %v445
      %v447 = vrot.slane %v408, 5
      %v448 = vrot.slane %v447, 4
      %v449 = vrot.slane %v409, 5
      %v450 = vsel %vm438, %v448, %v449
      %v451 = vrot.slane %v410, 5
      %v452 = vrot.slane %v451, 4
      %v453 = vrot.slane %v411, 5
      %v454 = vsel %vm438, %v452, %v453
      %v455 = vrot.slane %v412, 5
      %v456 = vrot.slane %v455, 4
      %v457 = vrot.slane %v413, 5
      %v458 = vsel %vm438, %v456, %v457
      %v459 = vrot.slane %v414, 5
      %v460 = vrot.slane %v459, 4
      %v461 = vrot.slane %v415, 5
      %v462 = vsel %vm438, %v460, %v461
      %v463 = vrot.slane %v416, 5
      %v464 = vrot.slane %v463, 4
      %v465 = vrot.slane %v417, 5
      %v466 = vsel %vm438, %v464, %v465
      %v467 = vrot.slane %v418, 5
      %v468 = vrot.slane %v467, 4
      %v469 = vrot.slane %v419, 5
      %v470 = vsel %vm438, %v468, %v469
      %479 = vst.msk [vmem:[#allocation2 + $0x4] sm:$0xf] %vm295, %v442
      %480 = vst.msk [vmem:[#allocation2 + $0x3c] sm:$0xf] %vm295, %v446
      %481 = vst.msk [vmem:[#allocation2 + $0x74] sm:$0xf] %vm295, %v450
      %482 = vst.msk [vmem:[#allocation2 + $0xac] sm:$0xf] %vm295, %v454
      %483 = vst.msk [vmem:[#allocation2 + $0xe4] sm:$0xf] %vm295, %v458
      %484 = vst.msk [vmem:[#allocation2 + $0x11c] sm:$0xf] %vm295, %v462
      %485 = vst.msk [vmem:[#allocation2 + $0x154] sm:$0xf] %vm295, %v466
      %486 = vst.msk [vmem:[#allocation2 + $0x18c] sm:$0xf] %vm295, %v470
      %s487 = scalar_lea.vmem %s207, 192
      %v488 = vld [vmem:[%s487] sm:$0x8]
      %v489 = vld [vmem:[%s487 + $0x4] sm:$0x7]
      %v490 = vld [vmem:[%s487 + $0x10] sm:$0x8]
      %v491 = vld [vmem:[%s487 + $0x14] sm:$0x7]
      %v492 = vld [vmem:[%s487 + $0x20] sm:$0x8]
      %v493 = vld [vmem:[%s487 + $0x24] sm:$0x7]
      %v494 = vld [vmem:[%s487 + $0x30] sm:$0x8]
      %v495 = vld [vmem:[%s487 + $0x34] sm:$0x7]
      %v496 = vld [vmem:[%s487 + $0x40] sm:$0x8]
      %v497 = vld [vmem:[%s487 + $0x44] sm:$0x7]
      %v498 = vld [vmem:[%s487 + $0x50] sm:$0x8]
      %v499 = vld [vmem:[%s487 + $0x54] sm:$0x7]
      %v500 = vld [vmem:[%s487 + $0x60] sm:$0x8]
      %v501 = vld [vmem:[%s487 + $0x64] sm:$0x7]
      %v502 = vld [vmem:[%s487 + $0x70] sm:$0x8]
      %v503 = vld [vmem:[%s487 + $0x74] sm:$0x7]
      %v520 = vrot.slane %v488, 7
      %v521 = vrot.slane %v520, 4
      %v522 = vrot.slane %v489, 7
      %v523 = vsel %vm254, %v521, %v522
      %v524 = vrot.slane %v490, 7
      %v525 = vrot.slane %v524, 4
      %v526 = vrot.slane %v491, 7
      %v527 = vsel %vm254, %v525, %v526
      %v528 = vrot.slane %v492, 7
      %v529 = vrot.slane %v528, 4
      %v530 = vrot.slane %v493, 7
      %v531 = vsel %vm254, %v529, %v530
      %v532 = vrot.slane %v494, 7
      %v533 = vrot.slane %v532, 4
      %v534 = vrot.slane %v495, 7
      %v535 = vsel %vm254, %v533, %v534
      %v536 = vrot.slane %v496, 7
      %v537 = vrot.slane %v536, 4
      %v538 = vrot.slane %v497, 7
      %v539 = vsel %vm254, %v537, %v538
      %v540 = vrot.slane %v498, 7
      %v541 = vrot.slane %v540, 4
      %v542 = vrot.slane %v499, 7
      %v543 = vsel %vm254, %v541, %v542
      %v544 = vrot.slane %v500, 7
      %v545 = vrot.slane %v544, 4
      %v546 = vrot.slane %v501, 7
      %v547 = vsel %vm254, %v545, %v546
      %v548 = vrot.slane %v502, 7
      %v549 = vrot.slane %v548, 4
      %v550 = vrot.slane %v503, 7
      %v551 = vsel %vm254, %v549, %v550
      %552 = vrot.lane.b32.xlu0 %v523, 64
      %v553 = vpop.permute.xlu0 %552
      %554 = vrot.lane.b32.xlu0 %v527, 64
      %v555 = vpop.permute.xlu0 %554
      %556 = vrot.lane.b32.xlu0 %v531, 64
      %v557 = vpop.permute.xlu0 %556
      %558 = vrot.lane.b32.xlu0 %v535, 64
      %v559 = vpop.permute.xlu0 %558
      %560 = vrot.lane.b32.xlu0 %v539, 64
      %v561 = vpop.permute.xlu0 %560
      %562 = vrot.lane.b32.xlu0 %v543, 64
      %v563 = vpop.permute.xlu0 %562
      %564 = vrot.lane.b32.xlu0 %v547, 64
      %v565 = vpop.permute.xlu0 %564
      %566 = vrot.lane.b32.xlu0 %v551, 64
      %v567 = vpop.permute.xlu0 %566
      %576 = vst.msk [vmem:[#allocation2 + $0x4] sm:$0xf] %vm395, %v553
      %577 = vst.msk [vmem:[#allocation2 + $0x3c] sm:$0xf] %vm395, %v555
      %578 = vst.msk [vmem:[#allocation2 + $0x74] sm:$0xf] %vm395, %v557
      %579 = vst.msk [vmem:[#allocation2 + $0xac] sm:$0xf] %vm395, %v559
      %580 = vst.msk [vmem:[#allocation2 + $0xe4] sm:$0xf] %vm395, %v561
      %581 = vst.msk [vmem:[#allocation2 + $0x11c] sm:$0xf] %vm395, %v563
      %582 = vst.msk [vmem:[#allocation2 + $0x154] sm:$0xf] %vm395, %v565
      %583 = vst.msk [vmem:[#allocation2 + $0x18c] sm:$0xf] %vm395, %v567
      %v584 = vld [vmem:[%s487 + $0x4] sm:$0xc]
      %v585 = vld [vmem:[%s487 + $0x8] sm:$0x3]
      %v586 = vld [vmem:[%s487 + $0x14] sm:$0xc]
      %v587 = vld [vmem:[%s487 + $0x18] sm:$0x3]
      %v588 = vld [vmem:[%s487 + $0x24] sm:$0xc]
      %v589 = vld [vmem:[%s487 + $0x28] sm:$0x3]
      %v590 = vld [vmem:[%s487 + $0x34] sm:$0xc]
      %v591 = vld [vmem:[%s487 + $0x38] sm:$0x3]
      %v592 = vld [vmem:[%s487 + $0x44] sm:$0xc]
      %v593 = vld [vmem:[%s487 + $0x48] sm:$0x3]
      %v594 = vld [vmem:[%s487 + $0x54] sm:$0xc]
      %v595 = vld [vmem:[%s487 + $0x58] sm:$0x3]
      %v596 = vld [vmem:[%s487 + $0x64] sm:$0xc]
      %v597 = vld [vmem:[%s487 + $0x68] sm:$0x3]
      %v598 = vld [vmem:[%s487 + $0x74] sm:$0xc]
      %v599 = vld [vmem:[%s487 + $0x78] sm:$0x3]
      %v616 = vrot.slane %v584, 6
      %v617 = vrot.slane %v616, 4
      %v618 = vrot.slane %v585, 6
      %v619 = vsel %vm338, %v617, %v618
      %v620 = vrot.slane %v586, 6
      %v621 = vrot.slane %v620, 4
      %v622 = vrot.slane %v587, 6
      %v623 = vsel %vm338, %v621, %v622
      %v624 = vrot.slane %v588, 6
      %v625 = vrot.slane %v624, 4
      %v626 = vrot.slane %v589, 6
      %v627 = vsel %vm338, %v625, %v626
      %v628 = vrot.slane %v590, 6
      %v629 = vrot.slane %v628, 4
      %v630 = vrot.slane %v591, 6
      %v631 = vsel %vm338, %v629, %v630
      %v632 = vrot.slane %v592, 6
      %v633 = vrot.slane %v632, 4
      %v634 = vrot.slane %v593, 6
      %v635 = vsel %vm338, %v633, %v634
      %v636 = vrot.slane %v594, 6
      %v637 = vrot.slane %v636, 4
      %v638 = vrot.slane %v595, 6
      %v639 = vsel %vm338, %v637, %v638
      %v640 = vrot.slane %v596, 6
      %v641 = vrot.slane %v640, 4
      %v642 = vrot.slane %v597, 6
      %v643 = vsel %vm338, %v641, %v642
      %v644 = vrot.slane %v598, 6
      %v645 = vrot.slane %v644, 4
      %v646 = vrot.slane %v599, 6
      %v647 = vsel %vm338, %v645, %v646
      %656 = vst.msk [vmem:[#allocation2 + $0x8] sm:$0xf] %vm295, %v619
      %657 = vst.msk [vmem:[#allocation2 + $0x40] sm:$0xf] %vm295, %v623
      %658 = vst.msk [vmem:[#allocation2 + $0x78] sm:$0xf] %vm295, %v627
      %659 = vst.msk [vmem:[#allocation2 + $0xb0] sm:$0xf] %vm295, %v631
      %660 = vst.msk [vmem:[#allocation2 + $0xe8] sm:$0xf] %vm295, %v635
      %661 = vst.msk [vmem:[#allocation2 + $0x120] sm:$0xf] %vm295, %v639
      %662 = vst.msk [vmem:[#allocation2 + $0x158] sm:$0xf] %vm295, %v643
      %663 = vst.msk [vmem:[#allocation2 + $0x190] sm:$0xf] %vm295, %v647
      %v664 = vld [vmem:[%s487 + $0x8] sm:$0xe]
      %v665 = vld [vmem:[%s487 + $0xc] sm:$0x1]
      %v666 = vld [vmem:[%s487 + $0x18] sm:$0xe]
      %v667 = vld [vmem:[%s487 + $0x1c] sm:$0x1]
      %v668 = vld [vmem:[%s487 + $0x28] sm:$0xe]
      %v669 = vld [vmem:[%s487 + $0x2c] sm:$0x1]
      %v670 = vld [vmem:[%s487 + $0x38] sm:$0xe]
      %v671 = vld [vmem:[%s487 + $0x3c] sm:$0x1]
      %v672 = vld [vmem:[%s487 + $0x48] sm:$0xe]
      %v673 = vld [vmem:[%s487 + $0x4c] sm:$0x1]
      %v674 = vld [vmem:[%s487 + $0x58] sm:$0xe]
      %v675 = vld [vmem:[%s487 + $0x5c] sm:$0x1]
      %v676 = vld [vmem:[%s487 + $0x68] sm:$0xe]
      %v677 = vld [vmem:[%s487 + $0x6c] sm:$0x1]
      %v678 = vld [vmem:[%s487 + $0x78] sm:$0xe]
      %v679 = vld [vmem:[%s487 + $0x7c] sm:$0x1]
      %v696 = vrot.slane %v664, 5
      %v697 = vrot.slane %v696, 4
      %v698 = vrot.slane %v665, 5
      %v699 = vsel %vm438, %v697, %v698
      %v700 = vrot.slane %v666, 5
      %v701 = vrot.slane %v700, 4
      %v702 = vrot.slane %v667, 5
      %v703 = vsel %vm438, %v701, %v702
      %v704 = vrot.slane %v668, 5
      %v705 = vrot.slane %v704, 4
      %v706 = vrot.slane %v669, 5
      %v707 = vsel %vm438, %v705, %v706
      %v708 = vrot.slane %v670, 5
      %v709 = vrot.slane %v708, 4
      %v710 = vrot.slane %v671, 5
      %v711 = vsel %vm438, %v709, %v710
      %v712 = vrot.slane %v672, 5
      %v713 = vrot.slane %v712, 4
      %v714 = vrot.slane %v673, 5
      %v715 = vsel %vm438, %v713, %v714
      %v716 = vrot.slane %v674, 5
      %v717 = vrot.slane %v716, 4
      %v718 = vrot.slane %v675, 5
      %v719 = vsel %vm438, %v717, %v718
      %v720 = vrot.slane %v676, 5
      %v721 = vrot.slane %v720, 4
      %v722 = vrot.slane %v677, 5
      %v723 = vsel %vm438, %v721, %v722
      %v724 = vrot.slane %v678, 5
      %v725 = vrot.slane %v724, 4
      %v726 = vrot.slane %v679, 5
      %v727 = vsel %vm438, %v725, %v726
      %728 = vrot.lane.b32.xlu0 %v699, 64
      %v729 = vpop.permute.xlu0 %728
      %730 = vrot.lane.b32.xlu0 %v703, 64
      %v731 = vpop.permute.xlu0 %730
      %732 = vrot.lane.b32.xlu0 %v707, 64
      %v733 = vpop.permute.xlu0 %732
      %734 = vrot.lane.b32.xlu0 %v711, 64
      %v735 = vpop.permute.xlu0 %734
      %736 = vrot.lane.b32.xlu0 %v715, 64
      %v737 = vpop.permute.xlu0 %736
      %738 = vrot.lane.b32.xlu0 %v719, 64
      %v739 = vpop.permute.xlu0 %738
      %740 = vrot.lane.b32.xlu0 %v723, 64
      %v741 = vpop.permute.xlu0 %740
      %742 = vrot.lane.b32.xlu0 %v727, 64
      %v743 = vpop.permute.xlu0 %742
      %752 = vst.msk [vmem:[#allocation2 + $0x8] sm:$0xf] %vm395, %v729
      %753 = vst.msk [vmem:[#allocation2 + $0x40] sm:$0xf] %vm395, %v731
      %754 = vst.msk [vmem:[#allocation2 + $0x78] sm:$0xf] %vm395, %v733
      %755 = vst.msk [vmem:[#allocation2 + $0xb0] sm:$0xf] %vm395, %v735
      %756 = vst.msk [vmem:[#allocation2 + $0xe8] sm:$0xf] %vm395, %v737
      %757 = vst.msk [vmem:[#allocation2 + $0x120] sm:$0xf] %vm395, %v739
      %758 = vst.msk [vmem:[#allocation2 + $0x158] sm:$0xf] %vm395, %v741
      %759 = vst.msk [vmem:[#allocation2 + $0x190] sm:$0xf] %vm395, %v743
      %s760 = scalar_lea.vmem %s207, 288
      %v761 = vld [vmem:[%s760] sm:$0x8]
      %v762 = vld [vmem:[%s760 + $0x4] sm:$0x7]
      %v763 = vld [vmem:[%s760 + $0x10] sm:$0x8]
      %v764 = vld [vmem:[%s760 + $0x14] sm:$0x7]
      %v765 = vld [vmem:[%s760 + $0x20] sm:$0x8]
      %v766 = vld [vmem:[%s760 + $0x24] sm:$0x7]
      %v767 = vld [vmem:[%s760 + $0x30] sm:$0x8]
      %v768 = vld [vmem:[%s760 + $0x34] sm:$0x7]
      %v769 = vld [vmem:[%s760 + $0x40] sm:$0x8]
      %v770 = vld [vmem:[%s760 + $0x44] sm:$0x7]
      %v771 = vld [vmem:[%s760 + $0x50] sm:$0x8]
      %v772 = vld [vmem:[%s760 + $0x54] sm:$0x7]
      %v773 = vld [vmem:[%s760 + $0x60] sm:$0x8]
      %v774 = vld [vmem:[%s760 + $0x64] sm:$0x7]
      %v775 = vld [vmem:[%s760 + $0x70] sm:$0x8]
      %v776 = vld [vmem:[%s760 + $0x74] sm:$0x7]
      %v793 = vrot.slane %v761, 7
      %v794 = vrot.slane %v793, 4
      %v795 = vrot.slane %v762, 7
      %v796 = vsel %vm254, %v794, %v795
      %v797 = vrot.slane %v763, 7
      %v798 = vrot.slane %v797, 4
      %v799 = vrot.slane %v764, 7
      %v800 = vsel %vm254, %v798, %v799
      %v801 = vrot.slane %v765, 7
      %v802 = vrot.slane %v801, 4
      %v803 = vrot.slane %v766, 7
      %v804 = vsel %vm254, %v802, %v803
      %v805 = vrot.slane %v767, 7
      %v806 = vrot.slane %v805, 4
      %v807 = vrot.slane %v768, 7
      %v808 = vsel %vm254, %v806, %v807
      %v809 = vrot.slane %v769, 7
      %v810 = vrot.slane %v809, 4
      %v811 = vrot.slane %v770, 7
      %v812 = vsel %vm254, %v810, %v811
      %v813 = vrot.slane %v771, 7
      %v814 = vrot.slane %v813, 4
      %v815 = vrot.slane %v772, 7
      %v816 = vsel %vm254, %v814, %v815
      %v817 = vrot.slane %v773, 7
      %v818 = vrot.slane %v817, 4
      %v819 = vrot.slane %v774, 7
      %v820 = vsel %vm254, %v818, %v819
      %v821 = vrot.slane %v775, 7
      %v822 = vrot.slane %v821, 4
      %v823 = vrot.slane %v776, 7
      %v824 = vsel %vm254, %v822, %v823
      %833 = vst.msk [vmem:[#allocation2 + $0xc] sm:$0xf] %vm295, %v796
      %834 = vst.msk [vmem:[#allocation2 + $0x44] sm:$0xf] %vm295, %v800
      %835 = vst.msk [vmem:[#allocation2 + $0x7c] sm:$0xf] %vm295, %v804
      %836 = vst.msk [vmem:[#allocation2 + $0xb4] sm:$0xf] %vm295, %v808
      %837 = vst.msk [vmem:[#allocation2 + $0xec] sm:$0xf] %vm295, %v812
      %838 = vst.msk [vmem:[#allocation2 + $0x124] sm:$0xf] %vm295, %v816
      %839 = vst.msk [vmem:[#allocation2 + $0x15c] sm:$0xf] %vm295, %v820
      %840 = vst.msk [vmem:[#allocation2 + $0x194] sm:$0xf] %vm295, %v824
      %v841 = vld [vmem:[%s760 + $0x4] sm:$0xc]
      %v842 = vld [vmem:[%s760 + $0x8] sm:$0x3]
      %v843 = vld [vmem:[%s760 + $0x14] sm:$0xc]
      %v844 = vld [vmem:[%s760 + $0x18] sm:$0x3]
      %v845 = vld [vmem:[%s760 + $0x24] sm:$0xc]
      %v846 = vld [vmem:[%s760 + $0x28] sm:$0x3]
      %v847 = vld [vmem:[%s760 + $0x34] sm:$0xc]
      %v848 = vld [vmem:[%s760 + $0x38] sm:$0x3]
      %v849 = vld [vmem:[%s760 + $0x44] sm:$0xc]
      %v850 = vld [vmem:[%s760 + $0x48] sm:$0x3]
      %v851 = vld [vmem:[%s760 + $0x54] sm:$0xc]
      %v852 = vld [vmem:[%s760 + $0x58] sm:$0x3]
      %v853 = vld [vmem:[%s760 + $0x64] sm:$0xc]
      %v854 = vld [vmem:[%s760 + $0x68] sm:$0x3]
      %v855 = vld [vmem:[%s760 + $0x74] sm:$0xc]
      %v856 = vld [vmem:[%s760 + $0x78] sm:$0x3]
      %v873 = vrot.slane %v841, 6
      %v874 = vrot.slane %v873, 4
      %v875 = vrot.slane %v842, 6
      %v876 = vsel %vm338, %v874, %v875
      %v877 = vrot.slane %v843, 6
      %v878 = vrot.slane %v877, 4
      %v879 = vrot.slane %v844, 6
      %v880 = vsel %vm338, %v878, %v879
      %v881 = vrot.slane %v845, 6
      %v882 = vrot.slane %v881, 4
      %v883 = vrot.slane %v846, 6
      %v884 = vsel %vm338, %v882, %v883
      %v885 = vrot.slane %v847, 6
      %v886 = vrot.slane %v885, 4
      %v887 = vrot.slane %v848, 6
      %v888 = vsel %vm338, %v886, %v887
      %v889 = vrot.slane %v849, 6
      %v890 = vrot.slane %v889, 4
      %v891 = vrot.slane %v850, 6
      %v892 = vsel %vm338, %v890, %v891
      %v893 = vrot.slane %v851, 6
      %v894 = vrot.slane %v893, 4
      %v895 = vrot.slane %v852, 6
      %v896 = vsel %vm338, %v894, %v895
      %v897 = vrot.slane %v853, 6
      %v898 = vrot.slane %v897, 4
      %v899 = vrot.slane %v854, 6
      %v900 = vsel %vm338, %v898, %v899
      %v901 = vrot.slane %v855, 6
      %v902 = vrot.slane %v901, 4
      %v903 = vrot.slane %v856, 6
      %v904 = vsel %vm338, %v902, %v903
      %905 = vrot.lane.b32.xlu0 %v876, 64
      %v906 = vpop.permute.xlu0 %905
      %907 = vrot.lane.b32.xlu0 %v880, 64
      %v908 = vpop.permute.xlu0 %907
      %909 = vrot.lane.b32.xlu0 %v884, 64
      %v910 = vpop.permute.xlu0 %909
      %911 = vrot.lane.b32.xlu0 %v888, 64
      %v912 = vpop.permute.xlu0 %911
      %913 = vrot.lane.b32.xlu0 %v892, 64
      %v914 = vpop.permute.xlu0 %913
      %915 = vrot.lane.b32.xlu0 %v896, 64
      %v916 = vpop.permute.xlu0 %915
      %917 = vrot.lane.b32.xlu0 %v900, 64
      %v918 = vpop.permute.xlu0 %917
      %919 = vrot.lane.b32.xlu0 %v904, 64
      %v920 = vpop.permute.xlu0 %919
      %929 = vst.msk [vmem:[#allocation2 + $0xc] sm:$0xf] %vm395, %v906
      %930 = vst.msk [vmem:[#allocation2 + $0x44] sm:$0xf] %vm395, %v908
      %931 = vst.msk [vmem:[#allocation2 + $0x7c] sm:$0xf] %vm395, %v910
      %932 = vst.msk [vmem:[#allocation2 + $0xb4] sm:$0xf] %vm395, %v912
      %933 = vst.msk [vmem:[#allocation2 + $0xec] sm:$0xf] %vm395, %v914
      %934 = vst.msk [vmem:[#allocation2 + $0x124] sm:$0xf] %vm395, %v916
      %935 = vst.msk [vmem:[#allocation2 + $0x15c] sm:$0xf] %vm395, %v918
      %936 = vst.msk [vmem:[#allocation2 + $0x194] sm:$0xf] %vm395, %v920
      %v937 = vld [vmem:[%s760 + $0x8] sm:$0xe]
      %v938 = vld [vmem:[%s760 + $0xc] sm:$0x1]
      %v939 = vld [vmem:[%s760 + $0x18] sm:$0xe]
      %v940 = vld [vmem:[%s760 + $0x1c] sm:$0x1]
      %v941 = vld [vmem:[%s760 + $0x28] sm:$0xe]
      %v942 = vld [vmem:[%s760 + $0x2c] sm:$0x1]
      %v943 = vld [vmem:[%s760 + $0x38] sm:$0xe]
      %v944 = vld [vmem:[%s760 + $0x3c] sm:$0x1]
      %v945 = vld [vmem:[%s760 + $0x48] sm:$0xe]
      %v946 = vld [vmem:[%s760 + $0x4c] sm:$0x1]
      %v947 = vld [vmem:[%s760 + $0x58] sm:$0xe]
      %v948 = vld [vmem:[%s760 + $0x5c] sm:$0x1]
      %v949 = vld [vmem:[%s760 + $0x68] sm:$0xe]
      %v950 = vld [vmem:[%s760 + $0x6c] sm:$0x1]
      %v951 = vld [vmem:[%s760 + $0x78] sm:$0xe]
      %v952 = vld [vmem:[%s760 + $0x7c] sm:$0x1]
      %v969 = vrot.slane %v937, 5
      %v970 = vrot.slane %v969, 4
      %v971 = vrot.slane %v938, 5
      %v972 = vsel %vm438, %v970, %v971
      %v973 = vrot.slane %v939, 5
      %v974 = vrot.slane %v973, 4
      %v975 = vrot.slane %v940, 5
      %v976 = vsel %vm438, %v974, %v975
      %v977 = vrot.slane %v941, 5
      %v978 = vrot.slane %v977, 4
      %v979 = vrot.slane %v942, 5
      %v980 = vsel %vm438, %v978, %v979
      %v981 = vrot.slane %v943, 5
      %v982 = vrot.slane %v981, 4
      %v983 = vrot.slane %v944, 5
      %v984 = vsel %vm438, %v982, %v983
      %v985 = vrot.slane %v945, 5
      %v986 = vrot.slane %v985, 4
      %v987 = vrot.slane %v946, 5
      %v988 = vsel %vm438, %v986, %v987
      %v989 = vrot.slane %v947, 5
      %v990 = vrot.slane %v989, 4
      %v991 = vrot.slane %v948, 5
      %v992 = vsel %vm438, %v990, %v991
      %v993 = vrot.slane %v949, 5
      %v994 = vrot.slane %v993, 4
      %v995 = vrot.slane %v950, 5
      %v996 = vsel %vm438, %v994, %v995
      %v997 = vrot.slane %v951, 5
      %v998 = vrot.slane %v997, 4
      %v999 = vrot.slane %v952, 5
      %v1000 = vsel %vm438, %v998, %v999
      %1009 = vst.msk [vmem:[#allocation2 + $0x10] sm:$0xf] %vm295, %v972
      %1010 = vst.msk [vmem:[#allocation2 + $0x48] sm:$0xf] %vm295, %v976
      %1011 = vst.msk [vmem:[#allocation2 + $0x80] sm:$0xf] %vm295, %v980
      %1012 = vst.msk [vmem:[#allocation2 + $0xb8] sm:$0xf] %vm295, %v984
      %1013 = vst.msk [vmem:[#allocation2 + $0xf0] sm:$0xf] %vm295, %v988
      %1014 = vst.msk [vmem:[#allocation2 + $0x128] sm:$0xf] %vm295, %v992
      %1015 = vst.msk [vmem:[#allocation2 + $0x160] sm:$0xf] %vm295, %v996
      %1016 = vst.msk [vmem:[#allocation2 + $0x198] sm:$0xf] %vm295, %v1000
      %v1017 = vld [vmem:[%s207] sm:$0xf]
      %v1018 = vld [vmem:[%s207 + $0x10] sm:$0xf]
      %v1019 = vld [vmem:[%s207 + $0x20] sm:$0xf]
      %v1020 = vld [vmem:[%s207 + $0x30] sm:$0xf]
      %v1021 = vld [vmem:[%s207 + $0x40] sm:$0xf]
      %v1022 = vld [vmem:[%s207 + $0x50] sm:$0xf]
      %v1023 = vld [vmem:[%s207 + $0x60] sm:$0xf]
      %v1024 = vld [vmem:[%s207 + $0x70] sm:$0xf]
      %1033 = vrot.lane.b32.xlu0 %v1017, 64
      %v1034 = vpop.permute.xlu0 %1033
      %1035 = vrot.lane.b32.xlu0 %v1018, 64
      %v1036 = vpop.permute.xlu0 %1035
      %1037 = vrot.lane.b32.xlu0 %v1019, 64
      %v1038 = vpop.permute.xlu0 %1037
      %1039 = vrot.lane.b32.xlu0 %v1020, 64
      %v1040 = vpop.permute.xlu0 %1039
      %1041 = vrot.lane.b32.xlu0 %v1021, 64
      %v1042 = vpop.permute.xlu0 %1041
      %1043 = vrot.lane.b32.xlu0 %v1022, 64
      %v1044 = vpop.permute.xlu0 %1043
      %1045 = vrot.lane.b32.xlu0 %v1023, 64
      %v1046 = vpop.permute.xlu0 %1045
      %1047 = vrot.lane.b32.xlu0 %v1024, 64
      %v1048 = vpop.permute.xlu0 %1047
      %1057 = vst.msk [vmem:[#allocation2 + $0x10] sm:$0xf] %vm395, %v1034
      %1058 = vst.msk [vmem:[#allocation2 + $0x48] sm:$0xf] %vm395, %v1036
      %1059 = vst.msk [vmem:[#allocation2 + $0x80] sm:$0xf] %vm395, %v1038
      %1060 = vst.msk [vmem:[#allocation2 + $0xb8] sm:$0xf] %vm395, %v1040
      %1061 = vst.msk [vmem:[#allocation2 + $0xf0] sm:$0xf] %vm395, %v1042
      %1062 = vst.msk [vmem:[#allocation2 + $0x128] sm:$0xf] %vm395, %v1044
      %1063 = vst.msk [vmem:[#allocation2 + $0x160] sm:$0xf] %vm395, %v1046
      %1064 = vst.msk [vmem:[#allocation2 + $0x198] sm:$0xf] %vm395, %v1048
      %v1065 = vld [vmem:[%s207 + $0x4] sm:$0xc]
      %v1066 = vld [vmem:[%s207 + $0x8] sm:$0x3]
      %v1067 = vld [vmem:[%s207 + $0x14] sm:$0xc]
      %v1068 = vld [vmem:[%s207 + $0x18] sm:$0x3]
      %v1069 = vld [vmem:[%s207 + $0x24] sm:$0xc]
      %v1070 = vld [vmem:[%s207 + $0x28] sm:$0x3]
      %v1071 = vld [vmem:[%s207 + $0x34] sm:$0xc]
      %v1072 = vld [vmem:[%s207 + $0x38] sm:$0x3]
      %v1073 = vld [vmem:[%s207 + $0x44] sm:$0xc]
      %v1074 = vld [vmem:[%s207 + $0x48] sm:$0x3]
      %v1075 = vld [vmem:[%s207 + $0x54] sm:$0xc]
      %v1076 = vld [vmem:[%s207 + $0x58] sm:$0x3]
      %v1077 = vld [vmem:[%s207 + $0x64] sm:$0xc]
      %v1078 = vld [vmem:[%s207 + $0x68] sm:$0x3]
      %v1079 = vld [vmem:[%s207 + $0x74] sm:$0xc]
      %v1080 = vld [vmem:[%s207 + $0x78] sm:$0x3]
      %v1097 = vrot.slane %v1065, 6
      %v1098 = vrot.slane %v1097, 4
      %v1099 = vrot.slane %v1066, 6
      %v1100 = vsel %vm338, %v1098, %v1099
      %v1101 = vrot.slane %v1067, 6
      %v1102 = vrot.slane %v1101, 4
      %v1103 = vrot.slane %v1068, 6
      %v1104 = vsel %vm338, %v1102, %v1103
      %v1105 = vrot.slane %v1069, 6
      %v1106 = vrot.slane %v1105, 4
      %v1107 = vrot.slane %v1070, 6
      %v1108 = vsel %vm338, %v1106, %v1107
      %v1109 = vrot.slane %v1071, 6
      %v1110 = vrot.slane %v1109, 4
      %v1111 = vrot.slane %v1072, 6
      %v1112 = vsel %vm338, %v1110, %v1111
      %v1113 = vrot.slane %v1073, 6
      %v1114 = vrot.slane %v1113, 4
      %v1115 = vrot.slane %v1074, 6
      %v1116 = vsel %vm338, %v1114, %v1115
      %v1117 = vrot.slane %v1075, 6
      %v1118 = vrot.slane %v1117, 4
      %v1119 = vrot.slane %v1076, 6
      %v1120 = vsel %vm338, %v1118, %v1119
      %v1121 = vrot.slane %v1077, 6
      %v1122 = vrot.slane %v1121, 4
      %v1123 = vrot.slane %v1078, 6
      %v1124 = vsel %vm338, %v1122, %v1123
      %v1125 = vrot.slane %v1079, 6
      %v1126 = vrot.slane %v1125, 4
      %v1127 = vrot.slane %v1080, 6
      %v1128 = vsel %vm338, %v1126, %v1127
      %1137 = vst.msk [vmem:[#allocation2 + $0x14] sm:$0xf] %vm295, %v1100
      %1138 = vst.msk [vmem:[#allocation2 + $0x4c] sm:$0xf] %vm295, %v1104
      %1139 = vst.msk [vmem:[#allocation2 + $0x84] sm:$0xf] %vm295, %v1108
      %1140 = vst.msk [vmem:[#allocation2 + $0xbc] sm:$0xf] %vm295, %v1112
      %1141 = vst.msk [vmem:[#allocation2 + $0xf4] sm:$0xf] %vm295, %v1116
      %1142 = vst.msk [vmem:[#allocation2 + $0x12c] sm:$0xf] %vm295, %v1120
      %1143 = vst.msk [vmem:[#allocation2 + $0x164] sm:$0xf] %vm295, %v1124
      %1144 = vst.msk [vmem:[#allocation2 + $0x19c] sm:$0xf] %vm295, %v1128
      %v1145 = vld [vmem:[%s207 + $0xc] sm:$0xf]
      %v1146 = vld [vmem:[%s207 + $0x1c] sm:$0xf]
      %v1147 = vld [vmem:[%s207 + $0x2c] sm:$0xf]
      %v1148 = vld [vmem:[%s207 + $0x3c] sm:$0xf]
      %v1149 = vld [vmem:[%s207 + $0x4c] sm:$0xf]
      %v1150 = vld [vmem:[%s207 + $0x5c] sm:$0xf]
      %v1151 = vld [vmem:[%s207 + $0x6c] sm:$0xf]
      %v1152 = vld [vmem:[%s207 + $0x7c] sm:$0xf]
      %1161 = vrot.lane.b32.xlu0 %v1145, 64
      %v1162 = vpop.permute.xlu0 %1161
      %1163 = vrot.lane.b32.xlu0 %v1146, 64
      %v1164 = vpop.permute.xlu0 %1163
      %1165 = vrot.lane.b32.xlu0 %v1147, 64
      %v1166 = vpop.permute.xlu0 %1165
      %1167 = vrot.lane.b32.xlu0 %v1148, 64
      %v1168 = vpop.permute.xlu0 %1167
      %1169 = vrot.lane.b32.xlu0 %v1149, 64
      %v1170 = vpop.permute.xlu0 %1169
      %1171 = vrot.lane.b32.xlu0 %v1150, 64
      %v1172 = vpop.permute.xlu0 %1171
      %1173 = vrot.lane.b32.xlu0 %v1151, 64
      %v1174 = vpop.permute.xlu0 %1173
      %1175 = vrot.lane.b32.xlu0 %v1152, 64
      %v1176 = vpop.permute.xlu0 %1175
      %1185 = vst.msk [vmem:[#allocation2 + $0x14] sm:$0xf] %vm395, %v1162
      %1186 = vst.msk [vmem:[#allocation2 + $0x4c] sm:$0xf] %vm395, %v1164
      %1187 = vst.msk [vmem:[#allocation2 + $0x84] sm:$0xf] %vm395, %v1166
      %1188 = vst.msk [vmem:[#allocation2 + $0xbc] sm:$0xf] %vm395, %v1168
      %1189 = vst.msk [vmem:[#allocation2 + $0xf4] sm:$0xf] %vm395, %v1170
      %1190 = vst.msk [vmem:[#allocation2 + $0x12c] sm:$0xf] %vm395, %v1172
      %1191 = vst.msk [vmem:[#allocation2 + $0x164] sm:$0xf] %vm395, %v1174
      %1192 = vst.msk [vmem:[#allocation2 + $0x19c] sm:$0xf] %vm395, %v1176
      %v1193 = vld [vmem:[%s487] sm:$0xf]
      %v1194 = vld [vmem:[%s487 + $0x10] sm:$0xf]
      %v1195 = vld [vmem:[%s487 + $0x20] sm:$0xf]
      %v1196 = vld [vmem:[%s487 + $0x30] sm:$0xf]
      %v1197 = vld [vmem:[%s487 + $0x40] sm:$0xf]
      %v1198 = vld [vmem:[%s487 + $0x50] sm:$0xf]
      %v1199 = vld [vmem:[%s487 + $0x60] sm:$0xf]
      %v1200 = vld [vmem:[%s487 + $0x70] sm:$0xf]
      %1201 = vst.msk [vmem:[#allocation2 + $0x18] sm:$0xf] %vm295, %v1193
      %1202 = vst.msk [vmem:[#allocation2 + $0x50] sm:$0xf] %vm295, %v1194
      %1203 = vst.msk [vmem:[#allocation2 + $0x88] sm:$0xf] %vm295, %v1195
      %1204 = vst.msk [vmem:[#allocation2 + $0xc0] sm:$0xf] %vm295, %v1196
      %1205 = vst.msk [vmem:[#allocation2 + $0xf8] sm:$0xf] %vm295, %v1197
      %1206 = vst.msk [vmem:[#allocation2 + $0x130] sm:$0xf] %vm295, %v1198
      %1207 = vst.msk [vmem:[#allocation2 + $0x168] sm:$0xf] %vm295, %v1199
      %1208 = vst.msk [vmem:[#allocation2 + $0x1a0] sm:$0xf] %vm295, %v1200
      %v1209 = vld [vmem:[%s487 + $0x4] sm:$0xc]
      %v1210 = vld [vmem:[%s487 + $0x8] sm:$0x3]
      %v1211 = vld [vmem:[%s487 + $0x14] sm:$0xc]
      %v1212 = vld [vmem:[%s487 + $0x18] sm:$0x3]
      %v1213 = vld [vmem:[%s487 + $0x24] sm:$0xc]
      %v1214 = vld [vmem:[%s487 + $0x28] sm:$0x3]
      %v1215 = vld [vmem:[%s487 + $0x34] sm:$0xc]
      %v1216 = vld [vmem:[%s487 + $0x38] sm:$0x3]
      %v1217 = vld [vmem:[%s487 + $0x44] sm:$0xc]
      %v1218 = vld [vmem:[%s487 + $0x48] sm:$0x3]
      %v1219 = vld [vmem:[%s487 + $0x54] sm:$0xc]
      %v1220 = vld [vmem:[%s487 + $0x58] sm:$0x3]
      %v1221 = vld [vmem:[%s487 + $0x64] sm:$0xc]
      %v1222 = vld [vmem:[%s487 + $0x68] sm:$0x3]
      %v1223 = vld [vmem:[%s487 + $0x74] sm:$0xc]
      %v1224 = vld [vmem:[%s487 + $0x78] sm:$0x3]
      %v1241 = vrot.slane %v1209, 6
      %v1242 = vrot.slane %v1241, 4
      %v1243 = vrot.slane %v1210, 6
      %v1244 = vsel %vm338, %v1242, %v1243
      %v1245 = vrot.slane %v1211, 6
      %v1246 = vrot.slane %v1245, 4
      %v1247 = vrot.slane %v1212, 6
      %v1248 = vsel %vm338, %v1246, %v1247
      %v1249 = vrot.slane %v1213, 6
      %v1250 = vrot.slane %v1249, 4
      %v1251 = vrot.slane %v1214, 6
      %v1252 = vsel %vm338, %v1250, %v1251
      %v1253 = vrot.slane %v1215, 6
      %v1254 = vrot.slane %v1253, 4
      %v1255 = vrot.slane %v1216, 6
      %v1256 = vsel %vm338, %v1254, %v1255
      %v1257 = vrot.slane %v1217, 6
      %v1258 = vrot.slane %v1257, 4
      %v1259 = vrot.slane %v1218, 6
      %v1260 = vsel %vm338, %v1258, %v1259
      %v1261 = vrot.slane %v1219, 6
      %v1262 = vrot.slane %v1261, 4
      %v1263 = vrot.slane %v1220, 6
      %v1264 = vsel %vm338, %v1262, %v1263
      %v1265 = vrot.slane %v1221, 6
      %v1266 = vrot.slane %v1265, 4
      %v1267 = vrot.slane %v1222, 6
      %v1268 = vsel %vm338, %v1266, %v1267
      %v1269 = vrot.slane %v1223, 6
      %v1270 = vrot.slane %v1269, 4
      %v1271 = vrot.slane %v1224, 6
      %v1272 = vsel %vm338, %v1270, %v1271
      %1273 = vrot.lane.b32.xlu0 %v1244, 64
      %v1274 = vpop.permute.xlu0 %1273
      %1275 = vrot.lane.b32.xlu0 %v1248, 64
      %v1276 = vpop.permute.xlu0 %1275
      %1277 = vrot.lane.b32.xlu0 %v1252, 64
      %v1278 = vpop.permute.xlu0 %1277
      %1279 = vrot.lane.b32.xlu0 %v1256, 64
      %v1280 = vpop.permute.xlu0 %1279
      %1281 = vrot.lane.b32.xlu0 %v1260, 64
      %v1282 = vpop.permute.xlu0 %1281
      %1283 = vrot.lane.b32.xlu0 %v1264, 64
      %v1284 = vpop.permute.xlu0 %1283
      %1285 = vrot.lane.b32.xlu0 %v1268, 64
      %v1286 = vpop.permute.xlu0 %1285
      %1287 = vrot.lane.b32.xlu0 %v1272, 64
      %v1288 = vpop.permute.xlu0 %1287
      %1297 = vst.msk [vmem:[#allocation2 + $0x18] sm:$0xf] %vm395, %v1274
      %1298 = vst.msk [vmem:[#allocation2 + $0x50] sm:$0xf] %vm395, %v1276
      %1299 = vst.msk [vmem:[#allocation2 + $0x88] sm:$0xf] %vm395, %v1278
      %1300 = vst.msk [vmem:[#allocation2 + $0xc0] sm:$0xf] %vm395, %v1280
      %1301 = vst.msk [vmem:[#allocation2 + $0xf8] sm:$0xf] %vm395, %v1282
      %1302 = vst.msk [vmem:[#allocation2 + $0x130] sm:$0xf] %vm395, %v1284
      %1303 = vst.msk [vmem:[#allocation2 + $0x168] sm:$0xf] %vm395, %v1286
      %1304 = vst.msk [vmem:[#allocation2 + $0x1a0] sm:$0xf] %vm395, %v1288
      %v1305 = vld [vmem:[%s487 + $0xc] sm:$0xf]
      %v1306 = vld [vmem:[%s487 + $0x1c] sm:$0xf]
      %v1307 = vld [vmem:[%s487 + $0x2c] sm:$0xf]
      %v1308 = vld [vmem:[%s487 + $0x3c] sm:$0xf]
      %v1309 = vld [vmem:[%s487 + $0x4c] sm:$0xf]
      %v1310 = vld [vmem:[%s487 + $0x5c] sm:$0xf]
      %v1311 = vld [vmem:[%s487 + $0x6c] sm:$0xf]
      %v1312 = vld [vmem:[%s487 + $0x7c] sm:$0xf]
      %1313 = vst.msk [vmem:[#allocation2 + $0x1c] sm:$0xf] %vm295, %v1305
      %1314 = vst.msk [vmem:[#allocation2 + $0x54] sm:$0xf] %vm295, %v1306
      %1315 = vst.msk [vmem:[#allocation2 + $0x8c] sm:$0xf] %vm295, %v1307
      %1316 = vst.msk [vmem:[#allocation2 + $0xc4] sm:$0xf] %vm295, %v1308
      %1317 = vst.msk [vmem:[#allocation2 + $0xfc] sm:$0xf] %vm295, %v1309
      %1318 = vst.msk [vmem:[#allocation2 + $0x134] sm:$0xf] %vm295, %v1310
      %1319 = vst.msk [vmem:[#allocation2 + $0x16c] sm:$0xf] %vm295, %v1311
      %1320 = vst.msk [vmem:[#allocation2 + $0x1a4] sm:$0xf] %vm295, %v1312
      %s1321 = scalar_lea.vmem %s207, 384
      %v1322 = vld [vmem:[%s1321] sm:$0xf]
      %v1323 = vld [vmem:[%s1321 + $0x10] sm:$0xf]
      %v1324 = vld [vmem:[%s1321 + $0x20] sm:$0xf]
      %v1325 = vld [vmem:[%s1321 + $0x30] sm:$0xf]
      %v1326 = vld [vmem:[%s1321 + $0x40] sm:$0xf]
      %v1327 = vld [vmem:[%s1321 + $0x50] sm:$0xf]
      %v1328 = vld [vmem:[%s1321 + $0x60] sm:$0xf]
      %v1329 = vld [vmem:[%s1321 + $0x70] sm:$0xf]
      %1338 = vrot.lane.b32.xlu0 %v1322, 64
      %v1339 = vpop.permute.xlu0 %1338
      %1340 = vrot.lane.b32.xlu0 %v1323, 64
      %v1341 = vpop.permute.xlu0 %1340
      %1342 = vrot.lane.b32.xlu0 %v1324, 64
      %v1343 = vpop.permute.xlu0 %1342
      %1344 = vrot.lane.b32.xlu0 %v1325, 64
      %v1345 = vpop.permute.xlu0 %1344
      %1346 = vrot.lane.b32.xlu0 %v1326, 64
      %v1347 = vpop.permute.xlu0 %1346
      %1348 = vrot.lane.b32.xlu0 %v1327, 64
      %v1349 = vpop.permute.xlu0 %1348
      %1350 = vrot.lane.b32.xlu0 %v1328, 64
      %v1351 = vpop.permute.xlu0 %1350
      %1352 = vrot.lane.b32.xlu0 %v1329, 64
      %v1353 = vpop.permute.xlu0 %1352
      %1362 = vst.msk [vmem:[#allocation2 + $0x1c] sm:$0xf] %vm395, %v1339
      %1363 = vst.msk [vmem:[#allocation2 + $0x54] sm:$0xf] %vm395, %v1341
      %1364 = vst.msk [vmem:[#allocation2 + $0x8c] sm:$0xf] %vm395, %v1343
      %1365 = vst.msk [vmem:[#allocation2 + $0xc4] sm:$0xf] %vm395, %v1345
      %1366 = vst.msk [vmem:[#allocation2 + $0xfc] sm:$0xf] %vm395, %v1347
      %1367 = vst.msk [vmem:[#allocation2 + $0x134] sm:$0xf] %vm395, %v1349
      %1368 = vst.msk [vmem:[#allocation2 + $0x16c] sm:$0xf] %vm395, %v1351
      %1369 = vst.msk [vmem:[#allocation2 + $0x1a4] sm:$0xf] %vm395, %v1353
      %v1370 = vld [vmem:[%s1321 + $0x4] sm:$0xc]
      %v1371 = vld [vmem:[%s1321 + $0x8] sm:$0x3]
      %v1372 = vld [vmem:[%s1321 + $0x14] sm:$0xc]
      %v1373 = vld [vmem:[%s1321 + $0x18] sm:$0x3]
      %v1374 = vld [vmem:[%s1321 + $0x24] sm:$0xc]
      %v1375 = vld [vmem:[%s1321 + $0x28] sm:$0x3]
      %v1376 = vld [vmem:[%s1321 + $0x34] sm:$0xc]
      %v1377 = vld [vmem:[%s1321 + $0x38] sm:$0x3]
      %v1378 = vld [vmem:[%s1321 + $0x44] sm:$0xc]
      %v1379 = vld [vmem:[%s1321 + $0x48] sm:$0x3]
      %v1380 = vld [vmem:[%s1321 + $0x54] sm:$0xc]
      %v1381 = vld [vmem:[%s1321 + $0x58] sm:$0x3]
      %v1382 = vld [vmem:[%s1321 + $0x64] sm:$0xc]
      %v1383 = vld [vmem:[%s1321 + $0x68] sm:$0x3]
      %v1384 = vld [vmem:[%s1321 + $0x74] sm:$0xc]
      %v1385 = vld [vmem:[%s1321 + $0x78] sm:$0x3]
      %v1402 = vrot.slane %v1370, 6
      %v1403 = vrot.slane %v1402, 4
      %v1404 = vrot.slane %v1371, 6
      %v1405 = vsel %vm338, %v1403, %v1404
      %v1406 = vrot.slane %v1372, 6
      %v1407 = vrot.slane %v1406, 4
      %v1408 = vrot.slane %v1373, 6
      %v1409 = vsel %vm338, %v1407, %v1408
      %v1410 = vrot.slane %v1374, 6
      %v1411 = vrot.slane %v1410, 4
      %v1412 = vrot.slane %v1375, 6
      %v1413 = vsel %vm338, %v1411, %v1412
      %v1414 = vrot.slane %v1376, 6
      %v1415 = vrot.slane %v1414, 4
      %v1416 = vrot.slane %v1377, 6
      %v1417 = vsel %vm338, %v1415, %v1416
      %v1418 = vrot.slane %v1378, 6
      %v1419 = vrot.slane %v1418, 4
      %v1420 = vrot.slane %v1379, 6
      %v1421 = vsel %vm338, %v1419, %v1420
      %v1422 = vrot.slane %v1380, 6
      %v1423 = vrot.slane %v1422, 4
      %v1424 = vrot.slane %v1381, 6
      %v1425 = vsel %vm338, %v1423, %v1424
      %v1426 = vrot.slane %v1382, 6
      %v1427 = vrot.slane %v1426, 4
      %v1428 = vrot.slane %v1383, 6
      %v1429 = vsel %vm338, %v1427, %v1428
      %v1430 = vrot.slane %v1384, 6
      %v1431 = vrot.slane %v1430, 4
      %v1432 = vrot.slane %v1385, 6
      %v1433 = vsel %vm338, %v1431, %v1432
      %1442 = vst.msk [vmem:[#allocation2 + $0x20] sm:$0xf] %vm295, %v1405
      %1443 = vst.msk [vmem:[#allocation2 + $0x58] sm:$0xf] %vm295, %v1409
      %1444 = vst.msk [vmem:[#allocation2 + $0x90] sm:$0xf] %vm295, %v1413
      %1445 = vst.msk [vmem:[#allocation2 + $0xc8] sm:$0xf] %vm295, %v1417
      %1446 = vst.msk [vmem:[#allocation2 + $0x100] sm:$0xf] %vm295, %v1421
      %1447 = vst.msk [vmem:[#allocation2 + $0x138] sm:$0xf] %vm295, %v1425
      %1448 = vst.msk [vmem:[#allocation2 + $0x170] sm:$0xf] %vm295, %v1429
      %1449 = vst.msk [vmem:[#allocation2 + $0x1a8] sm:$0xf] %vm295, %v1433
      %v1450 = vld [vmem:[%s1321 + $0xc] sm:$0xf]
      %v1451 = vld [vmem:[%s1321 + $0x1c] sm:$0xf]
      %v1452 = vld [vmem:[%s1321 + $0x2c] sm:$0xf]
      %v1453 = vld [vmem:[%s1321 + $0x3c] sm:$0xf]
      %v1454 = vld [vmem:[%s1321 + $0x4c] sm:$0xf]
      %v1455 = vld [vmem:[%s1321 + $0x5c] sm:$0xf]
      %v1456 = vld [vmem:[%s1321 + $0x6c] sm:$0xf]
      %v1457 = vld [vmem:[%s1321 + $0x7c] sm:$0xf]
      %1466 = vrot.lane.b32.xlu0 %v1450, 64
      %v1467 = vpop.permute.xlu0 %1466
      %1468 = vrot.lane.b32.xlu0 %v1451, 64
      %v1469 = vpop.permute.xlu0 %1468
      %1470 = vrot.lane.b32.xlu0 %v1452, 64
      %v1471 = vpop.permute.xlu0 %1470
      %1472 = vrot.lane.b32.xlu0 %v1453, 64
      %v1473 = vpop.permute.xlu0 %1472
      %1474 = vrot.lane.b32.xlu0 %v1454, 64
      %v1475 = vpop.permute.xlu0 %1474
      %1476 = vrot.lane.b32.xlu0 %v1455, 64
      %v1477 = vpop.permute.xlu0 %1476
      %1478 = vrot.lane.b32.xlu0 %v1456, 64
      %v1479 = vpop.permute.xlu0 %1478
      %1480 = vrot.lane.b32.xlu0 %v1457, 64
      %v1481 = vpop.permute.xlu0 %1480
      %1490 = vst.msk [vmem:[#allocation2 + $0x20] sm:$0xf] %vm395, %v1467
      %1491 = vst.msk [vmem:[#allocation2 + $0x58] sm:$0xf] %vm395, %v1469
      %1492 = vst.msk [vmem:[#allocation2 + $0x90] sm:$0xf] %vm395, %v1471
      %1493 = vst.msk [vmem:[#allocation2 + $0xc8] sm:$0xf] %vm395, %v1473
      %1494 = vst.msk [vmem:[#allocation2 + $0x100] sm:$0xf] %vm395, %v1475
      %1495 = vst.msk [vmem:[#allocation2 + $0x138] sm:$0xf] %vm395, %v1477
      %1496 = vst.msk [vmem:[#allocation2 + $0x170] sm:$0xf] %vm395, %v1479
      %1497 = vst.msk [vmem:[#allocation2 + $0x1a8] sm:$0xf] %vm395, %v1481
      %s1498 = scalar_lea.vmem %s212, 96
      %v1499 = vld [vmem:[%s1498] sm:$0x8]
      %v1500 = vld [vmem:[%s1498 + $0x4] sm:$0x7]
      %v1501 = vld [vmem:[%s1498 + $0x10] sm:$0x8]
      %v1502 = vld [vmem:[%s1498 + $0x14] sm:$0x7]
      %v1503 = vld [vmem:[%s1498 + $0x20] sm:$0x8]
      %v1504 = vld [vmem:[%s1498 + $0x24] sm:$0x7]
      %v1505 = vld [vmem:[%s1498 + $0x30] sm:$0x8]
      %v1506 = vld [vmem:[%s1498 + $0x34] sm:$0x7]
      %v1507 = vld [vmem:[%s1498 + $0x40] sm:$0x8]
      %v1508 = vld [vmem:[%s1498 + $0x44] sm:$0x7]
      %v1509 = vld [vmem:[%s1498 + $0x50] sm:$0x8]
      %v1510 = vld [vmem:[%s1498 + $0x54] sm:$0x7]
      %v1511 = vld [vmem:[%s1498 + $0x60] sm:$0x8]
      %v1512 = vld [vmem:[%s1498 + $0x64] sm:$0x7]
      %v1513 = vld [vmem:[%s1498 + $0x70] sm:$0x8]
      %v1514 = vld [vmem:[%s1498 + $0x74] sm:$0x7]
      %v1531 = vrot.slane %v1499, 7
      %v1532 = vrot.slane %v1531, 4
      %v1533 = vrot.slane %v1500, 7
      %v1534 = vsel %vm254, %v1532, %v1533
      %v1535 = vrot.slane %v1501, 7
      %v1536 = vrot.slane %v1535, 4
      %v1537 = vrot.slane %v1502, 7
      %v1538 = vsel %vm254, %v1536, %v1537
      %v1539 = vrot.slane %v1503, 7
      %v1540 = vrot.slane %v1539, 4
      %v1541 = vrot.slane %v1504, 7
      %v1542 = vsel %vm254, %v1540, %v1541
      %v1543 = vrot.slane %v1505, 7
      %v1544 = vrot.slane %v1543, 4
      %v1545 = vrot.slane %v1506, 7
      %v1546 = vsel %vm254, %v1544, %v1545
      %v1547 = vrot.slane %v1507, 7
      %v1548 = vrot.slane %v1547, 4
      %v1549 = vrot.slane %v1508, 7
      %v1550 = vsel %vm254, %v1548, %v1549
      %v1551 = vrot.slane %v1509, 7
      %v1552 = vrot.slane %v1551, 4
      %v1553 = vrot.slane %v1510, 7
      %v1554 = vsel %vm254, %v1552, %v1553
      %v1555 = vrot.slane %v1511, 7
      %v1556 = vrot.slane %v1555, 4
      %v1557 = vrot.slane %v1512, 7
      %v1558 = vsel %vm254, %v1556, %v1557
      %v1559 = vrot.slane %v1513, 7
      %v1560 = vrot.slane %v1559, 4
      %v1561 = vrot.slane %v1514, 7
      %v1562 = vsel %vm254, %v1560, %v1561
      %vm1571 = vcmask 257024
      %1572 = vst.msk [vmem:[#allocation2 + $0x24] sm:$0xf] %vm1571, %v1534
      %1573 = vst.msk [vmem:[#allocation2 + $0x5c] sm:$0xf] %vm1571, %v1538
      %1574 = vst.msk [vmem:[#allocation2 + $0x94] sm:$0xf] %vm1571, %v1542
      %1575 = vst.msk [vmem:[#allocation2 + $0xcc] sm:$0xf] %vm1571, %v1546
      %1576 = vst.msk [vmem:[#allocation2 + $0x104] sm:$0xf] %vm1571, %v1550
      %1577 = vst.msk [vmem:[#allocation2 + $0x13c] sm:$0xf] %vm1571, %v1554
      %1578 = vst.msk [vmem:[#allocation2 + $0x174] sm:$0xf] %vm1571, %v1558
      %1579 = vst.msk [vmem:[#allocation2 + $0x1ac] sm:$0xf] %vm1571, %v1562
      %v1580 = vld [vmem:[%s1498 + $0x4] sm:$0xc]
      %v1581 = vld [vmem:[%s1498 + $0x8] sm:$0x3]
      %v1582 = vld [vmem:[%s1498 + $0x14] sm:$0xc]
      %v1583 = vld [vmem:[%s1498 + $0x18] sm:$0x3]
      %v1584 = vld [vmem:[%s1498 + $0x24] sm:$0xc]
      %v1585 = vld [vmem:[%s1498 + $0x28] sm:$0x3]
      %v1586 = vld [vmem:[%s1498 + $0x34] sm:$0xc]
      %v1587 = vld [vmem:[%s1498 + $0x38] sm:$0x3]
      %v1588 = vld [vmem:[%s1498 + $0x44] sm:$0xc]
      %v1589 = vld [vmem:[%s1498 + $0x48] sm:$0x3]
      %v1590 = vld [vmem:[%s1498 + $0x54] sm:$0xc]
      %v1591 = vld [vmem:[%s1498 + $0x58] sm:$0x3]
      %v1592 = vld [vmem:[%s1498 + $0x64] sm:$0xc]
      %v1593 = vld [vmem:[%s1498 + $0x68] sm:$0x3]
      %v1594 = vld [vmem:[%s1498 + $0x74] sm:$0xc]
      %v1595 = vld [vmem:[%s1498 + $0x78] sm:$0x3]
      %v1612 = vrot.slane %v1580, 6
      %v1613 = vrot.slane %v1612, 4
      %v1614 = vrot.slane %v1581, 6
      %v1615 = vsel %vm338, %v1613, %v1614
      %v1616 = vrot.slane %v1582, 6
      %v1617 = vrot.slane %v1616, 4
      %v1618 = vrot.slane %v1583, 6
      %v1619 = vsel %vm338, %v1617, %v1618
      %v1620 = vrot.slane %v1584, 6
      %v1621 = vrot.slane %v1620, 4
      %v1622 = vrot.slane %v1585, 6
      %v1623 = vsel %vm338, %v1621, %v1622
      %v1624 = vrot.slane %v1586, 6
      %v1625 = vrot.slane %v1624, 4
      %v1626 = vrot.slane %v1587, 6
      %v1627 = vsel %vm338, %v1625, %v1626
      %v1628 = vrot.slane %v1588, 6
      %v1629 = vrot.slane %v1628, 4
      %v1630 = vrot.slane %v1589, 6
      %v1631 = vsel %vm338, %v1629, %v1630
      %v1632 = vrot.slane %v1590, 6
      %v1633 = vrot.slane %v1632, 4
      %v1634 = vrot.slane %v1591, 6
      %v1635 = vsel %vm338, %v1633, %v1634
      %v1636 = vrot.slane %v1592, 6
      %v1637 = vrot.slane %v1636, 4
      %v1638 = vrot.slane %v1593, 6
      %v1639 = vsel %vm338, %v1637, %v1638
      %v1640 = vrot.slane %v1594, 6
      %v1641 = vrot.slane %v1640, 4
      %v1642 = vrot.slane %v1595, 6
      %v1643 = vsel %vm338, %v1641, %v1642
      %1644 = vrot.lane.b32.xlu0 %v1615, 32
      %v1645 = vpop.permute.xlu0 %1644
      %1646 = vrot.lane.b32.xlu0 %v1619, 32
      %v1647 = vpop.permute.xlu0 %1646
      %1648 = vrot.lane.b32.xlu0 %v1623, 32
      %v1649 = vpop.permute.xlu0 %1648
      %1650 = vrot.lane.b32.xlu0 %v1627, 32
      %v1651 = vpop.permute.xlu0 %1650
      %1652 = vrot.lane.b32.xlu0 %v1631, 32
      %v1653 = vpop.permute.xlu0 %1652
      %1654 = vrot.lane.b32.xlu0 %v1635, 32
      %v1655 = vpop.permute.xlu0 %1654
      %1656 = vrot.lane.b32.xlu0 %v1639, 32
      %v1657 = vpop.permute.xlu0 %1656
      %1658 = vrot.lane.b32.xlu0 %v1643, 32
      %v1659 = vpop.permute.xlu0 %1658
      %vm1668 = vcmask 519424
      %1669 = vst.msk [vmem:[#allocation2 + $0x24] sm:$0xf] %vm1668, %v1645
      %1670 = vst.msk [vmem:[#allocation2 + $0x5c] sm:$0xf] %vm1668, %v1647
      %1671 = vst.msk [vmem:[#allocation2 + $0x94] sm:$0xf] %vm1668, %v1649
      %1672 = vst.msk [vmem:[#allocation2 + $0xcc] sm:$0xf] %vm1668, %v1651
      %1673 = vst.msk [vmem:[#allocation2 + $0x104] sm:$0xf] %vm1668, %v1653
      %1674 = vst.msk [vmem:[#allocation2 + $0x13c] sm:$0xf] %vm1668, %v1655
      %1675 = vst.msk [vmem:[#allocation2 + $0x174] sm:$0xf] %vm1668, %v1657
      %1676 = vst.msk [vmem:[#allocation2 + $0x1ac] sm:$0xf] %vm1668, %v1659
      %v1677 = vld [vmem:[%s1498 + $0x8] sm:$0xe]
      %v1678 = vld [vmem:[%s1498 + $0xc] sm:$0x1]
      %v1679 = vld [vmem:[%s1498 + $0x18] sm:$0xe]
      %v1680 = vld [vmem:[%s1498 + $0x1c] sm:$0x1]
      %v1681 = vld [vmem:[%s1498 + $0x28] sm:$0xe]
      %v1682 = vld [vmem:[%s1498 + $0x2c] sm:$0x1]
      %v1683 = vld [vmem:[%s1498 + $0x38] sm:$0xe]
      %v1684 = vld [vmem:[%s1498 + $0x3c] sm:$0x1]
      %v1685 = vld [vmem:[%s1498 + $0x48] sm:$0xe]
      %v1686 = vld [vmem:[%s1498 + $0x4c] sm:$0x1]
      %v1687 = vld [vmem:[%s1498 + $0x58] sm:$0xe]
      %v1688 = vld [vmem:[%s1498 + $0x5c] sm:$0x1]
      %v1689 = vld [vmem:[%s1498 + $0x68] sm:$0xe]
      %v1690 = vld [vmem:[%s1498 + $0x6c] sm:$0x1]
      %v1691 = vld [vmem:[%s1498 + $0x78] sm:$0xe]
      %v1692 = vld [vmem:[%s1498 + $0x7c] sm:$0x1]
      %v1709 = vrot.slane %v1677, 5
      %v1710 = vrot.slane %v1709, 4
      %v1711 = vrot.slane %v1678, 5
      %v1712 = vsel %vm438, %v1710, %v1711
      %v1713 = vrot.slane %v1679, 5
      %v1714 = vrot.slane %v1713, 4
      %v1715 = vrot.slane %v1680, 5
      %v1716 = vsel %vm438, %v1714, %v1715
      %v1717 = vrot.slane %v1681, 5
      %v1718 = vrot.slane %v1717, 4
      %v1719 = vrot.slane %v1682, 5
      %v1720 = vsel %vm438, %v1718, %v1719
      %v1721 = vrot.slane %v1683, 5
      %v1722 = vrot.slane %v1721, 4
      %v1723 = vrot.slane %v1684, 5
      %v1724 = vsel %vm438, %v1722, %v1723
      %v1725 = vrot.slane %v1685, 5
      %v1726 = vrot.slane %v1725, 4
      %v1727 = vrot.slane %v1686, 5
      %v1728 = vsel %vm438, %v1726, %v1727
      %v1729 = vrot.slane %v1687, 5
      %v1730 = vrot.slane %v1729, 4
      %v1731 = vrot.slane %v1688, 5
      %v1732 = vsel %vm438, %v1730, %v1731
      %v1733 = vrot.slane %v1689, 5
      %v1734 = vrot.slane %v1733, 4
      %v1735 = vrot.slane %v1690, 5
      %v1736 = vsel %vm438, %v1734, %v1735
      %v1737 = vrot.slane %v1691, 5
      %v1738 = vrot.slane %v1737, 4
      %v1739 = vrot.slane %v1692, 5
      %v1740 = vsel %vm438, %v1738, %v1739
      %1741 = vrot.lane.b32.xlu0 %v1712, 64
      %v1742 = vpop.permute.xlu0 %1741
      %1743 = vrot.lane.b32.xlu0 %v1716, 64
      %v1744 = vpop.permute.xlu0 %1743
      %1745 = vrot.lane.b32.xlu0 %v1720, 64
      %v1746 = vpop.permute.xlu0 %1745
      %1747 = vrot.lane.b32.xlu0 %v1724, 64
      %v1748 = vpop.permute.xlu0 %1747
      %1749 = vrot.lane.b32.xlu0 %v1728, 64
      %v1750 = vpop.permute.xlu0 %1749
      %1751 = vrot.lane.b32.xlu0 %v1732, 64
      %v1752 = vpop.permute.xlu0 %1751
      %1753 = vrot.lane.b32.xlu0 %v1736, 64
      %v1754 = vpop.permute.xlu0 %1753
      %1755 = vrot.lane.b32.xlu0 %v1740, 64
      %v1756 = vpop.permute.xlu0 %1755
      %vm1765 = vcmask 781824
      %1766 = vst.msk [vmem:[#allocation2 + $0x24] sm:$0xf] %vm1765, %v1742
      %1767 = vst.msk [vmem:[#allocation2 + $0x5c] sm:$0xf] %vm1765, %v1744
      %1768 = vst.msk [vmem:[#allocation2 + $0x94] sm:$0xf] %vm1765, %v1746
      %1769 = vst.msk [vmem:[#allocation2 + $0xcc] sm:$0xf] %vm1765, %v1748
      %1770 = vst.msk [vmem:[#allocation2 + $0x104] sm:$0xf] %vm1765, %v1750
      %1771 = vst.msk [vmem:[#allocation2 + $0x13c] sm:$0xf] %vm1765, %v1752
      %1772 = vst.msk [vmem:[#allocation2 + $0x174] sm:$0xf] %vm1765, %v1754
      %1773 = vst.msk [vmem:[#allocation2 + $0x1ac] sm:$0xf] %vm1765, %v1756
      %s1774 = scalar_lea.vmem %s212, 192
      %v1775 = vld [vmem:[%s1774] sm:$0x8]
      %v1776 = vld [vmem:[%s1774 + $0x4] sm:$0x7]
      %v1777 = vld [vmem:[%s1774 + $0x10] sm:$0x8]
      %v1778 = vld [vmem:[%s1774 + $0x14] sm:$0x7]
      %v1779 = vld [vmem:[%s1774 + $0x20] sm:$0x8]
      %v1780 = vld [vmem:[%s1774 + $0x24] sm:$0x7]
      %v1781 = vld [vmem:[%s1774 + $0x30] sm:$0x8]
      %v1782 = vld [vmem:[%s1774 + $0x34] sm:$0x7]
      %v1783 = vld [vmem:[%s1774 + $0x40] sm:$0x8]
      %v1784 = vld [vmem:[%s1774 + $0x44] sm:$0x7]
      %v1785 = vld [vmem:[%s1774 + $0x50] sm:$0x8]
      %v1786 = vld [vmem:[%s1774 + $0x54] sm:$0x7]
      %v1787 = vld [vmem:[%s1774 + $0x60] sm:$0x8]
      %v1788 = vld [vmem:[%s1774 + $0x64] sm:$0x7]
      %v1789 = vld [vmem:[%s1774 + $0x70] sm:$0x8]
      %v1790 = vld [vmem:[%s1774 + $0x74] sm:$0x7]
      %v1807 = vrot.slane %v1775, 7
      %v1808 = vrot.slane %v1807, 4
      %v1809 = vrot.slane %v1776, 7
      %v1810 = vsel %vm254, %v1808, %v1809
      %v1811 = vrot.slane %v1777, 7
      %v1812 = vrot.slane %v1811, 4
      %v1813 = vrot.slane %v1778, 7
      %v1814 = vsel %vm254, %v1812, %v1813
      %v1815 = vrot.slane %v1779, 7
      %v1816 = vrot.slane %v1815, 4
      %v1817 = vrot.slane %v1780, 7
      %v1818 = vsel %vm254, %v1816, %v1817
      %v1819 = vrot.slane %v1781, 7
      %v1820 = vrot.slane %v1819, 4
      %v1821 = vrot.slane %v1782, 7
      %v1822 = vsel %vm254, %v1820, %v1821
      %v1823 = vrot.slane %v1783, 7
      %v1824 = vrot.slane %v1823, 4
      %v1825 = vrot.slane %v1784, 7
      %v1826 = vsel %vm254, %v1824, %v1825
      %v1827 = vrot.slane %v1785, 7
      %v1828 = vrot.slane %v1827, 4
      %v1829 = vrot.slane %v1786, 7
      %v1830 = vsel %vm254, %v1828, %v1829
      %v1831 = vrot.slane %v1787, 7
      %v1832 = vrot.slane %v1831, 4
      %v1833 = vrot.slane %v1788, 7
      %v1834 = vsel %vm254, %v1832, %v1833
      %v1835 = vrot.slane %v1789, 7
      %v1836 = vrot.slane %v1835, 4
      %v1837 = vrot.slane %v1790, 7
      %v1838 = vsel %vm254, %v1836, %v1837
      %1839 = vrot.lane.b32.xlu0 %v1810, 96
      %v1840 = vpop.permute.xlu0 %1839
      %1841 = vrot.lane.b32.xlu0 %v1814, 96
      %v1842 = vpop.permute.xlu0 %1841
      %1843 = vrot.lane.b32.xlu0 %v1818, 96
      %v1844 = vpop.permute.xlu0 %1843
      %1845 = vrot.lane.b32.xlu0 %v1822, 96
      %v1846 = vpop.permute.xlu0 %1845
      %1847 = vrot.lane.b32.xlu0 %v1826, 96
      %v1848 = vpop.permute.xlu0 %1847
      %1849 = vrot.lane.b32.xlu0 %v1830, 96
      %v1850 = vpop.permute.xlu0 %1849
      %1851 = vrot.lane.b32.xlu0 %v1834, 96
      %v1852 = vpop.permute.xlu0 %1851
      %1853 = vrot.lane.b32.xlu0 %v1838, 96
      %v1854 = vpop.permute.xlu0 %1853
      %vm1863 = vcmask 1044224
      %1864 = vst.msk [vmem:[#allocation2 + $0x24] sm:$0xf] %vm1863, %v1840
      %1865 = vst.msk [vmem:[#allocation2 + $0x5c] sm:$0xf] %vm1863, %v1842
      %1866 = vst.msk [vmem:[#allocation2 + $0x94] sm:$0xf] %vm1863, %v1844
      %1867 = vst.msk [vmem:[#allocation2 + $0xcc] sm:$0xf] %vm1863, %v1846
      %1868 = vst.msk [vmem:[#allocation2 + $0x104] sm:$0xf] %vm1863, %v1848
      %1869 = vst.msk [vmem:[#allocation2 + $0x13c] sm:$0xf] %vm1863, %v1850
      %1870 = vst.msk [vmem:[#allocation2 + $0x174] sm:$0xf] %vm1863, %v1852
      %1871 = vst.msk [vmem:[#allocation2 + $0x1ac] sm:$0xf] %vm1863, %v1854
      %v1872 = vld [vmem:[%s1774 + $0x4] sm:$0xc]
      %v1873 = vld [vmem:[%s1774 + $0x8] sm:$0x3]
      %v1874 = vld [vmem:[%s1774 + $0x14] sm:$0xc]
      %v1875 = vld [vmem:[%s1774 + $0x18] sm:$0x3]
      %v1876 = vld [vmem:[%s1774 + $0x24] sm:$0xc]
      %v1877 = vld [vmem:[%s1774 + $0x28] sm:$0x3]
      %v1878 = vld [vmem:[%s1774 + $0x34] sm:$0xc]
      %v1879 = vld [vmem:[%s1774 + $0x38] sm:$0x3]
      %v1880 = vld [vmem:[%s1774 + $0x44] sm:$0xc]
      %v1881 = vld [vmem:[%s1774 + $0x48] sm:$0x3]
      %v1882 = vld [vmem:[%s1774 + $0x54] sm:$0xc]
      %v1883 = vld [vmem:[%s1774 + $0x58] sm:$0x3]
      %v1884 = vld [vmem:[%s1774 + $0x64] sm:$0xc]
      %v1885 = vld [vmem:[%s1774 + $0x68] sm:$0x3]
      %v1886 = vld [vmem:[%s1774 + $0x74] sm:$0xc]
      %v1887 = vld [vmem:[%s1774 + $0x78] sm:$0x3]
      %v1904 = vrot.slane %v1872, 6
      %v1905 = vrot.slane %v1904, 4
      %v1906 = vrot.slane %v1873, 6
      %v1907 = vsel %vm338, %v1905, %v1906
      %v1908 = vrot.slane %v1874, 6
      %v1909 = vrot.slane %v1908, 4
      %v1910 = vrot.slane %v1875, 6
      %v1911 = vsel %vm338, %v1909, %v1910
      %v1912 = vrot.slane %v1876, 6
      %v1913 = vrot.slane %v1912, 4
      %v1914 = vrot.slane %v1877, 6
      %v1915 = vsel %vm338, %v1913, %v1914
      %v1916 = vrot.slane %v1878, 6
      %v1917 = vrot.slane %v1916, 4
      %v1918 = vrot.slane %v1879, 6
      %v1919 = vsel %vm338, %v1917, %v1918
      %v1920 = vrot.slane %v1880, 6
      %v1921 = vrot.slane %v1920, 4
      %v1922 = vrot.slane %v1881, 6
      %v1923 = vsel %vm338, %v1921, %v1922
      %v1924 = vrot.slane %v1882, 6
      %v1925 = vrot.slane %v1924, 4
      %v1926 = vrot.slane %v1883, 6
      %v1927 = vsel %vm338, %v1925, %v1926
      %v1928 = vrot.slane %v1884, 6
      %v1929 = vrot.slane %v1928, 4
      %v1930 = vrot.slane %v1885, 6
      %v1931 = vsel %vm338, %v1929, %v1930
      %v1932 = vrot.slane %v1886, 6
      %v1933 = vrot.slane %v1932, 4
      %v1934 = vrot.slane %v1887, 6
      %v1935 = vsel %vm338, %v1933, %v1934
      %1944 = vst.msk [vmem:[#allocation2 + $0x28] sm:$0xf] %vm1571, %v1907
      %1945 = vst.msk [vmem:[#allocation2 + $0x60] sm:$0xf] %vm1571, %v1911
      %1946 = vst.msk [vmem:[#allocation2 + $0x98] sm:$0xf] %vm1571, %v1915
      %1947 = vst.msk [vmem:[#allocation2 + $0xd0] sm:$0xf] %vm1571, %v1919
      %1948 = vst.msk [vmem:[#allocation2 + $0x108] sm:$0xf] %vm1571, %v1923
      %1949 = vst.msk [vmem:[#allocation2 + $0x140] sm:$0xf] %vm1571, %v1927
      %1950 = vst.msk [vmem:[#allocation2 + $0x178] sm:$0xf] %vm1571, %v1931
      %1951 = vst.msk [vmem:[#allocation2 + $0x1b0] sm:$0xf] %vm1571, %v1935
      %v1952 = vld [vmem:[%s1774 + $0x8] sm:$0xe]
      %v1953 = vld [vmem:[%s1774 + $0xc] sm:$0x1]
      %v1954 = vld [vmem:[%s1774 + $0x18] sm:$0xe]
      %v1955 = vld [vmem:[%s1774 + $0x1c] sm:$0x1]
      %v1956 = vld [vmem:[%s1774 + $0x28] sm:$0xe]
      %v1957 = vld [vmem:[%s1774 + $0x2c] sm:$0x1]
      %v1958 = vld [vmem:[%s1774 + $0x38] sm:$0xe]
      %v1959 = vld [vmem:[%s1774 + $0x3c] sm:$0x1]
      %v1960 = vld [vmem:[%s1774 + $0x48] sm:$0xe]
      %v1961 = vld [vmem:[%s1774 + $0x4c] sm:$0x1]
      %v1962 = vld [vmem:[%s1774 + $0x58] sm:$0xe]
      %v1963 = vld [vmem:[%s1774 + $0x5c] sm:$0x1]
      %v1964 = vld [vmem:[%s1774 + $0x68] sm:$0xe]
      %v1965 = vld [vmem:[%s1774 + $0x6c] sm:$0x1]
      %v1966 = vld [vmem:[%s1774 + $0x78] sm:$0xe]
      %v1967 = vld [vmem:[%s1774 + $0x7c] sm:$0x1]
      %v1984 = vrot.slane %v1952, 5
      %v1985 = vrot.slane %v1984, 4
      %v1986 = vrot.slane %v1953, 5
      %v1987 = vsel %vm438, %v1985, %v1986
      %v1988 = vrot.slane %v1954, 5
      %v1989 = vrot.slane %v1988, 4
      %v1990 = vrot.slane %v1955, 5
      %v1991 = vsel %vm438, %v1989, %v1990
      %v1992 = vrot.slane %v1956, 5
      %v1993 = vrot.slane %v1992, 4
      %v1994 = vrot.slane %v1957, 5
      %v1995 = vsel %vm438, %v1993, %v1994
      %v1996 = vrot.slane %v1958, 5
      %v1997 = vrot.slane %v1996, 4
      %v1998 = vrot.slane %v1959, 5
      %v1999 = vsel %vm438, %v1997, %v1998
      %v2000 = vrot.slane %v1960, 5
      %v2001 = vrot.slane %v2000, 4
      %v2002 = vrot.slane %v1961, 5
      %v2003 = vsel %vm438, %v2001, %v2002
      %v2004 = vrot.slane %v1962, 5
      %v2005 = vrot.slane %v2004, 4
      %v2006 = vrot.slane %v1963, 5
      %v2007 = vsel %vm438, %v2005, %v2006
      %v2008 = vrot.slane %v1964, 5
      %v2009 = vrot.slane %v2008, 4
      %v2010 = vrot.slane %v1965, 5
      %v2011 = vsel %vm438, %v2009, %v2010
      %v2012 = vrot.slane %v1966, 5
      %v2013 = vrot.slane %v2012, 4
      %v2014 = vrot.slane %v1967, 5
      %v2015 = vsel %vm438, %v2013, %v2014
      %2016 = vrot.lane.b32.xlu0 %v1987, 32
      %v2017 = vpop.permute.xlu0 %2016
      %2018 = vrot.lane.b32.xlu0 %v1991, 32
      %v2019 = vpop.permute.xlu0 %2018
      %2020 = vrot.lane.b32.xlu0 %v1995, 32
      %v2021 = vpop.permute.xlu0 %2020
      %2022 = vrot.lane.b32.xlu0 %v1999, 32
      %v2023 = vpop.permute.xlu0 %2022
      %2024 = vrot.lane.b32.xlu0 %v2003, 32
      %v2025 = vpop.permute.xlu0 %2024
      %2026 = vrot.lane.b32.xlu0 %v2007, 32
      %v2027 = vpop.permute.xlu0 %2026
      %2028 = vrot.lane.b32.xlu0 %v2011, 32
      %v2029 = vpop.permute.xlu0 %2028
      %2030 = vrot.lane.b32.xlu0 %v2015, 32
      %v2031 = vpop.permute.xlu0 %2030
      %2040 = vst.msk [vmem:[#allocation2 + $0x28] sm:$0xf] %vm1668, %v2017
      %2041 = vst.msk [vmem:[#allocation2 + $0x60] sm:$0xf] %vm1668, %v2019
      %2042 = vst.msk [vmem:[#allocation2 + $0x98] sm:$0xf] %vm1668, %v2021
      %2043 = vst.msk [vmem:[#allocation2 + $0xd0] sm:$0xf] %vm1668, %v2023
      %2044 = vst.msk [vmem:[#allocation2 + $0x108] sm:$0xf] %vm1668, %v2025
      %2045 = vst.msk [vmem:[#allocation2 + $0x140] sm:$0xf] %vm1668, %v2027
      %2046 = vst.msk [vmem:[#allocation2 + $0x178] sm:$0xf] %vm1668, %v2029
      %2047 = vst.msk [vmem:[#allocation2 + $0x1b0] sm:$0xf] %vm1668, %v2031
      %s2048 = scalar_lea.vmem %s212, 288
      %v2049 = vld [vmem:[%s2048] sm:$0x8]
      %v2050 = vld [vmem:[%s2048 + $0x4] sm:$0x7]
      %v2051 = vld [vmem:[%s2048 + $0x10] sm:$0x8]
      %v2052 = vld [vmem:[%s2048 + $0x14] sm:$0x7]
      %v2053 = vld [vmem:[%s2048 + $0x20] sm:$0x8]
      %v2054 = vld [vmem:[%s2048 + $0x24] sm:$0x7]
      %v2055 = vld [vmem:[%s2048 + $0x30] sm:$0x8]
      %v2056 = vld [vmem:[%s2048 + $0x34] sm:$0x7]
      %v2057 = vld [vmem:[%s2048 + $0x40] sm:$0x8]
      %v2058 = vld [vmem:[%s2048 + $0x44] sm:$0x7]
      %v2059 = vld [vmem:[%s2048 + $0x50] sm:$0x8]
      %v2060 = vld [vmem:[%s2048 + $0x54] sm:$0x7]
      %v2061 = vld [vmem:[%s2048 + $0x60] sm:$0x8]
      %v2062 = vld [vmem:[%s2048 + $0x64] sm:$0x7]
      %v2063 = vld [vmem:[%s2048 + $0x70] sm:$0x8]
      %v2064 = vld [vmem:[%s2048 + $0x74] sm:$0x7]
      %v2081 = vrot.slane %v2049, 7
      %v2082 = vrot.slane %v2081, 4
      %v2083 = vrot.slane %v2050, 7
      %v2084 = vsel %vm254, %v2082, %v2083
      %v2085 = vrot.slane %v2051, 7
      %v2086 = vrot.slane %v2085, 4
      %v2087 = vrot.slane %v2052, 7
      %v2088 = vsel %vm254, %v2086, %v2087
      %v2089 = vrot.slane %v2053, 7
      %v2090 = vrot.slane %v2089, 4
      %v2091 = vrot.slane %v2054, 7
      %v2092 = vsel %vm254, %v2090, %v2091
      %v2093 = vrot.slane %v2055, 7
      %v2094 = vrot.slane %v2093, 4
      %v2095 = vrot.slane %v2056, 7
      %v2096 = vsel %vm254, %v2094, %v2095
      %v2097 = vrot.slane %v2057, 7
      %v2098 = vrot.slane %v2097, 4
      %v2099 = vrot.slane %v2058, 7
      %v2100 = vsel %vm254, %v2098, %v2099
      %v2101 = vrot.slane %v2059, 7
      %v2102 = vrot.slane %v2101, 4
      %v2103 = vrot.slane %v2060, 7
      %v2104 = vsel %vm254, %v2102, %v2103
      %v2105 = vrot.slane %v2061, 7
      %v2106 = vrot.slane %v2105, 4
      %v2107 = vrot.slane %v2062, 7
      %v2108 = vsel %vm254, %v2106, %v2107
      %v2109 = vrot.slane %v2063, 7
      %v2110 = vrot.slane %v2109, 4
      %v2111 = vrot.slane %v2064, 7
      %v2112 = vsel %vm254, %v2110, %v2111
      %2113 = vrot.lane.b32.xlu0 %v2084, 64
      %v2114 = vpop.permute.xlu0 %2113
      %2115 = vrot.lane.b32.xlu0 %v2088, 64
      %v2116 = vpop.permute.xlu0 %2115
      %2117 = vrot.lane.b32.xlu0 %v2092, 64
      %v2118 = vpop.permute.xlu0 %2117
      %2119 = vrot.lane.b32.xlu0 %v2096, 64
      %v2120 = vpop.permute.xlu0 %2119
      %2121 = vrot.lane.b32.xlu0 %v2100, 64
      %v2122 = vpop.permute.xlu0 %2121
      %2123 = vrot.lane.b32.xlu0 %v2104, 64
      %v2124 = vpop.permute.xlu0 %2123
      %2125 = vrot.lane.b32.xlu0 %v2108, 64
      %v2126 = vpop.permute.xlu0 %2125
      %2127 = vrot.lane.b32.xlu0 %v2112, 64
      %v2128 = vpop.permute.xlu0 %2127
      %2137 = vst.msk [vmem:[#allocation2 + $0x28] sm:$0xf] %vm1765, %v2114
      %2138 = vst.msk [vmem:[#allocation2 + $0x60] sm:$0xf] %vm1765, %v2116
      %2139 = vst.msk [vmem:[#allocation2 + $0x98] sm:$0xf] %vm1765, %v2118
      %2140 = vst.msk [vmem:[#allocation2 + $0xd0] sm:$0xf] %vm1765, %v2120
      %2141 = vst.msk [vmem:[#allocation2 + $0x108] sm:$0xf] %vm1765, %v2122
      %2142 = vst.msk [vmem:[#allocation2 + $0x140] sm:$0xf] %vm1765, %v2124
      %2143 = vst.msk [vmem:[#allocation2 + $0x178] sm:$0xf] %vm1765, %v2126
      %2144 = vst.msk [vmem:[#allocation2 + $0x1b0] sm:$0xf] %vm1765, %v2128
      %v2145 = vld [vmem:[%s2048 + $0x4] sm:$0xc]
      %v2146 = vld [vmem:[%s2048 + $0x8] sm:$0x3]
      %v2147 = vld [vmem:[%s2048 + $0x14] sm:$0xc]
      %v2148 = vld [vmem:[%s2048 + $0x18] sm:$0x3]
      %v2149 = vld [vmem:[%s2048 + $0x24] sm:$0xc]
      %v2150 = vld [vmem:[%s2048 + $0x28] sm:$0x3]
      %v2151 = vld [vmem:[%s2048 + $0x34] sm:$0xc]
      %v2152 = vld [vmem:[%s2048 + $0x38] sm:$0x3]
      %v2153 = vld [vmem:[%s2048 + $0x44] sm:$0xc]
      %v2154 = vld [vmem:[%s2048 + $0x48] sm:$0x3]
      %v2155 = vld [vmem:[%s2048 + $0x54] sm:$0xc]
      %v2156 = vld [vmem:[%s2048 + $0x58] sm:$0x3]
      %v2157 = vld [vmem:[%s2048 + $0x64] sm:$0xc]
      %v2158 = vld [vmem:[%s2048 + $0x68] sm:$0x3]
      %v2159 = vld [vmem:[%s2048 + $0x74] sm:$0xc]
      %v2160 = vld [vmem:[%s2048 + $0x78] sm:$0x3]
      %v2177 = vrot.slane %v2145, 6
      %v2178 = vrot.slane %v2177, 4
      %v2179 = vrot.slane %v2146, 6
      %v2180 = vsel %vm338, %v2178, %v2179
      %v2181 = vrot.slane %v2147, 6
      %v2182 = vrot.slane %v2181, 4
      %v2183 = vrot.slane %v2148, 6
      %v2184 = vsel %vm338, %v2182, %v2183
      %v2185 = vrot.slane %v2149, 6
      %v2186 = vrot.slane %v2185, 4
      %v2187 = vrot.slane %v2150, 6
      %v2188 = vsel %vm338, %v2186, %v2187
      %v2189 = vrot.slane %v2151, 6
      %v2190 = vrot.slane %v2189, 4
      %v2191 = vrot.slane %v2152, 6
      %v2192 = vsel %vm338, %v2190, %v2191
      %v2193 = vrot.slane %v2153, 6
      %v2194 = vrot.slane %v2193, 4
      %v2195 = vrot.slane %v2154, 6
      %v2196 = vsel %vm338, %v2194, %v2195
      %v2197 = vrot.slane %v2155, 6
      %v2198 = vrot.slane %v2197, 4
      %v2199 = vrot.slane %v2156, 6
      %v2200 = vsel %vm338, %v2198, %v2199
      %v2201 = vrot.slane %v2157, 6
      %v2202 = vrot.slane %v2201, 4
      %v2203 = vrot.slane %v2158, 6
      %v2204 = vsel %vm338, %v2202, %v2203
      %v2205 = vrot.slane %v2159, 6
      %v2206 = vrot.slane %v2205, 4
      %v2207 = vrot.slane %v2160, 6
      %v2208 = vsel %vm338, %v2206, %v2207
      %2209 = vrot.lane.b32.xlu0 %v2180, 96
      %v2210 = vpop.permute.xlu0 %2209
      %2211 = vrot.lane.b32.xlu0 %v2184, 96
      %v2212 = vpop.permute.xlu0 %2211
      %2213 = vrot.lane.b32.xlu0 %v2188, 96
      %v2214 = vpop.permute.xlu0 %2213
      %2215 = vrot.lane.b32.xlu0 %v2192, 96
      %v2216 = vpop.permute.xlu0 %2215
      %2217 = vrot.lane.b32.xlu0 %v2196, 96
      %v2218 = vpop.permute.xlu0 %2217
      %2219 = vrot.lane.b32.xlu0 %v2200, 96
      %v2220 = vpop.permute.xlu0 %2219
      %2221 = vrot.lane.b32.xlu0 %v2204, 96
      %v2222 = vpop.permute.xlu0 %2221
      %2223 = vrot.lane.b32.xlu0 %v2208, 96
      %v2224 = vpop.permute.xlu0 %2223
      %2233 = vst.msk [vmem:[#allocation2 + $0x28] sm:$0xf] %vm1863, %v2210
      %2234 = vst.msk [vmem:[#allocation2 + $0x60] sm:$0xf] %vm1863, %v2212
      %2235 = vst.msk [vmem:[#allocation2 + $0x98] sm:$0xf] %vm1863, %v2214
      %2236 = vst.msk [vmem:[#allocation2 + $0xd0] sm:$0xf] %vm1863, %v2216
      %2237 = vst.msk [vmem:[#allocation2 + $0x108] sm:$0xf] %vm1863, %v2218
      %2238 = vst.msk [vmem:[#allocation2 + $0x140] sm:$0xf] %vm1863, %v2220
      %2239 = vst.msk [vmem:[#allocation2 + $0x178] sm:$0xf] %vm1863, %v2222
      %2240 = vst.msk [vmem:[#allocation2 + $0x1b0] sm:$0xf] %vm1863, %v2224
      %v2241 = vld [vmem:[%s2048 + $0x8] sm:$0xe]
      %v2242 = vld [vmem:[%s2048 + $0xc] sm:$0x1]
      %v2243 = vld [vmem:[%s2048 + $0x18] sm:$0xe]
      %v2244 = vld [vmem:[%s2048 + $0x1c] sm:$0x1]
      %v2245 = vld [vmem:[%s2048 + $0x28] sm:$0xe]
      %v2246 = vld [vmem:[%s2048 + $0x2c] sm:$0x1]
      %v2247 = vld [vmem:[%s2048 + $0x38] sm:$0xe]
      %v2248 = vld [vmem:[%s2048 + $0x3c] sm:$0x1]
      %v2249 = vld [vmem:[%s2048 + $0x48] sm:$0xe]
      %v2250 = vld [vmem:[%s2048 + $0x4c] sm:$0x1]
      %v2251 = vld [vmem:[%s2048 + $0x58] sm:$0xe]
      %v2252 = vld [vmem:[%s2048 + $0x5c] sm:$0x1]
      %v2253 = vld [vmem:[%s2048 + $0x68] sm:$0xe]
      %v2254 = vld [vmem:[%s2048 + $0x6c] sm:$0x1]
      %v2255 = vld [vmem:[%s2048 + $0x78] sm:$0xe]
      %v2256 = vld [vmem:[%s2048 + $0x7c] sm:$0x1]
      %v2273 = vrot.slane %v2241, 5
      %v2274 = vrot.slane %v2273, 4
      %v2275 = vrot.slane %v2242, 5
      %v2276 = vsel %vm438, %v2274, %v2275
      %v2277 = vrot.slane %v2243, 5
      %v2278 = vrot.slane %v2277, 4
      %v2279 = vrot.slane %v2244, 5
      %v2280 = vsel %vm438, %v2278, %v2279
      %v2281 = vrot.slane %v2245, 5
      %v2282 = vrot.slane %v2281, 4
      %v2283 = vrot.slane %v2246, 5
      %v2284 = vsel %vm438, %v2282, %v2283
      %v2285 = vrot.slane %v2247, 5
      %v2286 = vrot.slane %v2285, 4
      %v2287 = vrot.slane %v2248, 5
      %v2288 = vsel %vm438, %v2286, %v2287
      %v2289 = vrot.slane %v2249, 5
      %v2290 = vrot.slane %v2289, 4
      %v2291 = vrot.slane %v2250, 5
      %v2292 = vsel %vm438, %v2290, %v2291
      %v2293 = vrot.slane %v2251, 5
      %v2294 = vrot.slane %v2293, 4
      %v2295 = vrot.slane %v2252, 5
      %v2296 = vsel %vm438, %v2294, %v2295
      %v2297 = vrot.slane %v2253, 5
      %v2298 = vrot.slane %v2297, 4
      %v2299 = vrot.slane %v2254, 5
      %v2300 = vsel %vm438, %v2298, %v2299
      %v2301 = vrot.slane %v2255, 5
      %v2302 = vrot.slane %v2301, 4
      %v2303 = vrot.slane %v2256, 5
      %v2304 = vsel %vm438, %v2302, %v2303
      %2313 = vst.msk [vmem:[#allocation2 + $0x2c] sm:$0xf] %vm1571, %v2276
      %2314 = vst.msk [vmem:[#allocation2 + $0x64] sm:$0xf] %vm1571, %v2280
      %2315 = vst.msk [vmem:[#allocation2 + $0x9c] sm:$0xf] %vm1571, %v2284
      %2316 = vst.msk [vmem:[#allocation2 + $0xd4] sm:$0xf] %vm1571, %v2288
      %2317 = vst.msk [vmem:[#allocation2 + $0x10c] sm:$0xf] %vm1571, %v2292
      %2318 = vst.msk [vmem:[#allocation2 + $0x144] sm:$0xf] %vm1571, %v2296
      %2319 = vst.msk [vmem:[#allocation2 + $0x17c] sm:$0xf] %vm1571, %v2300
      %2320 = vst.msk [vmem:[#allocation2 + $0x1b4] sm:$0xf] %vm1571, %v2304
      %v2321 = vld [vmem:[%s212] sm:$0xf]
      %v2322 = vld [vmem:[%s212 + $0x10] sm:$0xf]
      %v2323 = vld [vmem:[%s212 + $0x20] sm:$0xf]
      %v2324 = vld [vmem:[%s212 + $0x30] sm:$0xf]
      %v2325 = vld [vmem:[%s212 + $0x40] sm:$0xf]
      %v2326 = vld [vmem:[%s212 + $0x50] sm:$0xf]
      %v2327 = vld [vmem:[%s212 + $0x60] sm:$0xf]
      %v2328 = vld [vmem:[%s212 + $0x70] sm:$0xf]
      %2337 = vrot.lane.b32.xlu0 %v2321, 32
      %v2338 = vpop.permute.xlu0 %2337
      %2339 = vrot.lane.b32.xlu0 %v2322, 32
      %v2340 = vpop.permute.xlu0 %2339
      %2341 = vrot.lane.b32.xlu0 %v2323, 32
      %v2342 = vpop.permute.xlu0 %2341
      %2343 = vrot.lane.b32.xlu0 %v2324, 32
      %v2344 = vpop.permute.xlu0 %2343
      %2345 = vrot.lane.b32.xlu0 %v2325, 32
      %v2346 = vpop.permute.xlu0 %2345
      %2347 = vrot.lane.b32.xlu0 %v2326, 32
      %v2348 = vpop.permute.xlu0 %2347
      %2349 = vrot.lane.b32.xlu0 %v2327, 32
      %v2350 = vpop.permute.xlu0 %2349
      %2351 = vrot.lane.b32.xlu0 %v2328, 32
      %v2352 = vpop.permute.xlu0 %2351
      %2361 = vst.msk [vmem:[#allocation2 + $0x2c] sm:$0xf] %vm1668, %v2338
      %2362 = vst.msk [vmem:[#allocation2 + $0x64] sm:$0xf] %vm1668, %v2340
      %2363 = vst.msk [vmem:[#allocation2 + $0x9c] sm:$0xf] %vm1668, %v2342
      %2364 = vst.msk [vmem:[#allocation2 + $0xd4] sm:$0xf] %vm1668, %v2344
      %2365 = vst.msk [vmem:[#allocation2 + $0x10c] sm:$0xf] %vm1668, %v2346
      %2366 = vst.msk [vmem:[#allocation2 + $0x144] sm:$0xf] %vm1668, %v2348
      %2367 = vst.msk [vmem:[#allocation2 + $0x17c] sm:$0xf] %vm1668, %v2350
      %2368 = vst.msk [vmem:[#allocation2 + $0x1b4] sm:$0xf] %vm1668, %v2352
      %v2369 = vld [vmem:[%s212 + $0x4] sm:$0xc]
      %v2370 = vld [vmem:[%s212 + $0x8] sm:$0x3]
      %v2371 = vld [vmem:[%s212 + $0x14] sm:$0xc]
      %v2372 = vld [vmem:[%s212 + $0x18] sm:$0x3]
      %v2373 = vld [vmem:[%s212 + $0x24] sm:$0xc]
      %v2374 = vld [vmem:[%s212 + $0x28] sm:$0x3]
      %v2375 = vld [vmem:[%s212 + $0x34] sm:$0xc]
      %v2376 = vld [vmem:[%s212 + $0x38] sm:$0x3]
      %v2377 = vld [vmem:[%s212 + $0x44] sm:$0xc]
      %v2378 = vld [vmem:[%s212 + $0x48] sm:$0x3]
      %v2379 = vld [vmem:[%s212 + $0x54] sm:$0xc]
      %v2380 = vld [vmem:[%s212 + $0x58] sm:$0x3]
      %v2381 = vld [vmem:[%s212 + $0x64] sm:$0xc]
      %v2382 = vld [vmem:[%s212 + $0x68] sm:$0x3]
      %v2383 = vld [vmem:[%s212 + $0x74] sm:$0xc]
      %v2384 = vld [vmem:[%s212 + $0x78] sm:$0x3]
      %v2401 = vrot.slane %v2369, 6
      %v2402 = vrot.slane %v2401, 4
      %v2403 = vrot.slane %v2370, 6
      %v2404 = vsel %vm338, %v2402, %v2403
      %v2405 = vrot.slane %v2371, 6
      %v2406 = vrot.slane %v2405, 4
      %v2407 = vrot.slane %v2372, 6
      %v2408 = vsel %vm338, %v2406, %v2407
      %v2409 = vrot.slane %v2373, 6
      %v2410 = vrot.slane %v2409, 4
      %v2411 = vrot.slane %v2374, 6
      %v2412 = vsel %vm338, %v2410, %v2411
      %v2413 = vrot.slane %v2375, 6
      %v2414 = vrot.slane %v2413, 4
      %v2415 = vrot.slane %v2376, 6
      %v2416 = vsel %vm338, %v2414, %v2415
      %v2417 = vrot.slane %v2377, 6
      %v2418 = vrot.slane %v2417, 4
      %v2419 = vrot.slane %v2378, 6
      %v2420 = vsel %vm338, %v2418, %v2419
      %v2421 = vrot.slane %v2379, 6
      %v2422 = vrot.slane %v2421, 4
      %v2423 = vrot.slane %v2380, 6
      %v2424 = vsel %vm338, %v2422, %v2423
      %v2425 = vrot.slane %v2381, 6
      %v2426 = vrot.slane %v2425, 4
      %v2427 = vrot.slane %v2382, 6
      %v2428 = vsel %vm338, %v2426, %v2427
      %v2429 = vrot.slane %v2383, 6
      %v2430 = vrot.slane %v2429, 4
      %v2431 = vrot.slane %v2384, 6
      %v2432 = vsel %vm338, %v2430, %v2431
      %2433 = vrot.lane.b32.xlu0 %v2404, 64
      %v2434 = vpop.permute.xlu0 %2433
      %2435 = vrot.lane.b32.xlu0 %v2408, 64
      %v2436 = vpop.permute.xlu0 %2435
      %2437 = vrot.lane.b32.xlu0 %v2412, 64
      %v2438 = vpop.permute.xlu0 %2437
      %2439 = vrot.lane.b32.xlu0 %v2416, 64
      %v2440 = vpop.permute.xlu0 %2439
      %2441 = vrot.lane.b32.xlu0 %v2420, 64
      %v2442 = vpop.permute.xlu0 %2441
      %2443 = vrot.lane.b32.xlu0 %v2424, 64
      %v2444 = vpop.permute.xlu0 %2443
      %2445 = vrot.lane.b32.xlu0 %v2428, 64
      %v2446 = vpop.permute.xlu0 %2445
      %2447 = vrot.lane.b32.xlu0 %v2432, 64
      %v2448 = vpop.permute.xlu0 %2447
      %2457 = vst.msk [vmem:[#allocation2 + $0x2c] sm:$0xf] %vm1765, %v2434
      %2458 = vst.msk [vmem:[#allocation2 + $0x64] sm:$0xf] %vm1765, %v2436
      %2459 = vst.msk [vmem:[#allocation2 + $0x9c] sm:$0xf] %vm1765, %v2438
      %2460 = vst.msk [vmem:[#allocation2 + $0xd4] sm:$0xf] %vm1765, %v2440
      %2461 = vst.msk [vmem:[#allocation2 + $0x10c] sm:$0xf] %vm1765, %v2442
      %2462 = vst.msk [vmem:[#allocation2 + $0x144] sm:$0xf] %vm1765, %v2444
      %2463 = vst.msk [vmem:[#allocation2 + $0x17c] sm:$0xf] %vm1765, %v2446
      %2464 = vst.msk [vmem:[#allocation2 + $0x1b4] sm:$0xf] %vm1765, %v2448
      %v2465 = vld [vmem:[%s212 + $0xc] sm:$0xf]
      %v2466 = vld [vmem:[%s212 + $0x1c] sm:$0xf]
      %v2467 = vld [vmem:[%s212 + $0x2c] sm:$0xf]
      %v2468 = vld [vmem:[%s212 + $0x3c] sm:$0xf]
      %v2469 = vld [vmem:[%s212 + $0x4c] sm:$0xf]
      %v2470 = vld [vmem:[%s212 + $0x5c] sm:$0xf]
      %v2471 = vld [vmem:[%s212 + $0x6c] sm:$0xf]
      %v2472 = vld [vmem:[%s212 + $0x7c] sm:$0xf]
      %2481 = vrot.lane.b32.xlu0 %v2465, 96
      %v2482 = vpop.permute.xlu0 %2481
      %2483 = vrot.lane.b32.xlu0 %v2466, 96
      %v2484 = vpop.permute.xlu0 %2483
      %2485 = vrot.lane.b32.xlu0 %v2467, 96
      %v2486 = vpop.permute.xlu0 %2485
      %2487 = vrot.lane.b32.xlu0 %v2468, 96
      %v2488 = vpop.permute.xlu0 %2487
      %2489 = vrot.lane.b32.xlu0 %v2469, 96
      %v2490 = vpop.permute.xlu0 %2489
      %2491 = vrot.lane.b32.xlu0 %v2470, 96
      %v2492 = vpop.permute.xlu0 %2491
      %2493 = vrot.lane.b32.xlu0 %v2471, 96
      %v2494 = vpop.permute.xlu0 %2493
      %2495 = vrot.lane.b32.xlu0 %v2472, 96
      %v2496 = vpop.permute.xlu0 %2495
      %2505 = vst.msk [vmem:[#allocation2 + $0x2c] sm:$0xf] %vm1863, %v2482
      %2506 = vst.msk [vmem:[#allocation2 + $0x64] sm:$0xf] %vm1863, %v2484
      %2507 = vst.msk [vmem:[#allocation2 + $0x9c] sm:$0xf] %vm1863, %v2486
      %2508 = vst.msk [vmem:[#allocation2 + $0xd4] sm:$0xf] %vm1863, %v2488
      %2509 = vst.msk [vmem:[#allocation2 + $0x10c] sm:$0xf] %vm1863, %v2490
      %2510 = vst.msk [vmem:[#allocation2 + $0x144] sm:$0xf] %vm1863, %v2492
      %2511 = vst.msk [vmem:[#allocation2 + $0x17c] sm:$0xf] %vm1863, %v2494
      %2512 = vst.msk [vmem:[#allocation2 + $0x1b4] sm:$0xf] %vm1863, %v2496
      %v2513 = vld [vmem:[%s1774] sm:$0xf]
      %v2514 = vld [vmem:[%s1774 + $0x10] sm:$0xf]
      %v2515 = vld [vmem:[%s1774 + $0x20] sm:$0xf]
      %v2516 = vld [vmem:[%s1774 + $0x30] sm:$0xf]
      %v2517 = vld [vmem:[%s1774 + $0x40] sm:$0xf]
      %v2518 = vld [vmem:[%s1774 + $0x50] sm:$0xf]
      %v2519 = vld [vmem:[%s1774 + $0x60] sm:$0xf]
      %v2520 = vld [vmem:[%s1774 + $0x70] sm:$0xf]
      %2521 = vst.msk [vmem:[#allocation2 + $0x30] sm:$0xf] %vm1571, %v2513
      %2522 = vst.msk [vmem:[#allocation2 + $0x68] sm:$0xf] %vm1571, %v2514
      %2523 = vst.msk [vmem:[#allocation2 + $0xa0] sm:$0xf] %vm1571, %v2515
      %2524 = vst.msk [vmem:[#allocation2 + $0xd8] sm:$0xf] %vm1571, %v2516
      %2525 = vst.msk [vmem:[#allocation2 + $0x110] sm:$0xf] %vm1571, %v2517
      %2526 = vst.msk [vmem:[#allocation2 + $0x148] sm:$0xf] %vm1571, %v2518
      %2527 = vst.msk [vmem:[#allocation2 + $0x180] sm:$0xf] %vm1571, %v2519
      %2528 = vst.msk [vmem:[#allocation2 + $0x1b8] sm:$0xf] %vm1571, %v2520
      %v2529 = vld [vmem:[%s1774 + $0x4] sm:$0xc]
      %v2530 = vld [vmem:[%s1774 + $0x8] sm:$0x3]
      %v2531 = vld [vmem:[%s1774 + $0x14] sm:$0xc]
      %v2532 = vld [vmem:[%s1774 + $0x18] sm:$0x3]
      %v2533 = vld [vmem:[%s1774 + $0x24] sm:$0xc]
      %v2534 = vld [vmem:[%s1774 + $0x28] sm:$0x3]
      %v2535 = vld [vmem:[%s1774 + $0x34] sm:$0xc]
      %v2536 = vld [vmem:[%s1774 + $0x38] sm:$0x3]
      %v2537 = vld [vmem:[%s1774 + $0x44] sm:$0xc]
      %v2538 = vld [vmem:[%s1774 + $0x48] sm:$0x3]
      %v2539 = vld [vmem:[%s1774 + $0x54] sm:$0xc]
      %v2540 = vld [vmem:[%s1774 + $0x58] sm:$0x3]
      %v2541 = vld [vmem:[%s1774 + $0x64] sm:$0xc]
      %v2542 = vld [vmem:[%s1774 + $0x68] sm:$0x3]
      %v2543 = vld [vmem:[%s1774 + $0x74] sm:$0xc]
      %v2544 = vld [vmem:[%s1774 + $0x78] sm:$0x3]
      %v2561 = vrot.slane %v2529, 6
      %v2562 = vrot.slane %v2561, 4
      %v2563 = vrot.slane %v2530, 6
      %v2564 = vsel %vm338, %v2562, %v2563
      %v2565 = vrot.slane %v2531, 6
      %v2566 = vrot.slane %v2565, 4
      %v2567 = vrot.slane %v2532, 6
      %v2568 = vsel %vm338, %v2566, %v2567
      %v2569 = vrot.slane %v2533, 6
      %v2570 = vrot.slane %v2569, 4
      %v2571 = vrot.slane %v2534, 6
      %v2572 = vsel %vm338, %v2570, %v2571
      %v2573 = vrot.slane %v2535, 6
      %v2574 = vrot.slane %v2573, 4
      %v2575 = vrot.slane %v2536, 6
      %v2576 = vsel %vm338, %v2574, %v2575
      %v2577 = vrot.slane %v2537, 6
      %v2578 = vrot.slane %v2577, 4
      %v2579 = vrot.slane %v2538, 6
      %v2580 = vsel %vm338, %v2578, %v2579
      %v2581 = vrot.slane %v2539, 6
      %v2582 = vrot.slane %v2581, 4
      %v2583 = vrot.slane %v2540, 6
      %v2584 = vsel %vm338, %v2582, %v2583
      %v2585 = vrot.slane %v2541, 6
      %v2586 = vrot.slane %v2585, 4
      %v2587 = vrot.slane %v2542, 6
      %v2588 = vsel %vm338, %v2586, %v2587
      %v2589 = vrot.slane %v2543, 6
      %v2590 = vrot.slane %v2589, 4
      %v2591 = vrot.slane %v2544, 6
      %v2592 = vsel %vm338, %v2590, %v2591
      %2593 = vrot.lane.b32.xlu0 %v2564, 32
      %v2594 = vpop.permute.xlu0 %2593
      %2595 = vrot.lane.b32.xlu0 %v2568, 32
      %v2596 = vpop.permute.xlu0 %2595
      %2597 = vrot.lane.b32.xlu0 %v2572, 32
      %v2598 = vpop.permute.xlu0 %2597
      %2599 = vrot.lane.b32.xlu0 %v2576, 32
      %v2600 = vpop.permute.xlu0 %2599
      %2601 = vrot.lane.b32.xlu0 %v2580, 32
      %v2602 = vpop.permute.xlu0 %2601
      %2603 = vrot.lane.b32.xlu0 %v2584, 32
      %v2604 = vpop.permute.xlu0 %2603
      %2605 = vrot.lane.b32.xlu0 %v2588, 32
      %v2606 = vpop.permute.xlu0 %2605
      %2607 = vrot.lane.b32.xlu0 %v2592, 32
      %v2608 = vpop.permute.xlu0 %2607
      %2617 = vst.msk [vmem:[#allocation2 + $0x30] sm:$0xf] %vm1668, %v2594
      %2618 = vst.msk [vmem:[#allocation2 + $0x68] sm:$0xf] %vm1668, %v2596
      %2619 = vst.msk [vmem:[#allocation2 + $0xa0] sm:$0xf] %vm1668, %v2598
      %2620 = vst.msk [vmem:[#allocation2 + $0xd8] sm:$0xf] %vm1668, %v2600
      %2621 = vst.msk [vmem:[#allocation2 + $0x110] sm:$0xf] %vm1668, %v2602
      %2622 = vst.msk [vmem:[#allocation2 + $0x148] sm:$0xf] %vm1668, %v2604
      %2623 = vst.msk [vmem:[#allocation2 + $0x180] sm:$0xf] %vm1668, %v2606
      %2624 = vst.msk [vmem:[#allocation2 + $0x1b8] sm:$0xf] %vm1668, %v2608
      %v2625 = vld [vmem:[%s1774 + $0xc] sm:$0xf]
      %v2626 = vld [vmem:[%s1774 + $0x1c] sm:$0xf]
      %v2627 = vld [vmem:[%s1774 + $0x2c] sm:$0xf]
      %v2628 = vld [vmem:[%s1774 + $0x3c] sm:$0xf]
      %v2629 = vld [vmem:[%s1774 + $0x4c] sm:$0xf]
      %v2630 = vld [vmem:[%s1774 + $0x5c] sm:$0xf]
      %v2631 = vld [vmem:[%s1774 + $0x6c] sm:$0xf]
      %v2632 = vld [vmem:[%s1774 + $0x7c] sm:$0xf]
      %2641 = vrot.lane.b32.xlu0 %v2625, 64
      %v2642 = vpop.permute.xlu0 %2641
      %2643 = vrot.lane.b32.xlu0 %v2626, 64
      %v2644 = vpop.permute.xlu0 %2643
      %2645 = vrot.lane.b32.xlu0 %v2627, 64
      %v2646 = vpop.permute.xlu0 %2645
      %2647 = vrot.lane.b32.xlu0 %v2628, 64
      %v2648 = vpop.permute.xlu0 %2647
      %2649 = vrot.lane.b32.xlu0 %v2629, 64
      %v2650 = vpop.permute.xlu0 %2649
      %2651 = vrot.lane.b32.xlu0 %v2630, 64
      %v2652 = vpop.permute.xlu0 %2651
      %2653 = vrot.lane.b32.xlu0 %v2631, 64
      %v2654 = vpop.permute.xlu0 %2653
      %2655 = vrot.lane.b32.xlu0 %v2632, 64
      %v2656 = vpop.permute.xlu0 %2655
      %2665 = vst.msk [vmem:[#allocation2 + $0x30] sm:$0xf] %vm1765, %v2642
      %2666 = vst.msk [vmem:[#allocation2 + $0x68] sm:$0xf] %vm1765, %v2644
      %2667 = vst.msk [vmem:[#allocation2 + $0xa0] sm:$0xf] %vm1765, %v2646
      %2668 = vst.msk [vmem:[#allocation2 + $0xd8] sm:$0xf] %vm1765, %v2648
      %2669 = vst.msk [vmem:[#allocation2 + $0x110] sm:$0xf] %vm1765, %v2650
      %2670 = vst.msk [vmem:[#allocation2 + $0x148] sm:$0xf] %vm1765, %v2652
      %2671 = vst.msk [vmem:[#allocation2 + $0x180] sm:$0xf] %vm1765, %v2654
      %2672 = vst.msk [vmem:[#allocation2 + $0x1b8] sm:$0xf] %vm1765, %v2656
      %s2673 = scalar_lea.vmem %s212, 384
      %v2674 = vld [vmem:[%s2673] sm:$0xf]
      %v2675 = vld [vmem:[%s2673 + $0x10] sm:$0xf]
      %v2676 = vld [vmem:[%s2673 + $0x20] sm:$0xf]
      %v2677 = vld [vmem:[%s2673 + $0x30] sm:$0xf]
      %v2678 = vld [vmem:[%s2673 + $0x40] sm:$0xf]
      %v2679 = vld [vmem:[%s2673 + $0x50] sm:$0xf]
      %v2680 = vld [vmem:[%s2673 + $0x60] sm:$0xf]
      %v2681 = vld [vmem:[%s2673 + $0x70] sm:$0xf]
      %2690 = vrot.lane.b32.xlu0 %v2674, 96
      %v2691 = vpop.permute.xlu0 %2690
      %2692 = vrot.lane.b32.xlu0 %v2675, 96
      %v2693 = vpop.permute.xlu0 %2692
      %2694 = vrot.lane.b32.xlu0 %v2676, 96
      %v2695 = vpop.permute.xlu0 %2694
      %2696 = vrot.lane.b32.xlu0 %v2677, 96
      %v2697 = vpop.permute.xlu0 %2696
      %2698 = vrot.lane.b32.xlu0 %v2678, 96
      %v2699 = vpop.permute.xlu0 %2698
      %2700 = vrot.lane.b32.xlu0 %v2679, 96
      %v2701 = vpop.permute.xlu0 %2700
      %2702 = vrot.lane.b32.xlu0 %v2680, 96
      %v2703 = vpop.permute.xlu0 %2702
      %2704 = vrot.lane.b32.xlu0 %v2681, 96
      %v2705 = vpop.permute.xlu0 %2704
      %2714 = vst.msk [vmem:[#allocation2 + $0x30] sm:$0xf] %vm1863, %v2691
      %2715 = vst.msk [vmem:[#allocation2 + $0x68] sm:$0xf] %vm1863, %v2693
      %2716 = vst.msk [vmem:[#allocation2 + $0xa0] sm:$0xf] %vm1863, %v2695
      %2717 = vst.msk [vmem:[#allocation2 + $0xd8] sm:$0xf] %vm1863, %v2697
      %2718 = vst.msk [vmem:[#allocation2 + $0x110] sm:$0xf] %vm1863, %v2699
      %2719 = vst.msk [vmem:[#allocation2 + $0x148] sm:$0xf] %vm1863, %v2701
      %2720 = vst.msk [vmem:[#allocation2 + $0x180] sm:$0xf] %vm1863, %v2703
      %2721 = vst.msk [vmem:[#allocation2 + $0x1b8] sm:$0xf] %vm1863, %v2705
      %v2722 = vld [vmem:[%s2673 + $0x4] sm:$0xc]
      %v2723 = vld [vmem:[%s2673 + $0x8] sm:$0x3]
      %v2724 = vld [vmem:[%s2673 + $0x14] sm:$0xc]
      %v2725 = vld [vmem:[%s2673 + $0x18] sm:$0x3]
      %v2726 = vld [vmem:[%s2673 + $0x24] sm:$0xc]
      %v2727 = vld [vmem:[%s2673 + $0x28] sm:$0x3]
      %v2728 = vld [vmem:[%s2673 + $0x34] sm:$0xc]
      %v2729 = vld [vmem:[%s2673 + $0x38] sm:$0x3]
      %v2730 = vld [vmem:[%s2673 + $0x44] sm:$0xc]
      %v2731 = vld [vmem:[%s2673 + $0x48] sm:$0x3]
      %v2732 = vld [vmem:[%s2673 + $0x54] sm:$0xc]
      %v2733 = vld [vmem:[%s2673 + $0x58] sm:$0x3]
      %v2734 = vld [vmem:[%s2673 + $0x64] sm:$0xc]
      %v2735 = vld [vmem:[%s2673 + $0x68] sm:$0x3]
      %v2736 = vld [vmem:[%s2673 + $0x74] sm:$0xc]
      %v2737 = vld [vmem:[%s2673 + $0x78] sm:$0x3]
      %v2754 = vrot.slane %v2722, 6
      %v2755 = vrot.slane %v2754, 4
      %v2756 = vrot.slane %v2723, 6
      %v2757 = vsel %vm338, %v2755, %v2756
      %v2758 = vrot.slane %v2724, 6
      %v2759 = vrot.slane %v2758, 4
      %v2760 = vrot.slane %v2725, 6
      %v2761 = vsel %vm338, %v2759, %v2760
      %v2762 = vrot.slane %v2726, 6
      %v2763 = vrot.slane %v2762, 4
      %v2764 = vrot.slane %v2727, 6
      %v2765 = vsel %vm338, %v2763, %v2764
      %v2766 = vrot.slane %v2728, 6
      %v2767 = vrot.slane %v2766, 4
      %v2768 = vrot.slane %v2729, 6
      %v2769 = vsel %vm338, %v2767, %v2768
      %v2770 = vrot.slane %v2730, 6
      %v2771 = vrot.slane %v2770, 4
      %v2772 = vrot.slane %v2731, 6
      %v2773 = vsel %vm338, %v2771, %v2772
      %v2774 = vrot.slane %v2732, 6
      %v2775 = vrot.slane %v2774, 4
      %v2776 = vrot.slane %v2733, 6
      %v2777 = vsel %vm338, %v2775, %v2776
      %v2778 = vrot.slane %v2734, 6
      %v2779 = vrot.slane %v2778, 4
      %v2780 = vrot.slane %v2735, 6
      %v2781 = vsel %vm338, %v2779, %v2780
      %v2782 = vrot.slane %v2736, 6
      %v2783 = vrot.slane %v2782, 4
      %v2784 = vrot.slane %v2737, 6
      %v2785 = vsel %vm338, %v2783, %v2784
      %2794 = vst.msk [vmem:[#allocation2 + $0x34] sm:$0xf] %vm1571, %v2757
      %2795 = vst.msk [vmem:[#allocation2 + $0x6c] sm:$0xf] %vm1571, %v2761
      %2796 = vst.msk [vmem:[#allocation2 + $0xa4] sm:$0xf] %vm1571, %v2765
      %2797 = vst.msk [vmem:[#allocation2 + $0xdc] sm:$0xf] %vm1571, %v2769
      %2798 = vst.msk [vmem:[#allocation2 + $0x114] sm:$0xf] %vm1571, %v2773
      %2799 = vst.msk [vmem:[#allocation2 + $0x14c] sm:$0xf] %vm1571, %v2777
      %2800 = vst.msk [vmem:[#allocation2 + $0x184] sm:$0xf] %vm1571, %v2781
      %2801 = vst.msk [vmem:[#allocation2 + $0x1bc] sm:$0xf] %vm1571, %v2785
      %v2802 = vld [vmem:[%s2673 + $0xc] sm:$0xf]
      %v2803 = vld [vmem:[%s2673 + $0x1c] sm:$0xf]
      %v2804 = vld [vmem:[%s2673 + $0x2c] sm:$0xf]
      %v2805 = vld [vmem:[%s2673 + $0x3c] sm:$0xf]
      %v2806 = vld [vmem:[%s2673 + $0x4c] sm:$0xf]
      %v2807 = vld [vmem:[%s2673 + $0x5c] sm:$0xf]
      %v2808 = vld [vmem:[%s2673 + $0x6c] sm:$0xf]
      %v2809 = vld [vmem:[%s2673 + $0x7c] sm:$0xf]
      %2818 = vrot.lane.b32.xlu0 %v2802, 32
      %v2819 = vpop.permute.xlu0 %2818
      %2820 = vrot.lane.b32.xlu0 %v2803, 32
      %v2821 = vpop.permute.xlu0 %2820
      %2822 = vrot.lane.b32.xlu0 %v2804, 32
      %v2823 = vpop.permute.xlu0 %2822
      %2824 = vrot.lane.b32.xlu0 %v2805, 32
      %v2825 = vpop.permute.xlu0 %2824
      %2826 = vrot.lane.b32.xlu0 %v2806, 32
      %v2827 = vpop.permute.xlu0 %2826
      %2828 = vrot.lane.b32.xlu0 %v2807, 32
      %v2829 = vpop.permute.xlu0 %2828
      %2830 = vrot.lane.b32.xlu0 %v2808, 32
      %v2831 = vpop.permute.xlu0 %2830
      %2832 = vrot.lane.b32.xlu0 %v2809, 32
      %v2833 = vpop.permute.xlu0 %2832
      %2842 = vst.msk [vmem:[#allocation2 + $0x34] sm:$0xf] %vm1668, %v2819
      %2843 = vst.msk [vmem:[#allocation2 + $0x6c] sm:$0xf] %vm1668, %v2821
      %2844 = vst.msk [vmem:[#allocation2 + $0xa4] sm:$0xf] %vm1668, %v2823
      %2845 = vst.msk [vmem:[#allocation2 + $0xdc] sm:$0xf] %vm1668, %v2825
      %2846 = vst.msk [vmem:[#allocation2 + $0x114] sm:$0xf] %vm1668, %v2827
      %2847 = vst.msk [vmem:[#allocation2 + $0x14c] sm:$0xf] %vm1668, %v2829
      %2848 = vst.msk [vmem:[#allocation2 + $0x184] sm:$0xf] %vm1668, %v2831
      %2849 = vst.msk [vmem:[#allocation2 + $0x1bc] sm:$0xf] %vm1668, %v2833
      %v2850 = vld [vmem:[#allocation2] sm:$0xff]
      %v2851 = vld [vmem:[#allocation2 + $0x8] sm:$0xff]
      %v2852 = vld [vmem:[#allocation2 + $0x10] sm:$0xff]
      %v2853 = vld [vmem:[#allocation2 + $0x18] sm:$0xff]
      %v2854 = vld [vmem:[#allocation2 + $0x20] sm:$0xff]
      %v2855 = vld [vmem:[#allocation2 + $0x28] sm:$0xff]
      %v2856 = vld [vmem:[#allocation2 + $0x30] sm:$0xff]
      %v2857 = vld [vmem:[#allocation2 + $0x38] sm:$0xff]
      %v2858 = vld [vmem:[#allocation2 + $0x40] sm:$0xff]
      %v2859 = vld [vmem:[#allocation2 + $0x48] sm:$0xff]
      %v2860 = vld [vmem:[#allocation2 + $0x50] sm:$0xff]
      %v2861 = vld [vmem:[#allocation2 + $0x58] sm:$0xff]
      %v2862 = vld [vmem:[#allocation2 + $0x60] sm:$0xff]
      %v2863 = vld [vmem:[#allocation2 + $0x68] sm:$0xff]
      %v2864 = vld [vmem:[#allocation2 + $0x70] sm:$0xff]
      %v2865 = vld [vmem:[#allocation2 + $0x78] sm:$0xff]
      %v2866 = vld [vmem:[#allocation2 + $0x80] sm:$0xff]
      %v2867 = vld [vmem:[#allocation2 + $0x88] sm:$0xff]
      %v2868 = vld [vmem:[#allocation2 + $0x90] sm:$0xff]
      %v2869 = vld [vmem:[#allocation2 + $0x98] sm:$0xff]
      %v2870 = vld [vmem:[#allocation2 + $0xa0] sm:$0xff]
      %v2871 = vld [vmem:[#allocation2 + $0xa8] sm:$0xff]
      %v2872 = vld [vmem:[#allocation2 + $0xb0] sm:$0xff]
      %v2873 = vld [vmem:[#allocation2 + $0xb8] sm:$0xff]
      %v2874 = vld [vmem:[#allocation2 + $0xc0] sm:$0xff]
      %v2875 = vld [vmem:[#allocation2 + $0xc8] sm:$0xff]
      %v2876 = vld [vmem:[#allocation2 + $0xd0] sm:$0xff]
      %v2877 = vld [vmem:[#allocation2 + $0xd8] sm:$0xff]
      %v2878 = vld [vmem:[#allocation2 + $0xe0] sm:$0xff]
      %v2879 = vld [vmem:[#allocation2 + $0xe8] sm:$0xff]
      %v2880 = vld [vmem:[#allocation2 + $0xf0] sm:$0xff]
      %v2881 = vld [vmem:[#allocation2 + $0xf8] sm:$0xff]
      %v2882 = vld [vmem:[#allocation2 + $0x100] sm:$0xff]
      %v2883 = vld [vmem:[#allocation2 + $0x108] sm:$0xff]
      %v2884 = vld [vmem:[#allocation2 + $0x110] sm:$0xff]
      %v2885 = vld [vmem:[#allocation2 + $0x118] sm:$0xff]
      %v2886 = vld [vmem:[#allocation2 + $0x120] sm:$0xff]
      %v2887 = vld [vmem:[#allocation2 + $0x128] sm:$0xff]
      %v2888 = vld [vmem:[#allocation2 + $0x130] sm:$0xff]
      %v2889 = vld [vmem:[#allocation2 + $0x138] sm:$0xff]
      %v2890 = vld [vmem:[#allocation2 + $0x140] sm:$0xff]
      %v2891 = vld [vmem:[#allocation2 + $0x148] sm:$0xff]
      %v2892 = vld [vmem:[#allocation2 + $0x150] sm:$0xff]
      %v2893 = vld [vmem:[#allocation2 + $0x158] sm:$0xff]
      %v2894 = vld [vmem:[#allocation2 + $0x160] sm:$0xff]
      %v2895 = vld [vmem:[#allocation2 + $0x168] sm:$0xff]
      %v2896 = vld [vmem:[#allocation2 + $0x170] sm:$0xff]
      %v2897 = vld [vmem:[#allocation2 + $0x178] sm:$0xff]
      %v2898 = vld [vmem:[#allocation2 + $0x180] sm:$0xff]
      %v2899 = vld [vmem:[#allocation2 + $0x188] sm:$0xff]
      %v2900 = vld [vmem:[#allocation2 + $0x190] sm:$0xff]
      %v2901 = vld [vmem:[#allocation2 + $0x198] sm:$0xff]
      %v2902 = vld [vmem:[#allocation2 + $0x1a0] sm:$0xff]
      %v2903 = vld [vmem:[#allocation2 + $0x1a8] sm:$0xff]
      %v2904 = vld [vmem:[#allocation2 + $0x1b0] sm:$0xff]
      %v2905 = vld [vmem:[#allocation2 + $0x1b8] sm:$0xff]
      %v2906 = vld [vmem:[%s2] sm:$0xf]
      %v2907 = vld [vmem:[%s2 + $0x4] sm:$0xf]
      %v2908 = vld [vmem:[%s2 + $0x8] sm:$0xf]
      %v2909 = vld [vmem:[%s2 + $0xc] sm:$0xf]
      %v2910 = vld [vmem:[%s2 + $0x10] sm:$0xf]
      %v2911 = vld [vmem:[%s2 + $0x14] sm:$0xf]
      %v2912 = vld [vmem:[%s2 + $0x18] sm:$0xf]
      %v2913 = vld [vmem:[%s2 + $0x1c] sm:$0xf]
      %v2914 = vld [vmem:[%s2 + $0x20] sm:$0xf]
      %v2915 = vld [vmem:[%s2 + $0x24] sm:$0xf]
      %v2916 = vld [vmem:[%s2 + $0x28] sm:$0xf]
      %v2917 = vld [vmem:[%s2 + $0x2c] sm:$0xf]
      %v2918 = vld [vmem:[%s2 + $0x30] sm:$0xf]
      %v2919 = vld [vmem:[%s2 + $0x34] sm:$0xf]
      %v2920 = vld [vmem:[%s2 + $0x38] sm:$0xf]
      %v2921 = vld [vmem:[%s2 + $0x3c] sm:$0xf]
      %v2922 = vld [vmem:[%s2 + $0x40] sm:$0xf]
      %v2923 = vld [vmem:[%s2 + $0x44] sm:$0xf]
      %v2924 = vld [vmem:[%s2 + $0x48] sm:$0xf]
      %v2925 = vld [vmem:[%s2 + $0x4c] sm:$0xf]
      %v2926 = vld [vmem:[%s2 + $0x50] sm:$0xf]
      %v2927 = vld [vmem:[%s2 + $0x54] sm:$0xf]
      %v2928 = vld [vmem:[%s2 + $0x58] sm:$0xf]
      %v2929 = vld [vmem:[%s2 + $0x5c] sm:$0xf]
      %v2930 = vld [vmem:[%s2 + $0x60] sm:$0xf]
      %v2931 = vld [vmem:[%s2 + $0x64] sm:$0xf]
      %v2932 = vld [vmem:[%s2 + $0x68] sm:$0xf]
      %v2933 = vld [vmem:[%s2 + $0x6c] sm:$0xf]
      %v2934 = vld [vmem:[%s2 + $0x70] sm:$0xf]
      %v2935 = vld [vmem:[%s2 + $0x74] sm:$0xf]
      %v2936 = vld [vmem:[%s2 + $0x78] sm:$0xf]
      %v2937 = vld [vmem:[%s2 + $0x7c] sm:$0xf]
      %v2938 = vld [vmem:[%s2 + $0x80] sm:$0xf]
      %v2939 = vld [vmem:[%s2 + $0x84] sm:$0xf]
      %v2940 = vld [vmem:[%s2 + $0x88] sm:$0xf]
      %v2941 = vld [vmem:[%s2 + $0x8c] sm:$0xf]
      %v2942 = vld [vmem:[%s2 + $0x90] sm:$0xf]
      %v2943 = vld [vmem:[%s2 + $0x94] sm:$0xf]
      %v2944 = vld [vmem:[%s2 + $0x98] sm:$0xf]
      %v2945 = vld [vmem:[%s2 + $0x9c] sm:$0xf]
      %v2946 = vld [vmem:[%s2 + $0xa0] sm:$0xf]
      %v2947 = vld [vmem:[%s2 + $0xa4] sm:$0xf]
      %v2948 = vld [vmem:[%s2 + $0xa8] sm:$0xf]
      %v2949 = vld [vmem:[%s2 + $0xac] sm:$0xf]
      %v2950 = vld [vmem:[%s2 + $0xb0] sm:$0xf]
      %v2951 = vld [vmem:[%s2 + $0xb4] sm:$0xf]
      %v2952 = vld [vmem:[%s2 + $0xb8] sm:$0xf]
      %v2953 = vld [vmem:[%s2 + $0xbc] sm:$0xf]
      %v2954 = vld [vmem:[%s2 + $0xc0] sm:$0xf]
      %v2955 = vld [vmem:[%s2 + $0xc4] sm:$0xf]
      %v2956 = vld [vmem:[%s2 + $0xc8] sm:$0xf]
      %v2957 = vld [vmem:[%s2 + $0xcc] sm:$0xf]
      %v2958 = vld [vmem:[%s2 + $0xd0] sm:$0xf]
      %v2959 = vld [vmem:[%s2 + $0xd4] sm:$0xf]
      %v2960 = vld [vmem:[%s2 + $0xd8] sm:$0xf]
      %v2961 = vld [vmem:[%s2 + $0xdc] sm:$0xf]
      %v2962 = vld [vmem:[%s2 + $0xe0] sm:$0xf]
      %v2963 = vld [vmem:[%s2 + $0xe4] sm:$0xf]
      %v2964 = vld [vmem:[%s2 + $0xe8] sm:$0xf]
      %v2965 = vld [vmem:[%s2 + $0xec] sm:$0xf]
      %v2966 = vld [vmem:[%s2 + $0xf0] sm:$0xf]
      %v2967 = vld [vmem:[%s2 + $0xf4] sm:$0xf]
      %v2968 = vld [vmem:[%s2 + $0xf8] sm:$0xf]
      %v2969 = vld [vmem:[%s2 + $0xfc] sm:$0xf]
      %v2970 = vld [vmem:[%s2 + $0x100] sm:$0xf]
      %v2971 = vld [vmem:[%s2 + $0x104] sm:$0xf]
      %v2972 = vld [vmem:[%s2 + $0x108] sm:$0xf]
      %v2973 = vld [vmem:[%s2 + $0x10c] sm:$0xf]
      %v2974 = vld [vmem:[%s2 + $0x110] sm:$0xf]
      %v2975 = vld [vmem:[%s2 + $0x114] sm:$0xf]
      %v2976 = vld [vmem:[%s2 + $0x118] sm:$0xf]
      %v2977 = vld [vmem:[%s2 + $0x11c] sm:$0xf]
      %v2978 = vld [vmem:[%s2 + $0x120] sm:$0xf]
      %v2979 = vld [vmem:[%s2 + $0x124] sm:$0xf]
      %v2980 = vld [vmem:[%s2 + $0x128] sm:$0xf]
      %v2981 = vld [vmem:[%s2 + $0x12c] sm:$0xf]
      %v2982 = vld [vmem:[%s2 + $0x130] sm:$0xf]
      %v2983 = vld [vmem:[%s2 + $0x134] sm:$0xf]
      %v2984 = vld [vmem:[%s2 + $0x138] sm:$0xf]
      %v2985 = vld [vmem:[%s2 + $0x13c] sm:$0xf]
      %v2986 = vld [vmem:[%s2 + $0x140] sm:$0xf]
      %v2987 = vld [vmem:[%s2 + $0x144] sm:$0xf]
      %v2988 = vld [vmem:[%s2 + $0x148] sm:$0xf]
      %v2989 = vld [vmem:[%s2 + $0x14c] sm:$0xf]
      %v2990 = vld [vmem:[%s2 + $0x150] sm:$0xf]
      %v2991 = vld [vmem:[%s2 + $0x154] sm:$0xf]
      %v2992 = vld [vmem:[%s2 + $0x158] sm:$0xf]
      %v2993 = vld [vmem:[%s2 + $0x15c] sm:$0xf]
      %v2994 = vld [vmem:[%s2 + $0x160] sm:$0xf]
      %v2995 = vld [vmem:[%s2 + $0x164] sm:$0xf]
      %v2996 = vld [vmem:[%s2 + $0x168] sm:$0xf]
      %v2997 = vld [vmem:[%s2 + $0x16c] sm:$0xf]
      %v2998 = vld [vmem:[%s2 + $0x170] sm:$0xf]
      %v2999 = vld [vmem:[%s2 + $0x174] sm:$0xf]
      %v3000 = vld [vmem:[%s2 + $0x178] sm:$0xf]
      %v3001 = vld [vmem:[%s2 + $0x17c] sm:$0xf]
      %v3002 = vld [vmem:[%s2 + $0x180] sm:$0xf]
      %v3003 = vld [vmem:[%s2 + $0x184] sm:$0xf]
      %v3004 = vld [vmem:[%s2 + $0x188] sm:$0xf]
      %v3005 = vld [vmem:[%s2 + $0x18c] sm:$0xf]
      %v3006 = vld [vmem:[%s2 + $0x190] sm:$0xf]
      %v3007 = vld [vmem:[%s2 + $0x194] sm:$0xf]
      %v3008 = vld [vmem:[%s2 + $0x198] sm:$0xf]
      %v3009 = vld [vmem:[%s2 + $0x19c] sm:$0xf]
      %v3010 = vld [vmem:[%s2 + $0x1a0] sm:$0xf]
      %v3011 = vld [vmem:[%s2 + $0x1a4] sm:$0xf]
      %v3012 = vld [vmem:[%s2 + $0x1a8] sm:$0xf]
      %v3013 = vld [vmem:[%s2 + $0x1ac] sm:$0xf]
      %v3014 = vld [vmem:[%s2 + $0x1b0] sm:$0xf]
      %v3015 = vld [vmem:[%s2 + $0x1b4] sm:$0xf]
      %v3016 = vld [vmem:[%s2 + $0x1b8] sm:$0xf]
      %v3017 = vld [vmem:[%s2 + $0x1bc] sm:$0xf]
      %v3018 = vld [vmem:[%s2 + $0x1c0] sm:$0xf]
      %v3019 = vld [vmem:[%s2 + $0x1c4] sm:$0xf]
      %v3020 = vld [vmem:[%s2 + $0x1c8] sm:$0xf]
      %v3021 = vld [vmem:[%s2 + $0x1cc] sm:$0xf]
      %v3022 = vld [vmem:[%s2 + $0x1d0] sm:$0xf]
      %v3023 = vld [vmem:[%s2 + $0x1d4] sm:$0xf]
      %v3024 = vld [vmem:[%s2 + $0x1d8] sm:$0xf]
      %v3025 = vld [vmem:[%s2 + $0x1dc] sm:$0xf]
      %v3026 = vld [vmem:[%s2 + $0x1e0] sm:$0xf]
      %v3027 = vld [vmem:[%s2 + $0x1e4] sm:$0xf]
      %v3028 = vld [vmem:[%s2 + $0x1e8] sm:$0xf]
      %v3029 = vld [vmem:[%s2 + $0x1ec] sm:$0xf]
      %v3030 = vld [vmem:[%s2 + $0x1f0] sm:$0xf]
      %v3031 = vld [vmem:[%s2 + $0x1f4] sm:$0xf]
      %v3032 = vld [vmem:[%s2 + $0x1f8] sm:$0xf]
      %v3033 = vld [vmem:[%s2 + $0x1fc] sm:$0xf]
      %v3034 = vld [vmem:[%s2 + $0x200] sm:$0xf]
      %v3035 = vld [vmem:[%s2 + $0x204] sm:$0xf]
      %v3036 = vld [vmem:[%s2 + $0x208] sm:$0xf]
      %v3037 = vld [vmem:[%s2 + $0x20c] sm:$0xf]
      %v3038 = vld [vmem:[%s2 + $0x210] sm:$0xf]
      %v3039 = vld [vmem:[%s2 + $0x214] sm:$0xf]
      %v3040 = vld [vmem:[%s2 + $0x218] sm:$0xf]
      %v3041 = vld [vmem:[%s2 + $0x21c] sm:$0xf]
      %v3042 = vld [vmem:[%s2 + $0x220] sm:$0xf]
      %v3043 = vld [vmem:[%s2 + $0x224] sm:$0xf]
      %v3044 = vld [vmem:[%s2 + $0x228] sm:$0xf]
      %v3045 = vld [vmem:[%s2 + $0x22c] sm:$0xf]
      %v3046 = vld [vmem:[%s2 + $0x230] sm:$0xf]
      %v3047 = vld [vmem:[%s2 + $0x234] sm:$0xf]
      %v3048 = vld [vmem:[%s2 + $0x238] sm:$0xf]
      %v3049 = vld [vmem:[%s2 + $0x23c] sm:$0xf]
      %v3050 = vld [vmem:[%s2 + $0x240] sm:$0xf]
      %v3051 = vld [vmem:[%s2 + $0x244] sm:$0xf]
      %v3052 = vld [vmem:[%s2 + $0x248] sm:$0xf]
      %v3053 = vld [vmem:[%s2 + $0x24c] sm:$0xf]
      %v3054 = vld [vmem:[%s2 + $0x250] sm:$0xf]
      %v3055 = vld [vmem:[%s2 + $0x254] sm:$0xf]
      %v3056 = vld [vmem:[%s2 + $0x258] sm:$0xf]
      %v3057 = vld [vmem:[%s2 + $0x25c] sm:$0xf]
      %v3058 = vld [vmem:[%s2 + $0x260] sm:$0xf]
      %v3059 = vld [vmem:[%s2 + $0x264] sm:$0xf]
      %v3060 = vld [vmem:[%s2 + $0x268] sm:$0xf]
      %v3061 = vld [vmem:[%s2 + $0x26c] sm:$0xf]
      %v3062 = vld [vmem:[%s2 + $0x270] sm:$0xf]
      %v3063 = vld [vmem:[%s2 + $0x274] sm:$0xf]
      %v3064 = vld [vmem:[%s2 + $0x278] sm:$0xf]
      %v3065 = vld [vmem:[%s2 + $0x27c] sm:$0xf]
      %v3066 = vld [vmem:[%s2 + $0x280] sm:$0xf]
      %v3067 = vld [vmem:[%s2 + $0x284] sm:$0xf]
      %v3068 = vld [vmem:[%s2 + $0x288] sm:$0xf]
      %v3069 = vld [vmem:[%s2 + $0x28c] sm:$0xf]
      %v3070 = vld [vmem:[%s2 + $0x290] sm:$0xf]
      %v3071 = vld [vmem:[%s2 + $0x294] sm:$0xf]
      %v3072 = vld [vmem:[%s2 + $0x298] sm:$0xf]
      %v3073 = vld [vmem:[%s2 + $0x29c] sm:$0xf]
      %v3074 = vld [vmem:[%s2 + $0x2a0] sm:$0xf]
      %v3075 = vld [vmem:[%s2 + $0x2a4] sm:$0xf]
      %v3076 = vld [vmem:[%s2 + $0x2a8] sm:$0xf]
      %v3077 = vld [vmem:[%s2 + $0x2ac] sm:$0xf]
      %v3078 = vld [vmem:[%s2 + $0x2b0] sm:$0xf]
      %v3079 = vld [vmem:[%s2 + $0x2b4] sm:$0xf]
      %v3080 = vld [vmem:[%s2 + $0x2b8] sm:$0xf]
      %v3081 = vld [vmem:[%s2 + $0x2bc] sm:$0xf]
      %v3082 = vld [vmem:[%s2 + $0x2c0] sm:$0xf]
      %v3083 = vld [vmem:[%s2 + $0x2c4] sm:$0xf]
      %v3084 = vld [vmem:[%s2 + $0x2c8] sm:$0xf]
      %v3085 = vld [vmem:[%s2 + $0x2cc] sm:$0xf]
      %v3086 = vld [vmem:[%s2 + $0x2d0] sm:$0xf]
      %v3087 = vld [vmem:[%s2 + $0x2d4] sm:$0xf]
      %v3088 = vld [vmem:[%s2 + $0x2d8] sm:$0xf]
      %v3089 = vld [vmem:[%s2 + $0x2dc] sm:$0xf]
      %v3090 = vld [vmem:[%s2 + $0x2e0] sm:$0xf]
      %v3091 = vld [vmem:[%s2 + $0x2e4] sm:$0xf]
      %v3092 = vld [vmem:[%s2 + $0x2e8] sm:$0xf]
      %v3093 = vld [vmem:[%s2 + $0x2ec] sm:$0xf]
      %v3094 = vld [vmem:[%s2 + $0x2f0] sm:$0xf]
      %v3095 = vld [vmem:[%s2 + $0x2f4] sm:$0xf]
      %v3096 = vld [vmem:[%s2 + $0x2f8] sm:$0xf]
      %v3097 = vld [vmem:[%s2 + $0x2fc] sm:$0xf]
      %v3098 = vld [vmem:[%s2 + $0x300] sm:$0xf]
      %v3099 = vld [vmem:[%s2 + $0x304] sm:$0xf]
      %v3100 = vld [vmem:[%s2 + $0x308] sm:$0xf]
      %v3101 = vld [vmem:[%s2 + $0x30c] sm:$0xf]
      %v3102 = vld [vmem:[%s2 + $0x310] sm:$0xf]
      %v3103 = vld [vmem:[%s2 + $0x314] sm:$0xf]
      %v3104 = vld [vmem:[%s2 + $0x318] sm:$0xf]
      %v3105 = vld [vmem:[%s2 + $0x31c] sm:$0xf]
      %v3106 = vld [vmem:[%s2 + $0x320] sm:$0xf]
      %v3107 = vld [vmem:[%s2 + $0x324] sm:$0xf]
      %v3108 = vld [vmem:[%s2 + $0x328] sm:$0xf]
      %v3109 = vld [vmem:[%s2 + $0x32c] sm:$0xf]
      %v3110 = vld [vmem:[%s2 + $0x330] sm:$0xf]
      %v3111 = vld [vmem:[%s2 + $0x334] sm:$0xf]
      %v3112 = vld [vmem:[%s2 + $0x338] sm:$0xf]
      %v3113 = vld [vmem:[%s2 + $0x33c] sm:$0xf]
      %v3114 = vld [vmem:[%s2 + $0x340] sm:$0xf]
      %v3115 = vld [vmem:[%s2 + $0x344] sm:$0xf]
      %v3116 = vld [vmem:[%s2 + $0x348] sm:$0xf]
      %v3117 = vld [vmem:[%s2 + $0x34c] sm:$0xf]
      %v3118 = vld [vmem:[%s2 + $0x350] sm:$0xf]
      %v3119 = vld [vmem:[%s2 + $0x354] sm:$0xf]
      %v3120 = vld [vmem:[%s2 + $0x358] sm:$0xf]
      %v3121 = vld [vmem:[%s2 + $0x35c] sm:$0xf]
      %v3122 = vld [vmem:[%s3] sm:$0x1]
      %v3124 = vlaneseq
      %v3125 = vshrl.u32 %v3124, 7
      %v3126 = vsub.s32 0, %v3125
      %v3127 = vrot.slane %v3122, %v3126
      %v3185 = vunpack.c.l.b16 %v2850
      %v3186 = vunpack.c.h.b16 %v2850
      %v3187 = vunpack.c.l.b16 %v2851
      %v3188 = vunpack.c.h.b16 %v2851
      %v3189 = vunpack.c.l.b16 %v2852
      %v3190 = vunpack.c.h.b16 %v2852
      %v3191 = vunpack.c.l.b16 %v2853
      %v3192 = vunpack.c.h.b16 %v2853
      %v3193 = vunpack.c.l.b16 %v2854
      %v3194 = vunpack.c.h.b16 %v2854
      %v3195 = vunpack.c.l.b16 %v2855
      %v3196 = vunpack.c.h.b16 %v2855
      %v3197 = vunpack.c.l.b16 %v2856
      %v3198 = vunpack.c.h.b16 %v2856
      %v3199 = vunpack.c.l.b16 %v2857
      %v3200 = vunpack.c.h.b16 %v2857
      %v3201 = vunpack.c.l.b16 %v2858
      %v3202 = vunpack.c.h.b16 %v2858
      %v3203 = vunpack.c.l.b16 %v2859
      %v3204 = vunpack.c.h.b16 %v2859
      %v3205 = vunpack.c.l.b16 %v2860
      %v3206 = vunpack.c.h.b16 %v2860
      %v3207 = vunpack.c.l.b16 %v2861
      %v3208 = vunpack.c.h.b16 %v2861
      %v3209 = vunpack.c.l.b16 %v2862
      %v3210 = vunpack.c.h.b16 %v2862
      %v3211 = vunpack.c.l.b16 %v2863
      %v3212 = vunpack.c.h.b16 %v2863
      %v3213 = vunpack.c.l.b16 %v2864
      %v3214 = vunpack.c.h.b16 %v2864
      %v3215 = vunpack.c.l.b16 %v2865
      %v3216 = vunpack.c.h.b16 %v2865
      %v3217 = vunpack.c.l.b16 %v2866
      %v3218 = vunpack.c.h.b16 %v2866
      %v3219 = vunpack.c.l.b16 %v2867
      %v3220 = vunpack.c.h.b16 %v2867
      %v3221 = vunpack.c.l.b16 %v2868
      %v3222 = vunpack.c.h.b16 %v2868
      %v3223 = vunpack.c.l.b16 %v2869
      %v3224 = vunpack.c.h.b16 %v2869
      %v3225 = vunpack.c.l.b16 %v2870
      %v3226 = vunpack.c.h.b16 %v2870
      %v3227 = vunpack.c.l.b16 %v2871
      %v3228 = vunpack.c.h.b16 %v2871
      %v3229 = vunpack.c.l.b16 %v2872
      %v3230 = vunpack.c.h.b16 %v2872
      %v3231 = vunpack.c.l.b16 %v2873
      %v3232 = vunpack.c.h.b16 %v2873
      %v3233 = vunpack.c.l.b16 %v2874
      %v3234 = vunpack.c.h.b16 %v2874
      %v3235 = vunpack.c.l.b16 %v2875
      %v3236 = vunpack.c.h.b16 %v2875
      %v3237 = vunpack.c.l.b16 %v2876
      %v3238 = vunpack.c.h.b16 %v2876
      %v3239 = vunpack.c.l.b16 %v2877
      %v3240 = vunpack.c.h.b16 %v2877
      %v3241 = vunpack.c.l.b16 %v2878
      %v3242 = vunpack.c.h.b16 %v2878
      %v3243 = vunpack.c.l.b16 %v2879
      %v3244 = vunpack.c.h.b16 %v2879
      %v3245 = vunpack.c.l.b16 %v2880
      %v3246 = vunpack.c.h.b16 %v2880
      %v3247 = vunpack.c.l.b16 %v2881
      %v3248 = vunpack.c.h.b16 %v2881
      %v3249 = vunpack.c.l.b16 %v2882
      %v3250 = vunpack.c.h.b16 %v2882
      %v3251 = vunpack.c.l.b16 %v2883
      %v3252 = vunpack.c.h.b16 %v2883
      %v3253 = vunpack.c.l.b16 %v2884
      %v3254 = vunpack.c.h.b16 %v2884
      %v3255 = vunpack.c.l.b16 %v2885
      %v3256 = vunpack.c.h.b16 %v2885
      %v3257 = vunpack.c.l.b16 %v2886
      %v3258 = vunpack.c.h.b16 %v2886
      %v3259 = vunpack.c.l.b16 %v2887
      %v3260 = vunpack.c.h.b16 %v2887
      %v3261 = vunpack.c.l.b16 %v2888
      %v3262 = vunpack.c.h.b16 %v2888
      %v3263 = vunpack.c.l.b16 %v2889
      %v3264 = vunpack.c.h.b16 %v2889
      %v3265 = vunpack.c.l.b16 %v2890
      %v3266 = vunpack.c.h.b16 %v2890
      %v3267 = vunpack.c.l.b16 %v2891
      %v3268 = vunpack.c.h.b16 %v2891
      %v3269 = vunpack.c.l.b16 %v2892
      %v3270 = vunpack.c.h.b16 %v2892
      %v3271 = vunpack.c.l.b16 %v2893
      %v3272 = vunpack.c.h.b16 %v2893
      %v3273 = vunpack.c.l.b16 %v2894
      %v3274 = vunpack.c.h.b16 %v2894
      %v3275 = vunpack.c.l.b16 %v2895
      %v3276 = vunpack.c.h.b16 %v2895
      %v3277 = vunpack.c.l.b16 %v2896
      %v3278 = vunpack.c.h.b16 %v2896
      %v3279 = vunpack.c.l.b16 %v2897
      %v3280 = vunpack.c.h.b16 %v2897
      %v3281 = vunpack.c.l.b16 %v2898
      %v3282 = vunpack.c.h.b16 %v2898
      %v3283 = vunpack.c.l.b16 %v2899
      %v3284 = vunpack.c.h.b16 %v2899
      %v3285 = vunpack.c.l.b16 %v2900
      %v3286 = vunpack.c.h.b16 %v2900
      %v3287 = vunpack.c.l.b16 %v2901
      %v3288 = vunpack.c.h.b16 %v2901
      %v3289 = vunpack.c.l.b16 %v2902
      %v3290 = vunpack.c.h.b16 %v2902
      %v3291 = vunpack.c.l.b16 %v2903
      %v3292 = vunpack.c.h.b16 %v2903
      %v3293 = vunpack.c.l.b16 %v2904
      %v3294 = vunpack.c.h.b16 %v2904
      %v3295 = vunpack.c.l.b16 %v2905
      %v3296 = vunpack.c.h.b16 %v2905
      %v3297 = vpack.c.b16 %v3199, %v3185
      %v3298 = vpack.c.b16 %v3200, %v3186
      %v3299 = vpack.c.b16 %v3201, %v3187
      %v3300 = vpack.c.b16 %v3202, %v3188
      %v3301 = vpack.c.b16 %v3203, %v3189
      %v3302 = vpack.c.b16 %v3204, %v3190
      %v3303 = vpack.c.b16 %v3205, %v3191
      %v3304 = vpack.c.b16 %v3206, %v3192
      %v3305 = vpack.c.b16 %v3207, %v3193
      %v3306 = vpack.c.b16 %v3208, %v3194
      %v3307 = vpack.c.b16 %v3209, %v3195
      %v3308 = vpack.c.b16 %v3210, %v3196
      %v3309 = vpack.c.b16 %v3211, %v3197
      %v3310 = vpack.c.b16 %v3212, %v3198
      %v3311 = vpack.c.b16 %v3227, %v3213
      %v3312 = vpack.c.b16 %v3228, %v3214
      %v3313 = vpack.c.b16 %v3229, %v3215
      %v3314 = vpack.c.b16 %v3230, %v3216
      %v3315 = vpack.c.b16 %v3231, %v3217
      %v3316 = vpack.c.b16 %v3232, %v3218
      %v3317 = vpack.c.b16 %v3233, %v3219
      %v3318 = vpack.c.b16 %v3234, %v3220
      %v3319 = vpack.c.b16 %v3235, %v3221
      %v3320 = vpack.c.b16 %v3236, %v3222
      %v3321 = vpack.c.b16 %v3237, %v3223
      %v3322 = vpack.c.b16 %v3238, %v3224
      %v3323 = vpack.c.b16 %v3239, %v3225
      %v3324 = vpack.c.b16 %v3240, %v3226
      %v3325 = vpack.c.b16 %v3255, %v3241
      %v3326 = vpack.c.b16 %v3256, %v3242
      %v3327 = vpack.c.b16 %v3257, %v3243
      %v3328 = vpack.c.b16 %v3258, %v3244
      %v3329 = vpack.c.b16 %v3259, %v3245
      %v3330 = vpack.c.b16 %v3260, %v3246
      %v3331 = vpack.c.b16 %v3261, %v3247
      %v3332 = vpack.c.b16 %v3262, %v3248
      %v3333 = vpack.c.b16 %v3263, %v3249
      %v3334 = vpack.c.b16 %v3264, %v3250
      %v3335 = vpack.c.b16 %v3265, %v3251
      %v3336 = vpack.c.b16 %v3266, %v3252
      %v3337 = vpack.c.b16 %v3267, %v3253
      %v3338 = vpack.c.b16 %v3268, %v3254
      %v3339 = vpack.c.b16 %v3283, %v3269
      %v3340 = vpack.c.b16 %v3284, %v3270
      %v3341 = vpack.c.b16 %v3285, %v3271
      %v3342 = vpack.c.b16 %v3286, %v3272
      %v3343 = vpack.c.b16 %v3287, %v3273
      %v3344 = vpack.c.b16 %v3288, %v3274
      %v3345 = vpack.c.b16 %v3289, %v3275
      %v3346 = vpack.c.b16 %v3290, %v3276
      %v3347 = vpack.c.b16 %v3291, %v3277
      %v3348 = vpack.c.b16 %v3292, %v3278
      %v3349 = vpack.c.b16 %v3293, %v3279
      %v3350 = vpack.c.b16 %v3294, %v3280
      %v3351 = vpack.c.b16 %v3295, %v3281
      %v3352 = vpack.c.b16 %v3296, %v3282
      %v3621 = vunpack.c.l.b16 %v2906
      %v3622 = vunpack.c.l.b16 %v2907
      %v3623 = vunpack.c.l.b16 %v2908
      %v3624 = vunpack.c.l.b16 %v2909
      %v3625 = vunpack.c.l.b16 %v2910
      %v3626 = vunpack.c.l.b16 %v2911
      %v3627 = vunpack.c.l.b16 %v2912
      %v3628 = vunpack.c.l.b16 %v2913
      %v3629 = vunpack.c.l.b16 %v2914
      %v3630 = vunpack.c.l.b16 %v2915
      %v3631 = vunpack.c.l.b16 %v2916
      %v3632 = vunpack.c.l.b16 %v2917
      %v3633 = vunpack.c.l.b16 %v2918
      %v3634 = vunpack.c.l.b16 %v2919
      %v3635 = vunpack.c.l.b16 %v2920
      %v3636 = vunpack.c.l.b16 %v2921
      %v3637 = vunpack.c.l.b16 %v2922
      %v3638 = vunpack.c.l.b16 %v2923
      %v3639 = vunpack.c.l.b16 %v2924
      %v3640 = vunpack.c.l.b16 %v2925
      %v3641 = vunpack.c.l.b16 %v2926
      %v3642 = vunpack.c.l.b16 %v2927
      %v3643 = vunpack.c.l.b16 %v2928
      %v3644 = vunpack.c.l.b16 %v2929
      %v3645 = vunpack.c.l.b16 %v2930
      %v3646 = vunpack.c.l.b16 %v2931
      %v3647 = vunpack.c.l.b16 %v2932
      %v3648 = vunpack.c.l.b16 %v2933
      %v3649 = vunpack.c.l.b16 %v2934
      %v3650 = vunpack.c.l.b16 %v2935
      %v3651 = vunpack.c.l.b16 %v2936
      %v3652 = vunpack.c.l.b16 %v2937
      %v3653 = vunpack.c.l.b16 %v2938
      %v3654 = vunpack.c.l.b16 %v2939
      %v3655 = vunpack.c.l.b16 %v2940
      %v3656 = vunpack.c.l.b16 %v2941
      %v3657 = vunpack.c.l.b16 %v2942
      %v3658 = vunpack.c.l.b16 %v2943
      %v3659 = vunpack.c.l.b16 %v2944
      %v3660 = vunpack.c.l.b16 %v2945
      %v3661 = vunpack.c.l.b16 %v2946
      %v3662 = vunpack.c.l.b16 %v2947
      %v3663 = vunpack.c.l.b16 %v2948
      %v3664 = vunpack.c.l.b16 %v2949
      %v3665 = vunpack.c.l.b16 %v2950
      %v3666 = vunpack.c.l.b16 %v2951
      %v3667 = vunpack.c.l.b16 %v2952
      %v3668 = vunpack.c.l.b16 %v2953
      %v3669 = vunpack.c.l.b16 %v2954
      %v3670 = vunpack.c.l.b16 %v2955
      %v3671 = vunpack.c.l.b16 %v2956
      %v3672 = vunpack.c.l.b16 %v2957
      %v3673 = vunpack.c.l.b16 %v2958
      %v3674 = vunpack.c.l.b16 %v2959
      %v3675 = vunpack.c.l.b16 %v2960
      %v3676 = vunpack.c.l.b16 %v2961
      %v3677 = vunpack.c.l.b16 %v2962
      %v3678 = vunpack.c.l.b16 %v2963
      %v3679 = vunpack.c.l.b16 %v2964
      %v3680 = vunpack.c.l.b16 %v2965
      %v3681 = vunpack.c.l.b16 %v2966
      %v3682 = vunpack.c.l.b16 %v2967
      %v3683 = vunpack.c.l.b16 %v2968
      %v3684 = vunpack.c.l.b16 %v2969
      %v3685 = vunpack.c.l.b16 %v2970
      %v3686 = vunpack.c.l.b16 %v2971
      %v3687 = vunpack.c.l.b16 %v2972
      %v3688 = vunpack.c.l.b16 %v2973
      %v3689 = vunpack.c.l.b16 %v2974
      %v3690 = vunpack.c.l.b16 %v2975
      %v3691 = vunpack.c.l.b16 %v2976
      %v3692 = vunpack.c.l.b16 %v2977
      %v3693 = vunpack.c.l.b16 %v2978
      %v3694 = vunpack.c.l.b16 %v2979
      %v3695 = vunpack.c.l.b16 %v2980
      %v3696 = vunpack.c.l.b16 %v2981
      %v3697 = vunpack.c.l.b16 %v2982
      %v3698 = vunpack.c.l.b16 %v2983
      %v3699 = vunpack.c.l.b16 %v2984
      %v3700 = vunpack.c.l.b16 %v2985
      %v3701 = vunpack.c.l.b16 %v2986
      %v3702 = vunpack.c.l.b16 %v2987
      %v3703 = vunpack.c.l.b16 %v2988
      %v3704 = vunpack.c.l.b16 %v2989
      %v3705 = vunpack.c.l.b16 %v2990
      %v3706 = vunpack.c.l.b16 %v2991
      %v3707 = vunpack.c.l.b16 %v2992
      %v3708 = vunpack.c.l.b16 %v2993
      %v3709 = vunpack.c.l.b16 %v2994
      %v3710 = vunpack.c.l.b16 %v2995
      %v3711 = vunpack.c.l.b16 %v2996
      %v3712 = vunpack.c.l.b16 %v2997
      %v3713 = vunpack.c.l.b16 %v2998
      %v3714 = vunpack.c.l.b16 %v2999
      %v3715 = vunpack.c.l.b16 %v3000
      %v3716 = vunpack.c.l.b16 %v3001
      %v3717 = vunpack.c.l.b16 %v3002
      %v3718 = vunpack.c.l.b16 %v3003
      %v3719 = vunpack.c.l.b16 %v3004
      %v3720 = vunpack.c.l.b16 %v3005
      %v3721 = vunpack.c.l.b16 %v3006
      %v3722 = vunpack.c.l.b16 %v3007
      %v3723 = vunpack.c.l.b16 %v3008
      %v3724 = vunpack.c.l.b16 %v3009
      %v3725 = vunpack.c.l.b16 %v3010
      %v3726 = vunpack.c.l.b16 %v3011
      %v3727 = vunpack.c.l.b16 %v3012
      %v3728 = vunpack.c.l.b16 %v3013
      %v3729 = vunpack.c.l.b16 %v3014
      %v3730 = vunpack.c.l.b16 %v3015
      %v3731 = vunpack.c.l.b16 %v3016
      %v3732 = vunpack.c.l.b16 %v3017
      %v3733 = vunpack.c.l.b16 %v3018
      %v3734 = vunpack.c.l.b16 %v3019
      %v3735 = vunpack.c.l.b16 %v3020
      %v3736 = vunpack.c.l.b16 %v3021
      %v3737 = vunpack.c.l.b16 %v3022
      %v3738 = vunpack.c.l.b16 %v3023
      %v3739 = vunpack.c.l.b16 %v3024
      %v3740 = vunpack.c.l.b16 %v3025
      %v3741 = vunpack.c.l.b16 %v3026
      %v3742 = vunpack.c.l.b16 %v3027
      %v3743 = vunpack.c.l.b16 %v3028
      %v3744 = vunpack.c.l.b16 %v3029
      %v3745 = vunpack.c.l.b16 %v3030
      %v3746 = vunpack.c.l.b16 %v3031
      %v3747 = vunpack.c.l.b16 %v3032
      %v3748 = vunpack.c.l.b16 %v3033
      %v3749 = vunpack.c.l.b16 %v3034
      %v3750 = vunpack.c.l.b16 %v3035
      %v3751 = vunpack.c.l.b16 %v3036
      %v3752 = vunpack.c.l.b16 %v3037
      %v3753 = vunpack.c.l.b16 %v3038
      %v3754 = vunpack.c.l.b16 %v3039
      %v3755 = vunpack.c.l.b16 %v3040
      %v3756 = vunpack.c.l.b16 %v3041
      %v3757 = vunpack.c.l.b16 %v3042
      %v3758 = vunpack.c.l.b16 %v3043
      %v3759 = vunpack.c.l.b16 %v3044
      %v3760 = vunpack.c.l.b16 %v3045
      %v3761 = vunpack.c.l.b16 %v3046
      %v3762 = vunpack.c.l.b16 %v3047
      %v3763 = vunpack.c.l.b16 %v3048
      %v3764 = vunpack.c.l.b16 %v3049
      %v3765 = vunpack.c.l.b16 %v3050
      %v3766 = vunpack.c.l.b16 %v3051
      %v3767 = vunpack.c.l.b16 %v3052
      %v3768 = vunpack.c.l.b16 %v3053
      %v3769 = vunpack.c.l.b16 %v3054
      %v3770 = vunpack.c.l.b16 %v3055
      %v3771 = vunpack.c.l.b16 %v3056
      %v3772 = vunpack.c.l.b16 %v3057
      %v3773 = vunpack.c.l.b16 %v3058
      %v3774 = vunpack.c.l.b16 %v3059
      %v3775 = vunpack.c.l.b16 %v3060
      %v3776 = vunpack.c.l.b16 %v3061
      %v3777 = vunpack.c.l.b16 %v3062
      %v3778 = vunpack.c.l.b16 %v3063
      %v3779 = vunpack.c.l.b16 %v3064
      %v3780 = vunpack.c.l.b16 %v3065
      %v3781 = vunpack.c.l.b16 %v3066
      %v3782 = vunpack.c.l.b16 %v3067
      %v3783 = vunpack.c.l.b16 %v3068
      %v3784 = vunpack.c.l.b16 %v3069
      %v3785 = vunpack.c.l.b16 %v3070
      %v3786 = vunpack.c.l.b16 %v3071
      %v3787 = vunpack.c.l.b16 %v3072
      %v3788 = vunpack.c.l.b16 %v3073
      %v3789 = vunpack.c.l.b16 %v3074
      %v3790 = vunpack.c.l.b16 %v3075
      %v3791 = vunpack.c.l.b16 %v3076
      %v3792 = vunpack.c.l.b16 %v3077
      %v3793 = vunpack.c.l.b16 %v3078
      %v3794 = vunpack.c.l.b16 %v3079
      %v3795 = vunpack.c.l.b16 %v3080
      %v3796 = vunpack.c.l.b16 %v3081
      %v3797 = vunpack.c.l.b16 %v3082
      %v3798 = vunpack.c.l.b16 %v3083
      %v3799 = vunpack.c.l.b16 %v3084
      %v3800 = vunpack.c.l.b16 %v3085
      %v3801 = vunpack.c.l.b16 %v3086
      %v3802 = vunpack.c.l.b16 %v3087
      %v3803 = vunpack.c.l.b16 %v3088
      %v3804 = vunpack.c.l.b16 %v3089
      %v3805 = vunpack.c.l.b16 %v3090
      %v3806 = vunpack.c.l.b16 %v3091
      %v3807 = vunpack.c.l.b16 %v3092
      %v3808 = vunpack.c.l.b16 %v3093
      %v3809 = vunpack.c.l.b16 %v3094
      %v3810 = vunpack.c.l.b16 %v3095
      %v3811 = vunpack.c.l.b16 %v3096
      %v3812 = vunpack.c.l.b16 %v3097
      %v3813 = vunpack.c.l.b16 %v3098
      %v3814 = vunpack.c.l.b16 %v3099
      %v3815 = vunpack.c.l.b16 %v3100
      %v3816 = vunpack.c.l.b16 %v3101
      %v3817 = vunpack.c.l.b16 %v3102
      %v3818 = vunpack.c.l.b16 %v3103
      %v3819 = vunpack.c.l.b16 %v3104
      %v3820 = vunpack.c.l.b16 %v3105
      %v3821 = vunpack.c.l.b16 %v3106
      %v3822 = vunpack.c.l.b16 %v3107
      %v3823 = vunpack.c.l.b16 %v3108
      %v3824 = vunpack.c.l.b16 %v3109
      %v3825 = vunpack.c.l.b16 %v3110
      %v3826 = vunpack.c.l.b16 %v3111
      %v3827 = vunpack.c.l.b16 %v3112
      %v3828 = vunpack.c.l.b16 %v3113
      %v3829 = vunpack.c.l.b16 %v3114
      %v3830 = vunpack.c.l.b16 %v3115
      %v3831 = vunpack.c.l.b16 %v3116
      %v3832 = vunpack.c.l.b16 %v3117
      %v3833 = vunpack.c.l.b16 %v3118
      %v3834 = vunpack.c.l.b16 %v3119
      %v3835 = vunpack.c.l.b16 %v3120
      %v3836 = vunpack.c.l.b16 %v3121
      %v3837 = vpack.c.b16 %v3622, %v3621
      %v3838 = vpack.c.b16 %v3624, %v3623
      %v3839 = vpack.c.b16 %v3626, %v3625
      %v3840 = vpack.c.b16 %v3628, %v3627
      %v3841 = vpack.c.b16 %v3630, %v3629
      %v3842 = vpack.c.b16 %v3632, %v3631
      %v3843 = vpack.c.b16 %v3634, %v3633
      %v3844 = vpack.c.b16 %v3636, %v3635
      %v3845 = vpack.c.b16 %v3638, %v3637
      %v3846 = vpack.c.b16 %v3640, %v3639
      %v3847 = vpack.c.b16 %v3642, %v3641
      %v3848 = vpack.c.b16 %v3644, %v3643
      %v3849 = vpack.c.b16 %v3646, %v3645
      %v3850 = vpack.c.b16 %v3648, %v3647
      %v3851 = vpack.c.b16 %v3650, %v3649
      %v3852 = vpack.c.b16 %v3652, %v3651
      %v3853 = vpack.c.b16 %v3654, %v3653
      %v3854 = vpack.c.b16 %v3656, %v3655
      %v3855 = vpack.c.b16 %v3658, %v3657
      %v3856 = vpack.c.b16 %v3660, %v3659
      %v3857 = vpack.c.b16 %v3662, %v3661
      %v3858 = vpack.c.b16 %v3664, %v3663
      %v3859 = vpack.c.b16 %v3666, %v3665
      %v3860 = vpack.c.b16 %v3668, %v3667
      %v3861 = vpack.c.b16 %v3670, %v3669
      %v3862 = vpack.c.b16 %v3672, %v3671
      %v3863 = vpack.c.b16 %v3674, %v3673
      %v3864 = vpack.c.b16 %v3676, %v3675
      %v3865 = vpack.c.b16 %v3678, %v3677
      %v3866 = vpack.c.b16 %v3680, %v3679
      %v3867 = vpack.c.b16 %v3682, %v3681
      %v3868 = vpack.c.b16 %v3684, %v3683
      %v3869 = vpack.c.b16 %v3686, %v3685
      %v3870 = vpack.c.b16 %v3688, %v3687
      %v3871 = vpack.c.b16 %v3690, %v3689
      %v3872 = vpack.c.b16 %v3692, %v3691
      %v3873 = vpack.c.b16 %v3694, %v3693
      %v3874 = vpack.c.b16 %v3696, %v3695
      %v3875 = vpack.c.b16 %v3698, %v3697
      %v3876 = vpack.c.b16 %v3700, %v3699
      %v3877 = vpack.c.b16 %v3702, %v3701
      %v3878 = vpack.c.b16 %v3704, %v3703
      %v3879 = vpack.c.b16 %v3706, %v3705
      %v3880 = vpack.c.b16 %v3708, %v3707
      %v3881 = vpack.c.b16 %v3710, %v3709
      %v3882 = vpack.c.b16 %v3712, %v3711
      %v3883 = vpack.c.b16 %v3714, %v3713
      %v3884 = vpack.c.b16 %v3716, %v3715
      %v3885 = vpack.c.b16 %v3718, %v3717
      %v3886 = vpack.c.b16 %v3720, %v3719
      %v3887 = vpack.c.b16 %v3722, %v3721
      %v3888 = vpack.c.b16 %v3724, %v3723
      %v3889 = vpack.c.b16 %v3726, %v3725
      %v3890 = vpack.c.b16 %v3728, %v3727
      %v3891 = vpack.c.b16 %v3730, %v3729
      %v3892 = vpack.c.b16 %v3732, %v3731
      %v3893 = vpack.c.b16 %v3734, %v3733
      %v3894 = vpack.c.b16 %v3736, %v3735
      %v3895 = vpack.c.b16 %v3738, %v3737
      %v3896 = vpack.c.b16 %v3740, %v3739
      %v3897 = vpack.c.b16 %v3742, %v3741
      %v3898 = vpack.c.b16 %v3744, %v3743
      %v3899 = vpack.c.b16 %v3746, %v3745
      %v3900 = vpack.c.b16 %v3748, %v3747
      %v3901 = vpack.c.b16 %v3750, %v3749
      %v3902 = vpack.c.b16 %v3752, %v3751
      %v3903 = vpack.c.b16 %v3754, %v3753
      %v3904 = vpack.c.b16 %v3756, %v3755
      %v3905 = vpack.c.b16 %v3758, %v3757
      %v3906 = vpack.c.b16 %v3760, %v3759
      %v3907 = vpack.c.b16 %v3762, %v3761
      %v3908 = vpack.c.b16 %v3764, %v3763
      %v3909 = vpack.c.b16 %v3766, %v3765
      %v3910 = vpack.c.b16 %v3768, %v3767
      %v3911 = vpack.c.b16 %v3770, %v3769
      %v3912 = vpack.c.b16 %v3772, %v3771
      %v3913 = vpack.c.b16 %v3774, %v3773
      %v3914 = vpack.c.b16 %v3776, %v3775
      %v3915 = vpack.c.b16 %v3778, %v3777
      %v3916 = vpack.c.b16 %v3780, %v3779
      %v3917 = vpack.c.b16 %v3782, %v3781
      %v3918 = vpack.c.b16 %v3784, %v3783
      %v3919 = vpack.c.b16 %v3786, %v3785
      %v3920 = vpack.c.b16 %v3788, %v3787
      %v3921 = vpack.c.b16 %v3790, %v3789
      %v3922 = vpack.c.b16 %v3792, %v3791
      %v3923 = vpack.c.b16 %v3794, %v3793
      %v3924 = vpack.c.b16 %v3796, %v3795
      %v3925 = vpack.c.b16 %v3798, %v3797
      %v3926 = vpack.c.b16 %v3800, %v3799
      %v3927 = vpack.c.b16 %v3802, %v3801
      %v3928 = vpack.c.b16 %v3804, %v3803
      %v3929 = vpack.c.b16 %v3806, %v3805
      %v3930 = vpack.c.b16 %v3808, %v3807
      %v3931 = vpack.c.b16 %v3810, %v3809
      %v3932 = vpack.c.b16 %v3812, %v3811
      %v3933 = vpack.c.b16 %v3814, %v3813
      %v3934 = vpack.c.b16 %v3816, %v3815
      %v3935 = vpack.c.b16 %v3818, %v3817
      %v3936 = vpack.c.b16 %v3820, %v3819
      %v3937 = vpack.c.b16 %v3822, %v3821
      %v3938 = vpack.c.b16 %v3824, %v3823
      %v3939 = vpack.c.b16 %v3826, %v3825
      %v3940 = vpack.c.b16 %v3828, %v3827
      %v3941 = vpack.c.b16 %v3830, %v3829
      %v3942 = vpack.c.b16 %v3832, %v3831
      %v3943 = vpack.c.b16 %v3834, %v3833
      %v3944 = vpack.c.b16 %v3836, %v3835
      %vm4053 = vcmask 523264
      %v4055 = vsel %vm4053, %v3310, 0
      %v4058 = vsel %vm4053, %v3324, 0
      %v4061 = vsel %vm4053, %v3338, 0
      %v4064 = vsel %vm4053, %v3352, 0
      %4066 = vmatprep.subr.bf16.mxu0 0
      %4067 = vmatpush1.bf16.msra.mxu0 %v3844
      %4068 = vmatprep.subr.bf16.mxu0 0
      %4069 = vmatpush1.bf16.msra.mxu0 %v3843
      %4070 = vmatprep.subr.bf16.mxu0 0
      %4071 = vmatpush1.bf16.msra.mxu0 %v3842
      %4072 = vmatprep.subr.bf16.mxu0 0
      %4073 = vmatpush1.bf16.msra.mxu0 %v3841
      %4074 = vmatprep.subr.bf16.mxu0 0
      %4075 = vmatpush1.bf16.msra.mxu0 %v3840
      %4076 = vmatprep.subr.bf16.mxu0 0
      %4077 = vmatpush1.bf16.msra.mxu0 %v3839
      %4078 = vmatprep.subr.bf16.mxu0 0
      %4079 = vmatpush1.bf16.msra.mxu0 %v3838
      %4080 = vmatprep.subr.bf16.mxu0 0
      %4081 = vmatpush1.bf16.msra.mxu0 %v3837
      %4082 = vmatprep.subr.bf16.mxu0 0
      %4083 = vmatpush2.bf16.msra.mxu0 %v3852
      %4084 = vmatprep.subr.bf16.mxu0 0
      %4085 = vmatpush2.bf16.msra.mxu0 %v3851
      %4086 = vmatprep.subr.bf16.mxu0 0
      %4087 = vmatpush2.bf16.msra.mxu0 %v3850
      %4088 = vmatprep.subr.bf16.mxu0 0
      %4089 = vmatpush2.bf16.msra.mxu0 %v3849
      %4090 = vmatprep.subr.bf16.mxu0 0
      %4091 = vmatpush2.bf16.msra.mxu0 %v3848
      %4092 = vmatprep.subr.bf16.mxu0 0
      %4093 = vmatpush2.bf16.msra.mxu0 %v3847
      %4094 = vmatprep.subr.bf16.mxu0 0
      %4095 = vmatpush2.bf16.msra.mxu0 %v3846
      %4096 = vmatprep.subr.bf16.mxu0 0
      %4097 = vmatpush2.bf16.msra.mxu0 %v3845
      %4098 = vmatprep.mubr.bf16.mxu0 %v3298
      %4099 = vmatmul.mubr.bf16.gmra.mxu0 %v3297
      %v4100 = vpop.f32.mrf.mxu0
      %v4101 = vadd.f32 %v3127, %v4100
      %v4102 = vpop.f32.mrf.mxu0
      %v4103 = vpop.f32.mrf.mxu0
      %v4104 = vadd.f32 %v3127, %v4103
      %v4105 = vpop.f32.mrf.mxu0
      %4106 = vmatprep.mubr.bf16.mxu0 %v3312
      %4107 = vmatmul.mubr.bf16.gmra.mxu0 %v3311
      %v4108 = vpop.f32.mrf.mxu0
      %v4109 = vadd.f32 %v3127, %v4108
      %v4110 = vpop.f32.mrf.mxu0
      %v4111 = vpop.f32.mrf.mxu0
      %v4112 = vadd.f32 %v3127, %v4111
      %v4113 = vpop.f32.mrf.mxu0
      %4114 = vmatprep.mubr.bf16.mxu0 %v3326
      %4115 = vmatmul.mubr.bf16.gmra.mxu0 %v3325
      %v4116 = vpop.f32.mrf.mxu0
      %v4117 = vadd.f32 %v3127, %v4116
      %v4118 = vpop.f32.mrf.mxu0
      %v4119 = vpop.f32.mrf.mxu0
      %v4120 = vadd.f32 %v3127, %v4119
      %v4121 = vpop.f32.mrf.mxu0
      %4122 = vmatprep.mubr.bf16.mxu0 %v3340
      %4123 = vmatmul.mubr.bf16.gmra.mxu0 %v3339
      %v4124 = vpop.f32.mrf.mxu0
      %v4125 = vadd.f32 %v3127, %v4124
      %v4126 = vpop.f32.mrf.mxu0
      %v4127 = vpop.f32.mrf.mxu0
      %v4128 = vadd.f32 %v3127, %v4127
      %v4129 = vpop.f32.mrf.mxu0
      %4130 = vdwg.mxu0
      %4131 = vmatprep.subr.bf16.mxu0 0
      %4132 = vmatpush1.bf16.msra.mxu0 %v3860
      %4133 = vmatprep.subr.bf16.mxu0 0
      %4134 = vmatpush1.bf16.msra.mxu0 %v3859
      %4135 = vmatprep.subr.bf16.mxu0 0
      %4136 = vmatpush1.bf16.msra.mxu0 %v3858
      %4137 = vmatprep.subr.bf16.mxu0 0
      %4138 = vmatpush1.bf16.msra.mxu0 %v3857
      %4139 = vmatprep.subr.bf16.mxu0 0
      %4140 = vmatpush1.bf16.msra.mxu0 %v3856
      %4141 = vmatprep.subr.bf16.mxu0 0
      %4142 = vmatpush1.bf16.msra.mxu0 %v3855
      %4143 = vmatprep.subr.bf16.mxu0 0
      %4144 = vmatpush1.bf16.msra.mxu0 %v3854
      %4145 = vmatprep.subr.bf16.mxu0 0
      %4146 = vmatpush1.bf16.msra.mxu0 %v3853
      %4147 = vmatprep.subr.bf16.mxu0 0
      %4148 = vmatpush2.bf16.msra.mxu0 %v3868
      %4149 = vmatprep.subr.bf16.mxu0 0
      %4150 = vmatpush2.bf16.msra.mxu0 %v3867
      %4151 = vmatprep.subr.bf16.mxu0 0
      %4152 = vmatpush2.bf16.msra.mxu0 %v3866
      %4153 = vmatprep.subr.bf16.mxu0 0
      %4154 = vmatpush2.bf16.msra.mxu0 %v3865
      %4155 = vmatprep.subr.bf16.mxu0 0
      %4156 = vmatpush2.bf16.msra.mxu0 %v3864
      %4157 = vmatprep.subr.bf16.mxu0 0
      %4158 = vmatpush2.bf16.msra.mxu0 %v3863
      %4159 = vmatprep.subr.bf16.mxu0 0
      %4160 = vmatpush2.bf16.msra.mxu0 %v3862
      %4161 = vmatprep.subr.bf16.mxu0 0
      %4162 = vmatpush2.bf16.msra.mxu0 %v3861
      %4163 = vmatprep.mubr.bf16.mxu0 %v3300
      %4164 = vmatmul.mubr.bf16.gmra.mxu0 %v3299
      %v4165 = vpop.f32.mrf.mxu0
      %v4166 = vadd.f32 %v4101, %v4165
      %v4167 = vpop.f32.mrf.mxu0
      %v4168 = vpop.f32.mrf.mxu0
      %v4169 = vadd.f32 %v4104, %v4168
      %v4170 = vpop.f32.mrf.mxu0
      %4171 = vmatprep.mubr.bf16.mxu0 %v3314
      %4172 = vmatmul.mubr.bf16.gmra.mxu0 %v3313
      %v4173 = vpop.f32.mrf.mxu0
      %v4174 = vadd.f32 %v4109, %v4173
      %v4175 = vpop.f32.mrf.mxu0
      %v4176 = vpop.f32.mrf.mxu0
      %v4177 = vadd.f32 %v4112, %v4176
      %v4178 = vpop.f32.mrf.mxu0
      %4179 = vmatprep.mubr.bf16.mxu0 %v3328
      %4180 = vmatmul.mubr.bf16.gmra.mxu0 %v3327
      %v4181 = vpop.f32.mrf.mxu0
      %v4182 = vadd.f32 %v4117, %v4181
      %v4183 = vpop.f32.mrf.mxu0
      %v4184 = vpop.f32.mrf.mxu0
      %v4185 = vadd.f32 %v4120, %v4184
      %v4186 = vpop.f32.mrf.mxu0
      %4187 = vmatprep.mubr.bf16.mxu0 %v3342
      %4188 = vmatmul.mubr.bf16.gmra.mxu0 %v3341
      %v4189 = vpop.f32.mrf.mxu0
      %v4190 = vadd.f32 %v4125, %v4189
      %v4191 = vpop.f32.mrf.mxu0
      %v4192 = vpop.f32.mrf.mxu0
      %v4193 = vadd.f32 %v4128, %v4192
      %v4194 = vpop.f32.mrf.mxu0
      %4195 = vdwg.mxu0
      %4196 = vmatprep.subr.bf16.mxu0 0
      %4197 = vmatpush1.bf16.msra.mxu0 %v3876
      %4198 = vmatprep.subr.bf16.mxu0 0
      %4199 = vmatpush1.bf16.msra.mxu0 %v3875
      %4200 = vmatprep.subr.bf16.mxu0 0
      %4201 = vmatpush1.bf16.msra.mxu0 %v3874
      %4202 = vmatprep.subr.bf16.mxu0 0
      %4203 = vmatpush1.bf16.msra.mxu0 %v3873
      %4204 = vmatprep.subr.bf16.mxu0 0
      %4205 = vmatpush1.bf16.msra.mxu0 %v3872
      %4206 = vmatprep.subr.bf16.mxu0 0
      %4207 = vmatpush1.bf16.msra.mxu0 %v3871
      %4208 = vmatprep.subr.bf16.mxu0 0
      %4209 = vmatpush1.bf16.msra.mxu0 %v3870
      %4210 = vmatprep.subr.bf16.mxu0 0
      %4211 = vmatpush1.bf16.msra.mxu0 %v3869
      %4212 = vmatprep.subr.bf16.mxu0 0
      %4213 = vmatpush2.bf16.msra.mxu0 %v3884
      %4214 = vmatprep.subr.bf16.mxu0 0
      %4215 = vmatpush2.bf16.msra.mxu0 %v3883
      %4216 = vmatprep.subr.bf16.mxu0 0
      %4217 = vmatpush2.bf16.msra.mxu0 %v3882
      %4218 = vmatprep.subr.bf16.mxu0 0
      %4219 = vmatpush2.bf16.msra.mxu0 %v3881
      %4220 = vmatprep.subr.bf16.mxu0 0
      %4221 = vmatpush2.bf16.msra.mxu0 %v3880
      %4222 = vmatprep.subr.bf16.mxu0 0
      %4223 = vmatpush2.bf16.msra.mxu0 %v3879
      %4224 = vmatprep.subr.bf16.mxu0 0
      %4225 = vmatpush2.bf16.msra.mxu0 %v3878
      %4226 = vmatprep.subr.bf16.mxu0 0
      %4227 = vmatpush2.bf16.msra.mxu0 %v3877
      %4228 = vmatprep.mubr.bf16.mxu0 %v3302
      %4229 = vmatmul.mubr.bf16.gmra.mxu0 %v3301
      %v4230 = vpop.f32.mrf.mxu0
      %v4231 = vadd.f32 %v4166, %v4230
      %v4232 = vpop.f32.mrf.mxu0
      %v4233 = vpop.f32.mrf.mxu0
      %v4234 = vadd.f32 %v4169, %v4233
      %v4235 = vpop.f32.mrf.mxu0
      %4236 = vmatprep.mubr.bf16.mxu0 %v3316
      %4237 = vmatmul.mubr.bf16.gmra.mxu0 %v3315
      %v4238 = vpop.f32.mrf.mxu0
      %v4239 = vadd.f32 %v4174, %v4238
      %v4240 = vpop.f32.mrf.mxu0
      %v4241 = vpop.f32.mrf.mxu0
      %v4242 = vadd.f32 %v4177, %v4241
      %v4243 = vpop.f32.mrf.mxu0
      %4244 = vmatprep.mubr.bf16.mxu0 %v3330
      %4245 = vmatmul.mubr.bf16.gmra.mxu0 %v3329
      %v4246 = vpop.f32.mrf.mxu0
      %v4247 = vadd.f32 %v4182, %v4246
      %v4248 = vpop.f32.mrf.mxu0
      %v4249 = vpop.f32.mrf.mxu0
      %v4250 = vadd.f32 %v4185, %v4249
      %v4251 = vpop.f32.mrf.mxu0
      %4252 = vmatprep.mubr.bf16.mxu0 %v3344
      %4253 = vmatmul.mubr.bf16.gmra.mxu0 %v3343
      %v4254 = vpop.f32.mrf.mxu0
      %v4255 = vadd.f32 %v4190, %v4254
      %v4256 = vpop.f32.mrf.mxu0
      %v4257 = vpop.f32.mrf.mxu0
      %v4258 = vadd.f32 %v4193, %v4257
      %v4259 = vpop.f32.mrf.mxu0
      %4260 = vdwg.mxu0
      %4261 = vmatprep.subr.bf16.mxu0 0
      %4262 = vmatpush1.bf16.msra.mxu0 %v3892
      %4263 = vmatprep.subr.bf16.mxu0 0
      %4264 = vmatpush1.bf16.msra.mxu0 %v3891
      %4265 = vmatprep.subr.bf16.mxu0 0
      %4266 = vmatpush1.bf16.msra.mxu0 %v3890
      %4267 = vmatprep.subr.bf16.mxu0 0
      %4268 = vmatpush1.bf16.msra.mxu0 %v3889
      %4269 = vmatprep.subr.bf16.mxu0 0
      %4270 = vmatpush1.bf16.msra.mxu0 %v3888
      %4271 = vmatprep.subr.bf16.mxu0 0
      %4272 = vmatpush1.bf16.msra.mxu0 %v3887
      %4273 = vmatprep.subr.bf16.mxu0 0
      %4274 = vmatpush1.bf16.msra.mxu0 %v3886
      %4275 = vmatprep.subr.bf16.mxu0 0
      %4276 = vmatpush1.bf16.msra.mxu0 %v3885
      %4277 = vmatprep.subr.bf16.mxu0 0
      %4278 = vmatpush2.bf16.msra.mxu0 %v3900
      %4279 = vmatprep.subr.bf16.mxu0 0
      %4280 = vmatpush2.bf16.msra.mxu0 %v3899
      %4281 = vmatprep.subr.bf16.mxu0 0
      %4282 = vmatpush2.bf16.msra.mxu0 %v3898
      %4283 = vmatprep.subr.bf16.mxu0 0
      %4284 = vmatpush2.bf16.msra.mxu0 %v3897
      %4285 = vmatprep.subr.bf16.mxu0 0
      %4286 = vmatpush2.bf16.msra.mxu0 %v3896
      %4287 = vmatprep.subr.bf16.mxu0 0
      %4288 = vmatpush2.bf16.msra.mxu0 %v3895
      %4289 = vmatprep.subr.bf16.mxu0 0
      %4290 = vmatpush2.bf16.msra.mxu0 %v3894
      %4291 = vmatprep.subr.bf16.mxu0 0
      %4292 = vmatpush2.bf16.msra.mxu0 %v3893
      %4293 = vmatprep.mubr.bf16.mxu0 %v3304
      %4294 = vmatmul.mubr.bf16.gmra.mxu0 %v3303
      %v4295 = vpop.f32.mrf.mxu0
      %v4296 = vadd.f32 %v4231, %v4295
      %v4297 = vpop.f32.mrf.mxu0
      %v4298 = vpop.f32.mrf.mxu0
      %v4299 = vadd.f32 %v4234, %v4298
      %v4300 = vpop.f32.mrf.mxu0
      %4301 = vmatprep.mubr.bf16.mxu0 %v3318
      %4302 = vmatmul.mubr.bf16.gmra.mxu0 %v3317
      %v4303 = vpop.f32.mrf.mxu0
      %v4304 = vadd.f32 %v4239, %v4303
      %v4305 = vpop.f32.mrf.mxu0
      %v4306 = vpop.f32.mrf.mxu0
      %v4307 = vadd.f32 %v4242, %v4306
      %v4308 = vpop.f32.mrf.mxu0
      %4309 = vmatprep.mubr.bf16.mxu0 %v3332
      %4310 = vmatmul.mubr.bf16.gmra.mxu0 %v3331
      %v4311 = vpop.f32.mrf.mxu0
      %v4312 = vadd.f32 %v4247, %v4311
      %v4313 = vpop.f32.mrf.mxu0
      %v4314 = vpop.f32.mrf.mxu0
      %v4315 = vadd.f32 %v4250, %v4314
      %v4316 = vpop.f32.mrf.mxu0
      %4317 = vmatprep.mubr.bf16.mxu0 %v3346
      %4318 = vmatmul.mubr.bf16.gmra.mxu0 %v3345
      %v4319 = vpop.f32.mrf.mxu0
      %v4320 = vadd.f32 %v4255, %v4319
      %v4321 = vpop.f32.mrf.mxu0
      %v4322 = vpop.f32.mrf.mxu0
      %v4323 = vadd.f32 %v4258, %v4322
      %v4324 = vpop.f32.mrf.mxu0
      %4325 = vdwg.mxu0
      %4326 = vmatprep.subr.bf16.mxu0 0
      %4327 = vmatpush1.bf16.msra.mxu0 %v3908
      %4328 = vmatprep.subr.bf16.mxu0 0
      %4329 = vmatpush1.bf16.msra.mxu0 %v3907
      %4330 = vmatprep.subr.bf16.mxu0 0
      %4331 = vmatpush1.bf16.msra.mxu0 %v3906
      %4332 = vmatprep.subr.bf16.mxu0 0
      %4333 = vmatpush1.bf16.msra.mxu0 %v3905
      %4334 = vmatprep.subr.bf16.mxu0 0
      %4335 = vmatpush1.bf16.msra.mxu0 %v3904
      %4336 = vmatprep.subr.bf16.mxu0 0
      %4337 = vmatpush1.bf16.msra.mxu0 %v3903
      %4338 = vmatprep.subr.bf16.mxu0 0
      %4339 = vmatpush1.bf16.msra.mxu0 %v3902
      %4340 = vmatprep.subr.bf16.mxu0 0
      %4341 = vmatpush1.bf16.msra.mxu0 %v3901
      %4342 = vmatprep.subr.bf16.mxu0 0
      %4343 = vmatpush2.bf16.msra.mxu0 %v3916
      %4344 = vmatprep.subr.bf16.mxu0 0
      %4345 = vmatpush2.bf16.msra.mxu0 %v3915
      %4346 = vmatprep.subr.bf16.mxu0 0
      %4347 = vmatpush2.bf16.msra.mxu0 %v3914
      %4348 = vmatprep.subr.bf16.mxu0 0
      %4349 = vmatpush2.bf16.msra.mxu0 %v3913
      %4350 = vmatprep.subr.bf16.mxu0 0
      %4351 = vmatpush2.bf16.msra.mxu0 %v3912
      %4352 = vmatprep.subr.bf16.mxu0 0
      %4353 = vmatpush2.bf16.msra.mxu0 %v3911
      %4354 = vmatprep.subr.bf16.mxu0 0
      %4355 = vmatpush2.bf16.msra.mxu0 %v3910
      %4356 = vmatprep.subr.bf16.mxu0 0
      %4357 = vmatpush2.bf16.msra.mxu0 %v3909
      %4358 = vmatprep.mubr.bf16.mxu0 %v3306
      %4359 = vmatmul.mubr.bf16.gmra.mxu0 %v3305
      %v4360 = vpop.f32.mrf.mxu0
      %v4361 = vadd.f32 %v4296, %v4360
      %v4362 = vpop.f32.mrf.mxu0
      %v4363 = vpop.f32.mrf.mxu0
      %v4364 = vadd.f32 %v4299, %v4363
      %v4365 = vpop.f32.mrf.mxu0
      %4366 = vmatprep.mubr.bf16.mxu0 %v3320
      %4367 = vmatmul.mubr.bf16.gmra.mxu0 %v3319
      %v4368 = vpop.f32.mrf.mxu0
      %v4369 = vadd.f32 %v4304, %v4368
      %v4370 = vpop.f32.mrf.mxu0
      %v4371 = vpop.f32.mrf.mxu0
      %v4372 = vadd.f32 %v4307, %v4371
      %v4373 = vpop.f32.mrf.mxu0
      %4374 = vmatprep.mubr.bf16.mxu0 %v3334
      %4375 = vmatmul.mubr.bf16.gmra.mxu0 %v3333
      %v4376 = vpop.f32.mrf.mxu0
      %v4377 = vadd.f32 %v4312, %v4376
      %v4378 = vpop.f32.mrf.mxu0
      %v4379 = vpop.f32.mrf.mxu0
      %v4380 = vadd.f32 %v4315, %v4379
      %v4381 = vpop.f32.mrf.mxu0
      %4382 = vmatprep.mubr.bf16.mxu0 %v3348
      %4383 = vmatmul.mubr.bf16.gmra.mxu0 %v3347
      %v4384 = vpop.f32.mrf.mxu0
      %v4385 = vadd.f32 %v4320, %v4384
      %v4386 = vpop.f32.mrf.mxu0
      %v4387 = vpop.f32.mrf.mxu0
      %v4388 = vadd.f32 %v4323, %v4387
      %v4389 = vpop.f32.mrf.mxu0
      %4390 = vdwg.mxu0
      %4391 = vmatprep.subr.bf16.mxu0 0
      %4392 = vmatpush1.bf16.msra.mxu0 %v3924
      %4393 = vmatprep.subr.bf16.mxu0 0
      %4394 = vmatpush1.bf16.msra.mxu0 %v3923
      %4395 = vmatprep.subr.bf16.mxu0 0
      %4396 = vmatpush1.bf16.msra.mxu0 %v3922
      %4397 = vmatprep.subr.bf16.mxu0 0
      %4398 = vmatpush1.bf16.msra.mxu0 %v3921
      %4399 = vmatprep.subr.bf16.mxu0 0
      %4400 = vmatpush1.bf16.msra.mxu0 %v3920
      %4401 = vmatprep.subr.bf16.mxu0 0
      %4402 = vmatpush1.bf16.msra.mxu0 %v3919
      %4403 = vmatprep.subr.bf16.mxu0 0
      %4404 = vmatpush1.bf16.msra.mxu0 %v3918
      %4405 = vmatprep.subr.bf16.mxu0 0
      %4406 = vmatpush1.bf16.msra.mxu0 %v3917
      %4407 = vmatprep.subr.bf16.mxu0 0
      %4408 = vmatpush2.bf16.msra.mxu0 %v3932
      %4409 = vmatprep.subr.bf16.mxu0 0
      %4410 = vmatpush2.bf16.msra.mxu0 %v3931
      %4411 = vmatprep.subr.bf16.mxu0 0
      %4412 = vmatpush2.bf16.msra.mxu0 %v3930
      %4413 = vmatprep.subr.bf16.mxu0 0
      %4414 = vmatpush2.bf16.msra.mxu0 %v3929
      %4415 = vmatprep.subr.bf16.mxu0 0
      %4416 = vmatpush2.bf16.msra.mxu0 %v3928
      %4417 = vmatprep.subr.bf16.mxu0 0
      %4418 = vmatpush2.bf16.msra.mxu0 %v3927
      %4419 = vmatprep.subr.bf16.mxu0 0
      %4420 = vmatpush2.bf16.msra.mxu0 %v3926
      %4421 = vmatprep.subr.bf16.mxu0 0
      %4422 = vmatpush2.bf16.msra.mxu0 %v3925
      %4423 = vmatprep.mubr.bf16.mxu0 %v3308
      %4424 = vmatmul.mubr.bf16.gmra.mxu0 %v3307
      %v4425 = vpop.f32.mrf.mxu0
      %v4426 = vadd.f32 %v4361, %v4425
      %v4427 = vpop.f32.mrf.mxu0
      %v4428 = vpop.f32.mrf.mxu0
      %v4429 = vadd.f32 %v4364, %v4428
      %v4430 = vpop.f32.mrf.mxu0
      %4431 = vmatprep.mubr.bf16.mxu0 %v3322
      %4432 = vmatmul.mubr.bf16.gmra.mxu0 %v3321
      %v4433 = vpop.f32.mrf.mxu0
      %v4434 = vadd.f32 %v4369, %v4433
      %v4435 = vpop.f32.mrf.mxu0
      %v4436 = vpop.f32.mrf.mxu0
      %v4437 = vadd.f32 %v4372, %v4436
      %v4438 = vpop.f32.mrf.mxu0
      %4439 = vmatprep.mubr.bf16.mxu0 %v3336
      %4440 = vmatmul.mubr.bf16.gmra.mxu0 %v3335
      %v4441 = vpop.f32.mrf.mxu0
      %v4442 = vadd.f32 %v4377, %v4441
      %v4443 = vpop.f32.mrf.mxu0
      %v4444 = vpop.f32.mrf.mxu0
      %v4445 = vadd.f32 %v4380, %v4444
      %v4446 = vpop.f32.mrf.mxu0
      %4447 = vmatprep.mubr.bf16.mxu0 %v3350
      %4448 = vmatmul.mubr.bf16.gmra.mxu0 %v3349
      %v4449 = vpop.f32.mrf.mxu0
      %v4450 = vadd.f32 %v4385, %v4449
      %v4451 = vpop.f32.mrf.mxu0
      %v4452 = vpop.f32.mrf.mxu0
      %v4453 = vadd.f32 %v4388, %v4452
      %v4454 = vpop.f32.mrf.mxu0
      %4455 = vdwg.mxu0
      %4456 = vmatprep.subr.bf16.mxu0 0
      %4457 = vmatpush1.bf16.msra.mxu0 %v3940
      %4458 = vmatprep.subr.bf16.mxu0 0
      %4459 = vmatpush1.bf16.msra.mxu0 %v3939
      %4460 = vmatprep.subr.bf16.mxu0 0
      %4461 = vmatpush1.bf16.msra.mxu0 %v3938
      %4462 = vmatprep.subr.bf16.mxu0 0
      %4463 = vmatpush1.bf16.msra.mxu0 %v3937
      %4464 = vmatprep.subr.bf16.mxu0 0
      %4465 = vmatpush1.bf16.msra.mxu0 %v3936
      %4466 = vmatprep.subr.bf16.mxu0 0
      %4467 = vmatpush1.bf16.msra.mxu0 %v3935
      %4468 = vmatprep.subr.bf16.mxu0 0
      %4469 = vmatpush1.bf16.msra.mxu0 %v3934
      %4470 = vmatprep.subr.bf16.mxu0 0
      %4471 = vmatpush1.bf16.msra.mxu0 %v3933
      %4472 = vmatprep.subr.bf16.mxu0 0
      %4473 = vmatpush2.bf16.msra.mxu0 0
      %4474 = vmatprep.subr.bf16.mxu0 0
      %4475 = vmatpush2.bf16.msra.mxu0 0
      %4476 = vmatprep.subr.bf16.mxu0 0
      %4477 = vmatpush2.bf16.msra.mxu0 0
      %4478 = vmatprep.subr.bf16.mxu0 0
      %4479 = vmatpush2.bf16.msra.mxu0 0
      %4480 = vmatprep.subr.bf16.mxu0 0
      %4481 = vmatpush2.bf16.msra.mxu0 %v3944
      %4482 = vmatprep.subr.bf16.mxu0 0
      %4483 = vmatpush2.bf16.msra.mxu0 %v3943
      %4484 = vmatprep.subr.bf16.mxu0 0
      %4485 = vmatpush2.bf16.msra.mxu0 %v3942
      %4486 = vmatprep.subr.bf16.mxu0 0
      %4487 = vmatpush2.bf16.msra.mxu0 %v3941
      %4488 = vmatprep.mubr.bf16.mxu0 %v4055
      %4489 = vmatmul.mubr.bf16.gmra.mxu0 %v3309
      %v4490 = vpop.f32.mrf.mxu0
      %v4491 = vadd.f32 %v4426, %v4490
      %v4492 = vpop.f32.mrf.mxu0
      %v4493 = vpop.f32.mrf.mxu0
      %v4494 = vadd.f32 %v4429, %v4493
      %v4495 = vpop.f32.mrf.mxu0
      %4496 = vmatprep.mubr.bf16.mxu0 %v4058
      %4497 = vmatmul.mubr.bf16.gmra.mxu0 %v3323
      %v4498 = vpop.f32.mrf.mxu0
      %v4499 = vadd.f32 %v4434, %v4498
      %v4500 = vpop.f32.mrf.mxu0
      %v4501 = vpop.f32.mrf.mxu0
      %v4502 = vadd.f32 %v4437, %v4501
      %v4503 = vpop.f32.mrf.mxu0
      %4504 = vmatprep.mubr.bf16.mxu0 %v4061
      %4505 = vmatmul.mubr.bf16.gmra.mxu0 %v3337
      %v4506 = vpop.f32.mrf.mxu0
      %v4507 = vadd.f32 %v4442, %v4506
      %v4508 = vpop.f32.mrf.mxu0
      %v4509 = vpop.f32.mrf.mxu0
      %v4510 = vadd.f32 %v4445, %v4509
      %v4511 = vpop.f32.mrf.mxu0
      %4512 = vmatprep.mubr.bf16.mxu0 %v4064
      %4513 = vmatmul.mubr.bf16.gmra.mxu0 %v3351
      %v4514 = vpop.f32.mrf.mxu0
      %v4515 = vadd.f32 %v4450, %v4514
      %v4516 = vpop.f32.mrf.mxu0
      %v4517 = vpop.f32.mrf.mxu0
      %v4518 = vadd.f32 %v4453, %v4517
      %v4519 = vpop.f32.mrf.mxu0
      %4520 = vdwg.mxu0
      %4521 = vxpose.xlu0.b32.start [1/16] %v4491, 128
      %4522 = vxpose.xlu0.b32.cont [2/16] %v4494, 128
      %4523 = vxpose.xlu0.b32.cont [3/16] %v4499, 128
      %4524 = vxpose.xlu0.b32.cont [4/16] %v4502, 128
      %4525 = vxpose.xlu0.b32.cont [5/16] %v4507, 128
      %4526 = vxpose.xlu0.b32.cont [6/16] %v4510, 128
      %4527 = vxpose.xlu0.b32.cont [7/16] %v4515, 128
      %4528 = vxpose.xlu0.b32.cont [8/16] %v4518, 128
      %4529 = vxpose.xlu0.b32.cont [9/16] 0.0, 128
      %4530 = vxpose.xlu0.b32.cont [10/16] 0.0, 128
      %4531 = vxpose.xlu0.b32.cont [11/16] 0.0, 128
      %4532 = vxpose.xlu0.b32.cont [12/16] 0.0, 128
      %4533 = vxpose.xlu0.b32.cont [13/16] 0.0, 128
      %4534 = vxpose.xlu0.b32.cont [14/16] 0.0, 128
      %4535 = vxpose.xlu0.b32.cont [15/16] 0.0, 128
      %4536 = vxpose.xlu0.b32.end [16/16] 0.0, 128
      %v4537 = vpop.trf.xlu0
      %v4538 = vpop.trf.xlu0
      %v4539 = vpop.trf.xlu0
      %v4540 = vpop.trf.xlu0
      %v4541 = vpop.trf.xlu0
      %v4542 = vpop.trf.xlu0
      %v4543 = vpop.trf.xlu0
      %v4544 = vpop.trf.xlu0
      %v4545 = vpop.trf.xlu0
      %v4546 = vpop.trf.xlu0
      %v4547 = vpop.trf.xlu0
      %v4548 = vpop.trf.xlu0
      %v4549 = vpop.trf.xlu0
      %v4550 = vpop.trf.xlu0
      %v4551 = vpop.trf.xlu0
      %v4552 = vpop.trf.xlu0
      %4553 = vst.msk [vmem:[%s217] sm:$0xff] %vm4053, %v4537
      %4554 = vst.msk [vmem:[%s217 + $0x8] sm:$0xff] %vm4053, %v4538
      %4555 = vst.msk [vmem:[%s217 + $0x10] sm:$0xff] %vm4053, %v4539
      %4556 = vst.msk [vmem:[%s217 + $0x18] sm:$0xff] %vm4053, %v4540
      %p4557 = scmp.lt.s32.totalorder %s15, 1
      %s4558 = scalar_select %p4557, %s15, 1
      %s4559 = smul.addr %s4558, 4
      %s4560 = smul.addr %s4559, 8
      %s4561 = scalar_lea.vmem %s4, %s4560
      // Predicated region
      $region37: #{encoder_fuse12_forward.2} parent=35 // pred_check
        %p4562 = pneg %p127
      $region38: #{encoder_fuse12_forward.2} parent=35 // pred_check_branch
        %4564 = sbr.rel (%p4562) target = $region40
      $region39: #{encoder_fuse12_forward.2} parent=35 // pred_region
        _
      $region40: #{encoder_fuse12_forward.2} parent=35 // pred_fallthru
        _
    $region36: #{encoder_fuse12_forward.2} parent=5 // pred_fallthru
      _
    %p4565 = scmp.le.s32.totalorder 2, %s10
    // Predicated region
    $region41: #{encoder_fuse12_forward.2} parent=5 // pred_check
      %p4566 = pneg %p4565
    $region42: #{encoder_fuse12_forward.2} parent=5 // pred_check_branch
      %4568 = sbr.rel (%p4566) target = $region44
    $region43: #{encoder_fuse12_forward.2} parent=5 // pred_region
      %s4569 = ssub.s32 %s10, 2
      // Predicated region
      $region45: #{encoder_fuse12_forward.2} parent=43 // pred_check
        %p4570 = pneg %p133
      $region46: #{encoder_fuse12_forward.2} parent=43 // pred_check_branch
        %4572 = sbr.rel (%p4570) target = $region48
      $region47: #{encoder_fuse12_forward.2} parent=43 // pred_region
        %p4573 = scmp.lt.s32.totalorder %s16, 1
        %s4574 = scalar_select %p4573, %s16, 1
        %s4575 = smul.addr %s4574, 4
        %s4576 = smul.addr %s4575, 8
        %s4577 = scalar_lea.vmem %s4, %s4576
      $region48: #{encoder_fuse12_forward.2} parent=43 // pred_fallthru
        _
    $region44: #{encoder_fuse12_forward.2} parent=5 // pred_fallthru
      _
  $region6: #{encoder_fuse12_forward.2} parent=0 // loop_footer
    %s14 = sadd.s32 1, %s10
  $region7: #{encoder_fuse12_forward.2} parent=0 // loop_footer_branch
    %9 = sbr.rel target = $region3
  $region8: #{encoder_fuse12_forward.2} parent=0 // loop_exit
    _

</llo_original>
